<compile_context>
chip_gen: v7x
topology: tpu7x:2x2x1
jax: 0.10.0
libtpu: 0.0.40
codegen_flags: <defaults>
</compile_context>

<pallas_src>
import functools

import jax
import jax.numpy as jnp
from jax.experimental import pallas as pl
from jax.experimental.pallas import tpu as pltpu

EPS = 1e-5


def _conv_relu_stats_kernel(TH, Wo, K, C, x_ref, w_ref, b_ref,
                            y_ref, s_ref, ss_ref):
    # x_ref : (1, C, Hp, Wp) VMEM  -- whole padded image, resident across the
    #                                 R row-tile steps of this batch element
    # w_ref : (C*C*K*K,)     SMEM  -- conv weights in [cout, cin, kh, kw] order
    # b_ref : (C,)           SMEM  -- conv bias
    # y_ref : (1, C, TH, Wo) VMEM  -- post-ReLU activation (NCHW row tile)
    # s_ref / ss_ref : (1, 1, C, Wo) VMEM -- per-tile BN partial sums (rows
    #                                        reduced in-kernel, Wo kept dense)
    r = pl.program_id(1)
    row0 = r * TH
    if TH % 8 == 0:
        row0 = pl.multiple_of(row0, 8)     # aligned dynamic sublane offset
    THK = TH + K - 1

    # Conv as C*C*K*K scalar-vector FMAs on (TH, Wo) slabs (VPU).  Shifts are
    # static sublane/lane slices; the per-tap weight is an SMEM scalar splat.
    accs = [None] * C
    for cin in range(C):
        # Halo window of this input channel, loaded once per cin: (THK, Wp).
        xw = x_ref[0, cin, pl.ds(row0, THK), :].astype(jnp.float32)
        for kh in range(K):
            xr = xw[kh:kh + TH, :]                     # (TH, Wp) sublane shift
            for kw in range(K):
                xs = xr[:, kw:kw + Wo]                 # (TH, Wo) lane shift
                for cout in range(C):
                    w = w_ref[((cout * C + cin) * K + kh) * K + kw]
                    t = xs * w
                    accs[cout] = t if accs[cout] is None else accs[cout] + t

    for cout in range(C):
        yc = jnp.maximum(accs[cout] + b_ref[cout], 0.0)     # bias + ReLU
        y_ref[0, cout, :, :] = yc
        # Lane-dense partial sums: reduce over the TH rows only; the Wo and
        # cross-tile reductions happen in the tiny JAX finalize.
        s_ref[0, 0, cout:cout + 1, :] = jnp.sum(yc, axis=0, keepdims=True)
        ss_ref[0, 0, cout:cout + 1, :] = jnp.sum(yc * yc, axis=0, keepdims=True)


def _bn_apply_kernel(C, y_ref, scale_ref, shift_ref, o_ref):
    # y_ref / o_ref : (1, C, TH, Wo) VMEM (o aliases y's HBM buffer)
    # scale_ref / shift_ref : (C,) SMEM per-channel scalars
    for c in range(C):
        o_ref[0, c, :, :] = y_ref[0, c, :, :] * scale_ref[c] + shift_ref[c]


def _pick_row_tile(Ho, Wo, C, target_bytes=4 << 20):
    """Largest divisor of Ho (preferring multiples of 8) whose NCHW y tile
    stays under ~target_bytes.  The padded image is VMEM-resident anyway, so
    TH only sets the store granularity / per-step overhead; never fall back
    to TH=1."""
    cap = max(1, target_bytes // max(1, C * Wo * 4))
    divs = [d for d in range(1, Ho + 1) if Ho % d == 0]
    good = [d for d in divs if d % 8 == 0 and d <= cap]
    if good:
        return max(good)
    ok = [d for d in divs if d <= cap]
    if ok and max(ok) >= 8:
        return max(ok)
    # TODO(synk): masked tail tiles for awkward (e.g. prime) heights instead
    # of processing the whole height in one step.
    return Ho


def conv_block_forward(x_nchw, weight_oihw, bias, gamma, beta, *, row_tile=None):
    """ConvBlock forward: BatchNorm2d(ReLU(Conv2d(x))) with batch statistics.

    x_nchw: (N, C, H, W) f32, weight: (C, C, K, K).  Returns NCHW (same as the
    PyTorch module).  Running-stats update of BatchNorm2d is not produced
    (forward only).
    """
    N, C, H, W = x_nchw.shape
    Cout, Cin, K, K2 = weight_oihw.shape
    assert Cout == C and Cin == C and K == K2
    pad = 1                                  # nn.Conv2d(..., padding=1)
    Ho = H + 2 * pad - K + 1
    Wo = W + 2 * pad - K + 1
    Hp, Wp = H + 2 * pad, W + 2 * pad

    xp = jnp.pad(x_nchw.astype(jnp.float32),
                 ((0, 0), (0, 0), (pad, pad), (pad, pad)))
    w_flat = weight_oihw.reshape(-1).astype(jnp.float32)      # SMEM scalars
    b = bias.astype(jnp.float32)

    TH = row_tile if row_tile is not None else _pick_row_tile(Ho, Wo, C)
    assert Ho % TH == 0, "row tile must divide the output height"
    R = Ho // TH

    # --- VMEM budget: double-buffered working set, capped to physical --------
    x_img_bytes = C * Hp * Wp * 4
    y_tile_bytes = C * TH * Wo * 4
    st_tile_bytes = C * Wo * 4
    needed = 2 * (x_img_bytes + 2 * y_tile_bytes + 4 * st_tile_bytes) + (2 << 20)
    try:
        cap = int(getattr(pltpu.get_tpu_info(), "vmem_capacity_bytes", 64 << 20))
    except Exception:  # pragma: no cover - portability fallback
        cap = 64 << 20
    vmem_limit = int(min(max(needed, 32 << 20), (cap * 3) // 4))

    smem = pltpu.MemorySpace.SMEM

    # --- pass 1: conv + bias + ReLU + lane-dense partial BN statistics -------
    kern1 = functools.partial(_conv_relu_stats_kernel, TH, Wo, K, C)
    y, s_part, ss_part = pl.pallas_call(
        kern1,
        grid=(N, R),
        in_specs=[
            # Whole padded image per batch element; same block across the R
            # row steps -> fetched once, no halo duplication in HBM.
            pl.BlockSpec((1, C, Hp, Wp), lambda n, r: (n, 0, 0, 0)),
            pl.BlockSpec(memory_space=smem),          # weights (scalars)
            pl.BlockSpec(memory_space=smem),          # bias
        ],
        out_specs=(
            pl.BlockSpec((1, C, TH, Wo), lambda n, r: (n, 0, r, 0)),
            pl.BlockSpec((1, 1, C, Wo), lambda n, r: (n, r, 0, 0)),
            pl.BlockSpec((1, 1, C, Wo), lambda n, r: (n, r, 0, 0)),
        ),
        out_shape=(
            jax.ShapeDtypeStruct((N, C, Ho, Wo), jnp.float32),
            jax.ShapeDtypeStruct((N, R, C, Wo), jnp.float32),
            jax.ShapeDtypeStruct((N, R, C, Wo), jnp.float32),
        ),
        compiler_params=pltpu.CompilerParams(
            dimension_semantics=("parallel", "arbitrary"),
            vmem_limit_bytes=vmem_limit),
    )(xp, w_flat, b)

    # --- tiny per-channel finalize (C values; negligible) ---------------------
    # TODO(synk): E[x^2]-E[x]^2 in f32 can cancel for very large N*H*W; switch
    # to shifted per-tile sums if tight agreement is needed at scale.
    M = N * Ho * Wo
    mean = jnp.sum(s_part, axis=(0, 1, 3)) / M                 # (C,)
    var = jnp.maximum(jnp.sum(ss_part, axis=(0, 1, 3)) / M - mean * mean, 0.0)
    inv = jax.lax.rsqrt(var + EPS)
    scale = gamma.astype(jnp.float32) * inv                    # (C,)
    shift = beta.astype(jnp.float32) - mean * scale            # (C,)

    # --- pass 2: per-channel affine, NCHW in / NCHW out, in-place on y -------
    kern2 = functools.partial(_bn_apply_kernel, C)
    out = pl.pallas_call(
        kern2,
        grid=(N, R),
        in_specs=[
            pl.BlockSpec((1, C, TH, Wo), lambda n, r: (n, 0, r, 0)),
            pl.BlockSpec(memory_space=smem),          # scale (C,)
            pl.BlockSpec(memory_space=smem),          # shift (C,)
        ],
        out_specs=pl.BlockSpec((1, C, TH, Wo), lambda n, r: (n, 0, r, 0)),
        out_shape=jax.ShapeDtypeStruct((N, C, Ho, Wo), jnp.float32),
        input_output_aliases={0: 0},                  # overwrite y in place
        compiler_params=pltpu.CompilerParams(
            dimension_semantics=("parallel", "parallel"),
            vmem_limit_bytes=vmem_limit),
    )(y, scale, shift)
    return out


def _reference(x, weight, bias, gamma, beta):
    """Pure-JAX reference of the PyTorch forward (training-mode BN)."""
    y = jax.lax.conv_general_dilated(
        x, weight, window_strides=(1, 1), padding=((1, 1), (1, 1)),
        dimension_numbers=("NCHW", "OIHW", "NCHW"))
    y = jnp.maximum(y + bias[None, :, None, None], 0.0)
    mean = y.mean(axis=(0, 2, 3), keepdims=True)
    var = jnp.mean(jnp.square(y - mean), axis=(0, 2, 3), keepdims=True)
    return (y - mean) / jnp.sqrt(var + EPS) * gamma[None, :, None, None] \
        + beta[None, :, None, None]


if __name__ == "__main__":
    # small shapes consistent with the module: batch=2, channels=4, spatial=16
    N, C, H, W = 2, 4, 16, 16
    K = 3  # filter_size

    key = jax.random.PRNGKey(0)
    kx, kw, kb = jax.random.split(key, 3)

    x = jax.random.normal(kx, (N, C, H, W), dtype=jnp.float32)
    weight = 0.1 * jax.random.normal(kw, (C, C, K, K), dtype=jnp.float32)
    bias = 0.1 * jax.random.normal(kb, (C,), dtype=jnp.float32)
    gamma = jnp.ones((C,), dtype=jnp.float32)   # BatchNorm weight init
    beta = jnp.zeros((C,), dtype=jnp.float32)   # BatchNorm bias init

    # row_tile=8 -> 2 row tiles per image (grid (2, 2)): exercises the in-VMEM
    # halo windowing and the cross-tile BN-stat reduction even at this size.
    fwd = jax.jit(functools.partial(conv_block_forward, row_tile=8))
    out = jax.block_until_ready(fwd(x, weight, bias, gamma, beta))

    ref = _reference(x, weight, bias, gamma, beta)
    assert out.shape == (N, C, H, W)
    err = float(jnp.max(jnp.abs(out - ref)))
    assert jnp.allclose(out, ref, atol=1e-4, rtol=1e-4), f"max err {err}"

    print("KERNEL_OK")
</pallas_src>

<mosaic_0001>
module attributes {stable_mosaic.version = 11 : i64} {
  func.func @_conv_relu_stats_kernel(%arg0: i32, %arg1: i32, %arg2: memref<1x4x18x18xf32, #tpu.memory_space<vmem>>, %arg3: memref<144xf32, #tpu.memory_space<smem>>, %arg4: memref<4xf32, #tpu.memory_space<smem>>, %arg5: memref<1x4x8x16xf32, #tpu.memory_space<vmem>>, %arg6: memref<1x1x4x16xf32, #tpu.memory_space<vmem>>, %arg7: memref<1x1x4x16xf32, #tpu.memory_space<vmem>>) attributes {dimension_semantics = [#tpu.dimension_semantics<parallel>, #tpu.dimension_semantics<arbitrary>], iteration_bounds = array<i64: 2, 2>, scalar_prefetch = 0 : i64, scratch_operands = 0 : i64, tpu.core_type = #tpu.core_type<tc>, window_params = [{transform_indices = @transform_0, window_bounds = array<i64: 1, 4, 18, 18>}, {transform_indices = @transform_1, window_bounds = array<i64: 144>}, {transform_indices = @transform_2, window_bounds = array<i64: 4>}, {transform_indices = @transform_3, window_bounds = array<i64: 1, 4, 8, 16>}, {transform_indices = @transform_4, window_bounds = array<i64: 1, 1, 4, 16>}, {transform_indices = @transform_5, window_bounds = array<i64: 1, 1, 4, 16>}]} {
    %c8_i32 = arith.constant 8 : i32
    %0 = arith.muli %arg1, %c8_i32 : i32
    %1 = tpu.assume_multiple %0, 8 : i32
    %c0 = arith.constant 0 : index
    %c0_0 = arith.constant 0 : index
    %2 = arith.index_cast %1 : i32 to index
    %c0_1 = arith.constant 0 : index
    %3 = vector.load %arg2[%c0, %c0_0, %2, %c0_1] : memref<1x4x18x18xf32, #tpu.memory_space<vmem>>, vector<1x1x10x18xf32>
    %4 = vector.shape_cast %3 : vector<1x1x10x18xf32> to vector<10x18xf32>
    %5 = vector.extract_strided_slice %4 {offsets = [0, 0], sizes = [8, 18], strides = [1, 1]} : vector<10x18xf32> to vector<8x18xf32>
    %6 = vector.extract_strided_slice %5 {offsets = [0, 0], sizes = [8, 16], strides = [1, 1]} : vector<8x18xf32> to vector<8x16xf32>
    %c0_2 = arith.constant 0 : index
    %7 = memref.load %arg3[%c0_2] : memref<144xf32, #tpu.memory_space<smem>>
    %8 = vector.broadcast %7 : f32 to vector<8x16xf32>
    %9 = arith.mulf %6, %8 : vector<8x16xf32>
    %c36 = arith.constant 36 : index
    %10 = memref.load %arg3[%c36] : memref<144xf32, #tpu.memory_space<smem>>
    %11 = vector.broadcast %10 : f32 to vector<8x16xf32>
    %12 = arith.mulf %6, %11 : vector<8x16xf32>
    %c72 = arith.constant 72 : index
    %13 = memref.load %arg3[%c72] : memref<144xf32, #tpu.memory_space<smem>>
    %14 = vector.broadcast %13 : f32 to vector<8x16xf32>
    %15 = arith.mulf %6, %14 : vector<8x16xf32>
    %c108 = arith.constant 108 : index
    %16 = memref.load %arg3[%c108] : memref<144xf32, #tpu.memory_space<smem>>
    %17 = vector.broadcast %16 : f32 to vector<8x16xf32>
    %18 = arith.mulf %6, %17 : vector<8x16xf32>
    %19 = vector.extract_strided_slice %5 {offsets = [0, 1], sizes = [8, 16], strides = [1, 1]} : vector<8x18xf32> to vector<8x16xf32>
    %c1 = arith.constant 1 : index
    %20 = memref.load %arg3[%c1] : memref<144xf32, #tpu.memory_space<smem>>
    %21 = vector.broadcast %20 : f32 to vector<8x16xf32>
    %22 = arith.mulf %19, %21 : vector<8x16xf32>
    %23 = arith.addf %9, %22 : vector<8x16xf32>
    %c37 = arith.constant 37 : index
    %24 = memref.load %arg3[%c37] : memref<144xf32, #tpu.memory_space<smem>>
    %25 = vector.broadcast %24 : f32 to vector<8x16xf32>
    %26 = arith.mulf %19, %25 : vector<8x16xf32>
    %27 = arith.addf %12, %26 : vector<8x16xf32>
    %c73 = arith.constant 73 : index
    %28 = memref.load %arg3[%c73] : memref<144xf32, #tpu.memory_space<smem>>
    %29 = vector.broadcast %28 : f32 to vector<8x16xf32>
    %30 = arith.mulf %19, %29 : vector<8x16xf32>
    %31 = arith.addf %15, %30 : vector<8x16xf32>
    %c109 = arith.constant 109 : index
    %32 = memref.load %arg3[%c109] : memref<144xf32, #tpu.memory_space<smem>>
    %33 = vector.broadcast %32 : f32 to vector<8x16xf32>
    %34 = arith.mulf %19, %33 : vector<8x16xf32>
    %35 = arith.addf %18, %34 : vector<8x16xf32>
    %36 = vector.extract_strided_slice %5 {offsets = [0, 2], sizes = [8, 16], strides = [1, 1]} : vector<8x18xf32> to vector<8x16xf32>
    %c2 = arith.constant 2 : index
    %37 = memref.load %arg3[%c2] : memref<144xf32, #tpu.memory_space<smem>>
    %38 = vector.broadcast %37 : f32 to vector<8x16xf32>
    %39 = arith.mulf %36, %38 : vector<8x16xf32>
    %40 = arith.addf %23, %39 : vector<8x16xf32>
    %c38 = arith.constant 38 : index
    %41 = memref.load %arg3[%c38] : memref<144xf32, #tpu.memory_space<smem>>
    %42 = vector.broadcast %41 : f32 to vector<8x16xf32>
    %43 = arith.mulf %36, %42 : vector<8x16xf32>
    %44 = arith.addf %27, %43 : vector<8x16xf32>
    %c74 = arith.constant 74 : index
    %45 = memref.load %arg3[%c74] : memref<144xf32, #tpu.memory_space<smem>>
    %46 = vector.broadcast %45 : f32 to vector<8x16xf32>
    %47 = arith.mulf %36, %46 : vector<8x16xf32>
    %48 = arith.addf %31, %47 : vector<8x16xf32>
    %c110 = arith.constant 110 : index
    %49 = memref.load %arg3[%c110] : memref<144xf32, #tpu.memory_space<smem>>
    %50 = vector.broadcast %49 : f32 to vector<8x16xf32>
    %51 = arith.mulf %36, %50 : vector<8x16xf32>
    %52 = arith.addf %35, %51 : vector<8x16xf32>
    %53 = vector.extract_strided_slice %4 {offsets = [1, 0], sizes = [8, 18], strides = [1, 1]} : vector<10x18xf32> to vector<8x18xf32>
    %54 = vector.extract_strided_slice %53 {offsets = [0, 0], sizes = [8, 16], strides = [1, 1]} : vector<8x18xf32> to vector<8x16xf32>
    %c3 = arith.constant 3 : index
    %55 = memref.load %arg3[%c3] : memref<144xf32, #tpu.memory_space<smem>>
    %56 = vector.broadcast %55 : f32 to vector<8x16xf32>
    %57 = arith.mulf %54, %56 : vector<8x16xf32>
    %58 = arith.addf %40, %57 : vector<8x16xf32>
    %c39 = arith.constant 39 : index
    %59 = memref.load %arg3[%c39] : memref<144xf32, #tpu.memory_space<smem>>
    %60 = vector.broadcast %59 : f32 to vector<8x16xf32>
    %61 = arith.mulf %54, %60 : vector<8x16xf32>
    %62 = arith.addf %44, %61 : vector<8x16xf32>
    %c75 = arith.constant 75 : index
    %63 = memref.load %arg3[%c75] : memref<144xf32, #tpu.memory_space<smem>>
    %64 = vector.broadcast %63 : f32 to vector<8x16xf32>
    %65 = arith.mulf %54, %64 : vector<8x16xf32>
    %66 = arith.addf %48, %65 : vector<8x16xf32>
    %c111 = arith.constant 111 : index
    %67 = memref.load %arg3[%c111] : memref<144xf32, #tpu.memory_space<smem>>
    %68 = vector.broadcast %67 : f32 to vector<8x16xf32>
    %69 = arith.mulf %54, %68 : vector<8x16xf32>
    %70 = arith.addf %52, %69 : vector<8x16xf32>
    %71 = vector.extract_strided_slice %53 {offsets = [0, 1], sizes = [8, 16], strides = [1, 1]} : vector<8x18xf32> to vector<8x16xf32>
    %c4 = arith.constant 4 : index
    %72 = memref.load %arg3[%c4] : memref<144xf32, #tpu.memory_space<smem>>
    %73 = vector.broadcast %72 : f32 to vector<8x16xf32>
    %74 = arith.mulf %71, %73 : vector<8x16xf32>
    %75 = arith.addf %58, %74 : vector<8x16xf32>
    %c40 = arith.constant 40 : index
    %76 = memref.load %arg3[%c40] : memref<144xf32, #tpu.memory_space<smem>>
    %77 = vector.broadcast %76 : f32 to vector<8x16xf32>
    %78 = arith.mulf %71, %77 : vector<8x16xf32>
    %79 = arith.addf %62, %78 : vector<8x16xf32>
    %c76 = arith.constant 76 : index
    %80 = memref.load %arg3[%c76] : memref<144xf32, #tpu.memory_space<smem>>
    %81 = vector.broadcast %80 : f32 to vector<8x16xf32>
    %82 = arith.mulf %71, %81 : vector<8x16xf32>
    %83 = arith.addf %66, %82 : vector<8x16xf32>
    %c112 = arith.constant 112 : index
    %84 = memref.load %arg3[%c112] : memref<144xf32, #tpu.memory_space<smem>>
    %85 = vector.broadcast %84 : f32 to vector<8x16xf32>
    %86 = arith.mulf %71, %85 : vector<8x16xf32>
    %87 = arith.addf %70, %86 : vector<8x16xf32>
    %88 = vector.extract_strided_slice %53 {offsets = [0, 2], sizes = [8, 16], strides = [1, 1]} : vector<8x18xf32> to vector<8x16xf32>
    %c5 = arith.constant 5 : index
    %89 = memref.load %arg3[%c5] : memref<144xf32, #tpu.memory_space<smem>>
    %90 = vector.broadcast %89 : f32 to vector<8x16xf32>
    %91 = arith.mulf %88, %90 : vector<8x16xf32>
    %92 = arith.addf %75, %91 : vector<8x16xf32>
    %c41 = arith.constant 41 : index
    %93 = memref.load %arg3[%c41] : memref<144xf32, #tpu.memory_space<smem>>
    %94 = vector.broadcast %93 : f32 to vector<8x16xf32>
    %95 = arith.mulf %88, %94 : vector<8x16xf32>
    %96 = arith.addf %79, %95 : vector<8x16xf32>
    %c77 = arith.constant 77 : index
    %97 = memref.load %arg3[%c77] : memref<144xf32, #tpu.memory_space<smem>>
    %98 = vector.broadcast %97 : f32 to vector<8x16xf32>
    %99 = arith.mulf %88, %98 : vector<8x16xf32>
    %100 = arith.addf %83, %99 : vector<8x16xf32>
    %c113 = arith.constant 113 : index
    %101 = memref.load %arg3[%c113] : memref<144xf32, #tpu.memory_space<smem>>
    %102 = vector.broadcast %101 : f32 to vector<8x16xf32>
    %103 = arith.mulf %88, %102 : vector<8x16xf32>
    %104 = arith.addf %87, %103 : vector<8x16xf32>
    %105 = vector.extract_strided_slice %4 {offsets = [2, 0], sizes = [8, 18], strides = [1, 1]} : vector<10x18xf32> to vector<8x18xf32>
    %106 = vector.extract_strided_slice %105 {offsets = [0, 0], sizes = [8, 16], strides = [1, 1]} : vector<8x18xf32> to vector<8x16xf32>
    %c6 = arith.constant 6 : index
    %107 = memref.load %arg3[%c6] : memref<144xf32, #tpu.memory_space<smem>>
    %108 = vector.broadcast %107 : f32 to vector<8x16xf32>
    %109 = arith.mulf %106, %108 : vector<8x16xf32>
    %110 = arith.addf %92, %109 : vector<8x16xf32>
    %c42 = arith.constant 42 : index
    %111 = memref.load %arg3[%c42] : memref<144xf32, #tpu.memory_space<smem>>
    %112 = vector.broadcast %111 : f32 to vector<8x16xf32>
    %113 = arith.mulf %106, %112 : vector<8x16xf32>
    %114 = arith.addf %96, %113 : vector<8x16xf32>
    %c78 = arith.constant 78 : index
    %115 = memref.load %arg3[%c78] : memref<144xf32, #tpu.memory_space<smem>>
    %116 = vector.broadcast %115 : f32 to vector<8x16xf32>
    %117 = arith.mulf %106, %116 : vector<8x16xf32>
    %118 = arith.addf %100, %117 : vector<8x16xf32>
    %c114 = arith.constant 114 : index
    %119 = memref.load %arg3[%c114] : memref<144xf32, #tpu.memory_space<smem>>
    %120 = vector.broadcast %119 : f32 to vector<8x16xf32>
    %121 = arith.mulf %106, %120 : vector<8x16xf32>
    %122 = arith.addf %104, %121 : vector<8x16xf32>
    %123 = vector.extract_strided_slice %105 {offsets = [0, 1], sizes = [8, 16], strides = [1, 1]} : vector<8x18xf32> to vector<8x16xf32>
    %c7 = arith.constant 7 : index
    %124 = memref.load %arg3[%c7] : memref<144xf32, #tpu.memory_space<smem>>
    %125 = vector.broadcast %124 : f32 to vector<8x16xf32>
    %126 = arith.mulf %123, %125 : vector<8x16xf32>
    %127 = arith.addf %110, %126 : vector<8x16xf32>
    %c43 = arith.constant 43 : index
    %128 = memref.load %arg3[%c43] : memref<144xf32, #tpu.memory_space<smem>>
    %129 = vector.broadcast %128 : f32 to vector<8x16xf32>
    %130 = arith.mulf %123, %129 : vector<8x16xf32>
    %131 = arith.addf %114, %130 : vector<8x16xf32>
    %c79 = arith.constant 79 : index
    %132 = memref.load %arg3[%c79] : memref<144xf32, #tpu.memory_space<smem>>
    %133 = vector.broadcast %132 : f32 to vector<8x16xf32>
    %134 = arith.mulf %123, %133 : vector<8x16xf32>
    %135 = arith.addf %118, %134 : vector<8x16xf32>
    %c115 = arith.constant 115 : index
    %136 = memref.load %arg3[%c115] : memref<144xf32, #tpu.memory_space<smem>>
    %137 = vector.broadcast %136 : f32 to vector<8x16xf32>
    %138 = arith.mulf %123, %137 : vector<8x16xf32>
    %139 = arith.addf %122, %138 : vector<8x16xf32>
    %140 = vector.extract_strided_slice %105 {offsets = [0, 2], sizes = [8, 16], strides = [1, 1]} : vector<8x18xf32> to vector<8x16xf32>
    %c8 = arith.constant 8 : index
    %141 = memref.load %arg3[%c8] : memref<144xf32, #tpu.memory_space<smem>>
    %142 = vector.broadcast %141 : f32 to vector<8x16xf32>
    %143 = arith.mulf %140, %142 : vector<8x16xf32>
    %144 = arith.addf %127, %143 : vector<8x16xf32>
    %c44 = arith.constant 44 : index
    %145 = memref.load %arg3[%c44] : memref<144xf32, #tpu.memory_space<smem>>
    %146 = vector.broadcast %145 : f32 to vector<8x16xf32>
    %147 = arith.mulf %140, %146 : vector<8x16xf32>
    %148 = arith.addf %131, %147 : vector<8x16xf32>
    %c80 = arith.constant 80 : index
    %149 = memref.load %arg3[%c80] : memref<144xf32, #tpu.memory_space<smem>>
    %150 = vector.broadcast %149 : f32 to vector<8x16xf32>
    %151 = arith.mulf %140, %150 : vector<8x16xf32>
    %152 = arith.addf %135, %151 : vector<8x16xf32>
    %c116 = arith.constant 116 : index
    %153 = memref.load %arg3[%c116] : memref<144xf32, #tpu.memory_space<smem>>
    %154 = vector.broadcast %153 : f32 to vector<8x16xf32>
    %155 = arith.mulf %140, %154 : vector<8x16xf32>
    %156 = arith.addf %139, %155 : vector<8x16xf32>
    %c0_3 = arith.constant 0 : index
    %c1_4 = arith.constant 1 : index
    %157 = arith.index_cast %1 : i32 to index
    %c0_5 = arith.constant 0 : index
    %158 = vector.load %arg2[%c0_3, %c1_4, %157, %c0_5] : memref<1x4x18x18xf32, #tpu.memory_space<vmem>>, vector<1x1x10x18xf32>
    %159 = vector.shape_cast %158 : vector<1x1x10x18xf32> to vector<10x18xf32>
    %160 = vector.extract_strided_slice %159 {offsets = [0, 0], sizes = [8, 18], strides = [1, 1]} : vector<10x18xf32> to vector<8x18xf32>
    %161 = vector.extract_strided_slice %160 {offsets = [0, 0], sizes = [8, 16], strides = [1, 1]} : vector<8x18xf32> to vector<8x16xf32>
    %c9 = arith.constant 9 : index
    %162 = memref.load %arg3[%c9] : memref<144xf32, #tpu.memory_space<smem>>
    %163 = vector.broadcast %162 : f32 to vector<8x16xf32>
    %164 = arith.mulf %161, %163 : vector<8x16xf32>
    %165 = arith.addf %144, %164 : vector<8x16xf32>
    %c45 = arith.constant 45 : index
    %166 = memref.load %arg3[%c45] : memref<144xf32, #tpu.memory_space<smem>>
    %167 = vector.broadcast %166 : f32 to vector<8x16xf32>
    %168 = arith.mulf %161, %167 : vector<8x16xf32>
    %169 = arith.addf %148, %168 : vector<8x16xf32>
    %c81 = arith.constant 81 : index
    %170 = memref.load %arg3[%c81] : memref<144xf32, #tpu.memory_space<smem>>
    %171 = vector.broadcast %170 : f32 to vector<8x16xf32>
    %172 = arith.mulf %161, %171 : vector<8x16xf32>
    %173 = arith.addf %152, %172 : vector<8x16xf32>
    %c117 = arith.constant 117 : index
    %174 = memref.load %arg3[%c117] : memref<144xf32, #tpu.memory_space<smem>>
    %175 = vector.broadcast %174 : f32 to vector<8x16xf32>
    %176 = arith.mulf %161, %175 : vector<8x16xf32>
    %177 = arith.addf %156, %176 : vector<8x16xf32>
    %178 = vector.extract_strided_slice %160 {offsets = [0, 1], sizes = [8, 16], strides = [1, 1]} : vector<8x18xf32> to vector<8x16xf32>
    %c10 = arith.constant 10 : index
    %179 = memref.load %arg3[%c10] : memref<144xf32, #tpu.memory_space<smem>>
    %180 = vector.broadcast %179 : f32 to vector<8x16xf32>
    %181 = arith.mulf %178, %180 : vector<8x16xf32>
    %182 = arith.addf %165, %181 : vector<8x16xf32>
    %c46 = arith.constant 46 : index
    %183 = memref.load %arg3[%c46] : memref<144xf32, #tpu.memory_space<smem>>
    %184 = vector.broadcast %183 : f32 to vector<8x16xf32>
    %185 = arith.mulf %178, %184 : vector<8x16xf32>
    %186 = arith.addf %169, %185 : vector<8x16xf32>
    %c82 = arith.constant 82 : index
    %187 = memref.load %arg3[%c82] : memref<144xf32, #tpu.memory_space<smem>>
    %188 = vector.broadcast %187 : f32 to vector<8x16xf32>
    %189 = arith.mulf %178, %188 : vector<8x16xf32>
    %190 = arith.addf %173, %189 : vector<8x16xf32>
    %c118 = arith.constant 118 : index
    %191 = memref.load %arg3[%c118] : memref<144xf32, #tpu.memory_space<smem>>
    %192 = vector.broadcast %191 : f32 to vector<8x16xf32>
    %193 = arith.mulf %178, %192 : vector<8x16xf32>
    %194 = arith.addf %177, %193 : vector<8x16xf32>
    %195 = vector.extract_strided_slice %160 {offsets = [0, 2], sizes = [8, 16], strides = [1, 1]} : vector<8x18xf32> to vector<8x16xf32>
    %c11 = arith.constant 11 : index
    %196 = memref.load %arg3[%c11] : memref<144xf32, #tpu.memory_space<smem>>
    %197 = vector.broadcast %196 : f32 to vector<8x16xf32>
    %198 = arith.mulf %195, %197 : vector<8x16xf32>
    %199 = arith.addf %182, %198 : vector<8x16xf32>
    %c47 = arith.constant 47 : index
    %200 = memref.load %arg3[%c47] : memref<144xf32, #tpu.memory_space<smem>>
    %201 = vector.broadcast %200 : f32 to vector<8x16xf32>
    %202 = arith.mulf %195, %201 : vector<8x16xf32>
    %203 = arith.addf %186, %202 : vector<8x16xf32>
    %c83 = arith.constant 83 : index
    %204 = memref.load %arg3[%c83] : memref<144xf32, #tpu.memory_space<smem>>
    %205 = vector.broadcast %204 : f32 to vector<8x16xf32>
    %206 = arith.mulf %195, %205 : vector<8x16xf32>
    %207 = arith.addf %190, %206 : vector<8x16xf32>
    %c119 = arith.constant 119 : index
    %208 = memref.load %arg3[%c119] : memref<144xf32, #tpu.memory_space<smem>>
    %209 = vector.broadcast %208 : f32 to vector<8x16xf32>
    %210 = arith.mulf %195, %209 : vector<8x16xf32>
    %211 = arith.addf %194, %210 : vector<8x16xf32>
    %212 = vector.extract_strided_slice %159 {offsets = [1, 0], sizes = [8, 18], strides = [1, 1]} : vector<10x18xf32> to vector<8x18xf32>
    %213 = vector.extract_strided_slice %212 {offsets = [0, 0], sizes = [8, 16], strides = [1, 1]} : vector<8x18xf32> to vector<8x16xf32>
    %c12 = arith.constant 12 : index
    %214 = memref.load %arg3[%c12] : memref<144xf32, #tpu.memory_space<smem>>
    %215 = vector.broadcast %214 : f32 to vector<8x16xf32>
    %216 = arith.mulf %213, %215 : vector<8x16xf32>
    %217 = arith.addf %199, %216 : vector<8x16xf32>
    %c48 = arith.constant 48 : index
    %218 = memref.load %arg3[%c48] : memref<144xf32, #tpu.memory_space<smem>>
    %219 = vector.broadcast %218 : f32 to vector<8x16xf32>
    %220 = arith.mulf %213, %219 : vector<8x16xf32>
    %221 = arith.addf %203, %220 : vector<8x16xf32>
    %c84 = arith.constant 84 : index
    %222 = memref.load %arg3[%c84] : memref<144xf32, #tpu.memory_space<smem>>
    %223 = vector.broadcast %222 : f32 to vector<8x16xf32>
    %224 = arith.mulf %213, %223 : vector<8x16xf32>
    %225 = arith.addf %207, %224 : vector<8x16xf32>
    %c120 = arith.constant 120 : index
    %226 = memref.load %arg3[%c120] : memref<144xf32, #tpu.memory_space<smem>>
    %227 = vector.broadcast %226 : f32 to vector<8x16xf32>
    %228 = arith.mulf %213, %227 : vector<8x16xf32>
    %229 = arith.addf %211, %228 : vector<8x16xf32>
    %230 = vector.extract_strided_slice %212 {offsets = [0, 1], sizes = [8, 16], strides = [1, 1]} : vector<8x18xf32> to vector<8x16xf32>
    %c13 = arith.constant 13 : index
    %231 = memref.load %arg3[%c13] : memref<144xf32, #tpu.memory_space<smem>>
    %232 = vector.broadcast %231 : f32 to vector<8x16xf32>
    %233 = arith.mulf %230, %232 : vector<8x16xf32>
    %234 = arith.addf %217, %233 : vector<8x16xf32>
    %c49 = arith.constant 49 : index
    %235 = memref.load %arg3[%c49] : memref<144xf32, #tpu.memory_space<smem>>
    %236 = vector.broadcast %235 : f32 to vector<8x16xf32>
    %237 = arith.mulf %230, %236 : vector<8x16xf32>
    %238 = arith.addf %221, %237 : vector<8x16xf32>
    %c85 = arith.constant 85 : index
    %239 = memref.load %arg3[%c85] : memref<144xf32, #tpu.memory_space<smem>>
    %240 = vector.broadcast %239 : f32 to vector<8x16xf32>
    %241 = arith.mulf %230, %240 : vector<8x16xf32>
    %242 = arith.addf %225, %241 : vector<8x16xf32>
    %c121 = arith.constant 121 : index
    %243 = memref.load %arg3[%c121] : memref<144xf32, #tpu.memory_space<smem>>
    %244 = vector.broadcast %243 : f32 to vector<8x16xf32>
    %245 = arith.mulf %230, %244 : vector<8x16xf32>
    %246 = arith.addf %229, %245 : vector<8x16xf32>
    %247 = vector.extract_strided_slice %212 {offsets = [0, 2], sizes = [8, 16], strides = [1, 1]} : vector<8x18xf32> to vector<8x16xf32>
    %c14 = arith.constant 14 : index
    %248 = memref.load %arg3[%c14] : memref<144xf32, #tpu.memory_space<smem>>
    %249 = vector.broadcast %248 : f32 to vector<8x16xf32>
    %250 = arith.mulf %247, %249 : vector<8x16xf32>
    %251 = arith.addf %234, %250 : vector<8x16xf32>
    %c50 = arith.constant 50 : index
    %252 = memref.load %arg3[%c50] : memref<144xf32, #tpu.memory_space<smem>>
    %253 = vector.broadcast %252 : f32 to vector<8x16xf32>
    %254 = arith.mulf %247, %253 : vector<8x16xf32>
    %255 = arith.addf %238, %254 : vector<8x16xf32>
    %c86 = arith.constant 86 : index
    %256 = memref.load %arg3[%c86] : memref<144xf32, #tpu.memory_space<smem>>
    %257 = vector.broadcast %256 : f32 to vector<8x16xf32>
    %258 = arith.mulf %247, %257 : vector<8x16xf32>
    %259 = arith.addf %242, %258 : vector<8x16xf32>
    %c122 = arith.constant 122 : index
    %260 = memref.load %arg3[%c122] : memref<144xf32, #tpu.memory_space<smem>>
    %261 = vector.broadcast %260 : f32 to vector<8x16xf32>
    %262 = arith.mulf %247, %261 : vector<8x16xf32>
    %263 = arith.addf %246, %262 : vector<8x16xf32>
    %264 = vector.extract_strided_slice %159 {offsets = [2, 0], sizes = [8, 18], strides = [1, 1]} : vector<10x18xf32> to vector<8x18xf32>
    %265 = vector.extract_strided_slice %264 {offsets = [0, 0], sizes = [8, 16], strides = [1, 1]} : vector<8x18xf32> to vector<8x16xf32>
    %c15 = arith.constant 15 : index
    %266 = memref.load %arg3[%c15] : memref<144xf32, #tpu.memory_space<smem>>
    %267 = vector.broadcast %266 : f32 to vector<8x16xf32>
    %268 = arith.mulf %265, %267 : vector<8x16xf32>
    %269 = arith.addf %251, %268 : vector<8x16xf32>
    %c51 = arith.constant 51 : index
    %270 = memref.load %arg3[%c51] : memref<144xf32, #tpu.memory_space<smem>>
    %271 = vector.broadcast %270 : f32 to vector<8x16xf32>
    %272 = arith.mulf %265, %271 : vector<8x16xf32>
    %273 = arith.addf %255, %272 : vector<8x16xf32>
    %c87 = arith.constant 87 : index
    %274 = memref.load %arg3[%c87] : memref<144xf32, #tpu.memory_space<smem>>
    %275 = vector.broadcast %274 : f32 to vector<8x16xf32>
    %276 = arith.mulf %265, %275 : vector<8x16xf32>
    %277 = arith.addf %259, %276 : vector<8x16xf32>
    %c123 = arith.constant 123 : index
    %278 = memref.load %arg3[%c123] : memref<144xf32, #tpu.memory_space<smem>>
    %279 = vector.broadcast %278 : f32 to vector<8x16xf32>
    %280 = arith.mulf %265, %279 : vector<8x16xf32>
    %281 = arith.addf %263, %280 : vector<8x16xf32>
    %282 = vector.extract_strided_slice %264 {offsets = [0, 1], sizes = [8, 16], strides = [1, 1]} : vector<8x18xf32> to vector<8x16xf32>
    %c16 = arith.constant 16 : index
    %283 = memref.load %arg3[%c16] : memref<144xf32, #tpu.memory_space<smem>>
    %284 = vector.broadcast %283 : f32 to vector<8x16xf32>
    %285 = arith.mulf %282, %284 : vector<8x16xf32>
    %286 = arith.addf %269, %285 : vector<8x16xf32>
    %c52 = arith.constant 52 : index
    %287 = memref.load %arg3[%c52] : memref<144xf32, #tpu.memory_space<smem>>
    %288 = vector.broadcast %287 : f32 to vector<8x16xf32>
    %289 = arith.mulf %282, %288 : vector<8x16xf32>
    %290 = arith.addf %273, %289 : vector<8x16xf32>
    %c88 = arith.constant 88 : index
    %291 = memref.load %arg3[%c88] : memref<144xf32, #tpu.memory_space<smem>>
    %292 = vector.broadcast %291 : f32 to vector<8x16xf32>
    %293 = arith.mulf %282, %292 : vector<8x16xf32>
    %294 = arith.addf %277, %293 : vector<8x16xf32>
    %c124 = arith.constant 124 : index
    %295 = memref.load %arg3[%c124] : memref<144xf32, #tpu.memory_space<smem>>
    %296 = vector.broadcast %295 : f32 to vector<8x16xf32>
    %297 = arith.mulf %282, %296 : vector<8x16xf32>
    %298 = arith.addf %281, %297 : vector<8x16xf32>
    %299 = vector.extract_strided_slice %264 {offsets = [0, 2], sizes = [8, 16], strides = [1, 1]} : vector<8x18xf32> to vector<8x16xf32>
    %c17 = arith.constant 17 : index
    %300 = memref.load %arg3[%c17] : memref<144xf32, #tpu.memory_space<smem>>
    %301 = vector.broadcast %300 : f32 to vector<8x16xf32>
    %302 = arith.mulf %299, %301 : vector<8x16xf32>
    %303 = arith.addf %286, %302 : vector<8x16xf32>
    %c53 = arith.constant 53 : index
    %304 = memref.load %arg3[%c53] : memref<144xf32, #tpu.memory_space<smem>>
    %305 = vector.broadcast %304 : f32 to vector<8x16xf32>
    %306 = arith.mulf %299, %305 : vector<8x16xf32>
    %307 = arith.addf %290, %306 : vector<8x16xf32>
    %c89 = arith.constant 89 : index
    %308 = memref.load %arg3[%c89] : memref<144xf32, #tpu.memory_space<smem>>
    %309 = vector.broadcast %308 : f32 to vector<8x16xf32>
    %310 = arith.mulf %299, %309 : vector<8x16xf32>
    %311 = arith.addf %294, %310 : vector<8x16xf32>
    %c125 = arith.constant 125 : index
    %312 = memref.load %arg3[%c125] : memref<144xf32, #tpu.memory_space<smem>>
    %313 = vector.broadcast %312 : f32 to vector<8x16xf32>
    %314 = arith.mulf %299, %313 : vector<8x16xf32>
    %315 = arith.addf %298, %314 : vector<8x16xf32>
    %c0_6 = arith.constant 0 : index
    %c2_7 = arith.constant 2 : index
    %316 = arith.index_cast %1 : i32 to index
    %c0_8 = arith.constant 0 : index
    %317 = vector.load %arg2[%c0_6, %c2_7, %316, %c0_8] : memref<1x4x18x18xf32, #tpu.memory_space<vmem>>, vector<1x1x10x18xf32>
    %318 = vector.shape_cast %317 : vector<1x1x10x18xf32> to vector<10x18xf32>
    %319 = vector.extract_strided_slice %318 {offsets = [0, 0], sizes = [8, 18], strides = [1, 1]} : vector<10x18xf32> to vector<8x18xf32>
    %320 = vector.extract_strided_slice %319 {offsets = [0, 0], sizes = [8, 16], strides = [1, 1]} : vector<8x18xf32> to vector<8x16xf32>
    %c18 = arith.constant 18 : index
    %321 = memref.load %arg3[%c18] : memref<144xf32, #tpu.memory_space<smem>>
    %322 = vector.broadcast %321 : f32 to vector<8x16xf32>
    %323 = arith.mulf %320, %322 : vector<8x16xf32>
    %324 = arith.addf %303, %323 : vector<8x16xf32>
    %c54 = arith.constant 54 : index
    %325 = memref.load %arg3[%c54] : memref<144xf32, #tpu.memory_space<smem>>
    %326 = vector.broadcast %325 : f32 to vector<8x16xf32>
    %327 = arith.mulf %320, %326 : vector<8x16xf32>
    %328 = arith.addf %307, %327 : vector<8x16xf32>
    %c90 = arith.constant 90 : index
    %329 = memref.load %arg3[%c90] : memref<144xf32, #tpu.memory_space<smem>>
    %330 = vector.broadcast %329 : f32 to vector<8x16xf32>
    %331 = arith.mulf %320, %330 : vector<8x16xf32>
    %332 = arith.addf %311, %331 : vector<8x16xf32>
    %c126 = arith.constant 126 : index
    %333 = memref.load %arg3[%c126] : memref<144xf32, #tpu.memory_space<smem>>
    %334 = vector.broadcast %333 : f32 to vector<8x16xf32>
    %335 = arith.mulf %320, %334 : vector<8x16xf32>
    %336 = arith.addf %315, %335 : vector<8x16xf32>
    %337 = vector.extract_strided_slice %319 {offsets = [0, 1], sizes = [8, 16], strides = [1, 1]} : vector<8x18xf32> to vector<8x16xf32>
    %c19 = arith.constant 19 : index
    %338 = memref.load %arg3[%c19] : memref<144xf32, #tpu.memory_space<smem>>
    %339 = vector.broadcast %338 : f32 to vector<8x16xf32>
    %340 = arith.mulf %337, %339 : vector<8x16xf32>
    %341 = arith.addf %324, %340 : vector<8x16xf32>
    %c55 = arith.constant 55 : index
    %342 = memref.load %arg3[%c55] : memref<144xf32, #tpu.memory_space<smem>>
    %343 = vector.broadcast %342 : f32 to vector<8x16xf32>
    %344 = arith.mulf %337, %343 : vector<8x16xf32>
    %345 = arith.addf %328, %344 : vector<8x16xf32>
    %c91 = arith.constant 91 : index
    %346 = memref.load %arg3[%c91] : memref<144xf32, #tpu.memory_space<smem>>
    %347 = vector.broadcast %346 : f32 to vector<8x16xf32>
    %348 = arith.mulf %337, %347 : vector<8x16xf32>
    %349 = arith.addf %332, %348 : vector<8x16xf32>
    %c127 = arith.constant 127 : index
    %350 = memref.load %arg3[%c127] : memref<144xf32, #tpu.memory_space<smem>>
    %351 = vector.broadcast %350 : f32 to vector<8x16xf32>
    %352 = arith.mulf %337, %351 : vector<8x16xf32>
    %353 = arith.addf %336, %352 : vector<8x16xf32>
    %354 = vector.extract_strided_slice %319 {offsets = [0, 2], sizes = [8, 16], strides = [1, 1]} : vector<8x18xf32> to vector<8x16xf32>
    %c20 = arith.constant 20 : index
    %355 = memref.load %arg3[%c20] : memref<144xf32, #tpu.memory_space<smem>>
    %356 = vector.broadcast %355 : f32 to vector<8x16xf32>
    %357 = arith.mulf %354, %356 : vector<8x16xf32>
    %358 = arith.addf %341, %357 : vector<8x16xf32>
    %c56 = arith.constant 56 : index
    %359 = memref.load %arg3[%c56] : memref<144xf32, #tpu.memory_space<smem>>
    %360 = vector.broadcast %359 : f32 to vector<8x16xf32>
    %361 = arith.mulf %354, %360 : vector<8x16xf32>
    %362 = arith.addf %345, %361 : vector<8x16xf32>
    %c92 = arith.constant 92 : index
    %363 = memref.load %arg3[%c92] : memref<144xf32, #tpu.memory_space<smem>>
    %364 = vector.broadcast %363 : f32 to vector<8x16xf32>
    %365 = arith.mulf %354, %364 : vector<8x16xf32>
    %366 = arith.addf %349, %365 : vector<8x16xf32>
    %c128 = arith.constant 128 : index
    %367 = memref.load %arg3[%c128] : memref<144xf32, #tpu.memory_space<smem>>
    %368 = vector.broadcast %367 : f32 to vector<8x16xf32>
    %369 = arith.mulf %354, %368 : vector<8x16xf32>
    %370 = arith.addf %353, %369 : vector<8x16xf32>
    %371 = vector.extract_strided_slice %318 {offsets = [1, 0], sizes = [8, 18], strides = [1, 1]} : vector<10x18xf32> to vector<8x18xf32>
    %372 = vector.extract_strided_slice %371 {offsets = [0, 0], sizes = [8, 16], strides = [1, 1]} : vector<8x18xf32> to vector<8x16xf32>
    %c21 = arith.constant 21 : index
    %373 = memref.load %arg3[%c21] : memref<144xf32, #tpu.memory_space<smem>>
    %374 = vector.broadcast %373 : f32 to vector<8x16xf32>
    %375 = arith.mulf %372, %374 : vector<8x16xf32>
    %376 = arith.addf %358, %375 : vector<8x16xf32>
    %c57 = arith.constant 57 : index
    %377 = memref.load %arg3[%c57] : memref<144xf32, #tpu.memory_space<smem>>
    %378 = vector.broadcast %377 : f32 to vector<8x16xf32>
    %379 = arith.mulf %372, %378 : vector<8x16xf32>
    %380 = arith.addf %362, %379 : vector<8x16xf32>
    %c93 = arith.constant 93 : index
    %381 = memref.load %arg3[%c93] : memref<144xf32, #tpu.memory_space<smem>>
    %382 = vector.broadcast %381 : f32 to vector<8x16xf32>
    %383 = arith.mulf %372, %382 : vector<8x16xf32>
    %384 = arith.addf %366, %383 : vector<8x16xf32>
    %c129 = arith.constant 129 : index
    %385 = memref.load %arg3[%c129] : memref<144xf32, #tpu.memory_space<smem>>
    %386 = vector.broadcast %385 : f32 to vector<8x16xf32>
    %387 = arith.mulf %372, %386 : vector<8x16xf32>
    %388 = arith.addf %370, %387 : vector<8x16xf32>
    %389 = vector.extract_strided_slice %371 {offsets = [0, 1], sizes = [8, 16], strides = [1, 1]} : vector<8x18xf32> to vector<8x16xf32>
    %c22 = arith.constant 22 : index
    %390 = memref.load %arg3[%c22] : memref<144xf32, #tpu.memory_space<smem>>
    %391 = vector.broadcast %390 : f32 to vector<8x16xf32>
    %392 = arith.mulf %389, %391 : vector<8x16xf32>
    %393 = arith.addf %376, %392 : vector<8x16xf32>
    %c58 = arith.constant 58 : index
    %394 = memref.load %arg3[%c58] : memref<144xf32, #tpu.memory_space<smem>>
    %395 = vector.broadcast %394 : f32 to vector<8x16xf32>
    %396 = arith.mulf %389, %395 : vector<8x16xf32>
    %397 = arith.addf %380, %396 : vector<8x16xf32>
    %c94 = arith.constant 94 : index
    %398 = memref.load %arg3[%c94] : memref<144xf32, #tpu.memory_space<smem>>
    %399 = vector.broadcast %398 : f32 to vector<8x16xf32>
    %400 = arith.mulf %389, %399 : vector<8x16xf32>
    %401 = arith.addf %384, %400 : vector<8x16xf32>
    %c130 = arith.constant 130 : index
    %402 = memref.load %arg3[%c130] : memref<144xf32, #tpu.memory_space<smem>>
    %403 = vector.broadcast %402 : f32 to vector<8x16xf32>
    %404 = arith.mulf %389, %403 : vector<8x16xf32>
    %405 = arith.addf %388, %404 : vector<8x16xf32>
    %406 = vector.extract_strided_slice %371 {offsets = [0, 2], sizes = [8, 16], strides = [1, 1]} : vector<8x18xf32> to vector<8x16xf32>
    %c23 = arith.constant 23 : index
    %407 = memref.load %arg3[%c23] : memref<144xf32, #tpu.memory_space<smem>>
    %408 = vector.broadcast %407 : f32 to vector<8x16xf32>
    %409 = arith.mulf %406, %408 : vector<8x16xf32>
    %410 = arith.addf %393, %409 : vector<8x16xf32>
    %c59 = arith.constant 59 : index
    %411 = memref.load %arg3[%c59] : memref<144xf32, #tpu.memory_space<smem>>
    %412 = vector.broadcast %411 : f32 to vector<8x16xf32>
    %413 = arith.mulf %406, %412 : vector<8x16xf32>
    %414 = arith.addf %397, %413 : vector<8x16xf32>
    %c95 = arith.constant 95 : index
    %415 = memref.load %arg3[%c95] : memref<144xf32, #tpu.memory_space<smem>>
    %416 = vector.broadcast %415 : f32 to vector<8x16xf32>
    %417 = arith.mulf %406, %416 : vector<8x16xf32>
    %418 = arith.addf %401, %417 : vector<8x16xf32>
    %c131 = arith.constant 131 : index
    %419 = memref.load %arg3[%c131] : memref<144xf32, #tpu.memory_space<smem>>
    %420 = vector.broadcast %419 : f32 to vector<8x16xf32>
    %421 = arith.mulf %406, %420 : vector<8x16xf32>
    %422 = arith.addf %405, %421 : vector<8x16xf32>
    %423 = vector.extract_strided_slice %318 {offsets = [2, 0], sizes = [8, 18], strides = [1, 1]} : vector<10x18xf32> to vector<8x18xf32>
    %424 = vector.extract_strided_slice %423 {offsets = [0, 0], sizes = [8, 16], strides = [1, 1]} : vector<8x18xf32> to vector<8x16xf32>
    %c24 = arith.constant 24 : index
    %425 = memref.load %arg3[%c24] : memref<144xf32, #tpu.memory_space<smem>>
    %426 = vector.broadcast %425 : f32 to vector<8x16xf32>
    %427 = arith.mulf %424, %426 : vector<8x16xf32>
    %428 = arith.addf %410, %427 : vector<8x16xf32>
    %c60 = arith.constant 60 : index
    %429 = memref.load %arg3[%c60] : memref<144xf32, #tpu.memory_space<smem>>
    %430 = vector.broadcast %429 : f32 to vector<8x16xf32>
    %431 = arith.mulf %424, %430 : vector<8x16xf32>
    %432 = arith.addf %414, %431 : vector<8x16xf32>
    %c96 = arith.constant 96 : index
    %433 = memref.load %arg3[%c96] : memref<144xf32, #tpu.memory_space<smem>>
    %434 = vector.broadcast %433 : f32 to vector<8x16xf32>
    %435 = arith.mulf %424, %434 : vector<8x16xf32>
    %436 = arith.addf %418, %435 : vector<8x16xf32>
    %c132 = arith.constant 132 : index
    %437 = memref.load %arg3[%c132] : memref<144xf32, #tpu.memory_space<smem>>
    %438 = vector.broadcast %437 : f32 to vector<8x16xf32>
    %439 = arith.mulf %424, %438 : vector<8x16xf32>
    %440 = arith.addf %422, %439 : vector<8x16xf32>
    %441 = vector.extract_strided_slice %423 {offsets = [0, 1], sizes = [8, 16], strides = [1, 1]} : vector<8x18xf32> to vector<8x16xf32>
    %c25 = arith.constant 25 : index
    %442 = memref.load %arg3[%c25] : memref<144xf32, #tpu.memory_space<smem>>
    %443 = vector.broadcast %442 : f32 to vector<8x16xf32>
    %444 = arith.mulf %441, %443 : vector<8x16xf32>
    %445 = arith.addf %428, %444 : vector<8x16xf32>
    %c61 = arith.constant 61 : index
    %446 = memref.load %arg3[%c61] : memref<144xf32, #tpu.memory_space<smem>>
    %447 = vector.broadcast %446 : f32 to vector<8x16xf32>
    %448 = arith.mulf %441, %447 : vector<8x16xf32>
    %449 = arith.addf %432, %448 : vector<8x16xf32>
    %c97 = arith.constant 97 : index
    %450 = memref.load %arg3[%c97] : memref<144xf32, #tpu.memory_space<smem>>
    %451 = vector.broadcast %450 : f32 to vector<8x16xf32>
    %452 = arith.mulf %441, %451 : vector<8x16xf32>
    %453 = arith.addf %436, %452 : vector<8x16xf32>
    %c133 = arith.constant 133 : index
    %454 = memref.load %arg3[%c133] : memref<144xf32, #tpu.memory_space<smem>>
    %455 = vector.broadcast %454 : f32 to vector<8x16xf32>
    %456 = arith.mulf %441, %455 : vector<8x16xf32>
    %457 = arith.addf %440, %456 : vector<8x16xf32>
    %458 = vector.extract_strided_slice %423 {offsets = [0, 2], sizes = [8, 16], strides = [1, 1]} : vector<8x18xf32> to vector<8x16xf32>
    %c26 = arith.constant 26 : index
    %459 = memref.load %arg3[%c26] : memref<144xf32, #tpu.memory_space<smem>>
    %460 = vector.broadcast %459 : f32 to vector<8x16xf32>
    %461 = arith.mulf %458, %460 : vector<8x16xf32>
    %462 = arith.addf %445, %461 : vector<8x16xf32>
    %c62 = arith.constant 62 : index
    %463 = memref.load %arg3[%c62] : memref<144xf32, #tpu.memory_space<smem>>
    %464 = vector.broadcast %463 : f32 to vector<8x16xf32>
    %465 = arith.mulf %458, %464 : vector<8x16xf32>
    %466 = arith.addf %449, %465 : vector<8x16xf32>
    %c98 = arith.constant 98 : index
    %467 = memref.load %arg3[%c98] : memref<144xf32, #tpu.memory_space<smem>>
    %468 = vector.broadcast %467 : f32 to vector<8x16xf32>
    %469 = arith.mulf %458, %468 : vector<8x16xf32>
    %470 = arith.addf %453, %469 : vector<8x16xf32>
    %c134 = arith.constant 134 : index
    %471 = memref.load %arg3[%c134] : memref<144xf32, #tpu.memory_space<smem>>
    %472 = vector.broadcast %471 : f32 to vector<8x16xf32>
    %473 = arith.mulf %458, %472 : vector<8x16xf32>
    %474 = arith.addf %457, %473 : vector<8x16xf32>
    %c0_9 = arith.constant 0 : index
    %c3_10 = arith.constant 3 : index
    %475 = arith.index_cast %1 : i32 to index
    %c0_11 = arith.constant 0 : index
    %476 = vector.load %arg2[%c0_9, %c3_10, %475, %c0_11] : memref<1x4x18x18xf32, #tpu.memory_space<vmem>>, vector<1x1x10x18xf32>
    %477 = vector.shape_cast %476 : vector<1x1x10x18xf32> to vector<10x18xf32>
    %478 = vector.extract_strided_slice %477 {offsets = [0, 0], sizes = [8, 18], strides = [1, 1]} : vector<10x18xf32> to vector<8x18xf32>
    %479 = vector.extract_strided_slice %478 {offsets = [0, 0], sizes = [8, 16], strides = [1, 1]} : vector<8x18xf32> to vector<8x16xf32>
    %c27 = arith.constant 27 : index
    %480 = memref.load %arg3[%c27] : memref<144xf32, #tpu.memory_space<smem>>
    %481 = vector.broadcast %480 : f32 to vector<8x16xf32>
    %482 = arith.mulf %479, %481 : vector<8x16xf32>
    %483 = arith.addf %462, %482 : vector<8x16xf32>
    %c63 = arith.constant 63 : index
    %484 = memref.load %arg3[%c63] : memref<144xf32, #tpu.memory_space<smem>>
    %485 = vector.broadcast %484 : f32 to vector<8x16xf32>
    %486 = arith.mulf %479, %485 : vector<8x16xf32>
    %487 = arith.addf %466, %486 : vector<8x16xf32>
    %c99 = arith.constant 99 : index
    %488 = memref.load %arg3[%c99] : memref<144xf32, #tpu.memory_space<smem>>
    %489 = vector.broadcast %488 : f32 to vector<8x16xf32>
    %490 = arith.mulf %479, %489 : vector<8x16xf32>
    %491 = arith.addf %470, %490 : vector<8x16xf32>
    %c135 = arith.constant 135 : index
    %492 = memref.load %arg3[%c135] : memref<144xf32, #tpu.memory_space<smem>>
    %493 = vector.broadcast %492 : f32 to vector<8x16xf32>
    %494 = arith.mulf %479, %493 : vector<8x16xf32>
    %495 = arith.addf %474, %494 : vector<8x16xf32>
    %496 = vector.extract_strided_slice %478 {offsets = [0, 1], sizes = [8, 16], strides = [1, 1]} : vector<8x18xf32> to vector<8x16xf32>
    %c28 = arith.constant 28 : index
    %497 = memref.load %arg3[%c28] : memref<144xf32, #tpu.memory_space<smem>>
    %498 = vector.broadcast %497 : f32 to vector<8x16xf32>
    %499 = arith.mulf %496, %498 : vector<8x16xf32>
    %500 = arith.addf %483, %499 : vector<8x16xf32>
    %c64 = arith.constant 64 : index
    %501 = memref.load %arg3[%c64] : memref<144xf32, #tpu.memory_space<smem>>
    %502 = vector.broadcast %501 : f32 to vector<8x16xf32>
    %503 = arith.mulf %496, %502 : vector<8x16xf32>
    %504 = arith.addf %487, %503 : vector<8x16xf32>
    %c100 = arith.constant 100 : index
    %505 = memref.load %arg3[%c100] : memref<144xf32, #tpu.memory_space<smem>>
    %506 = vector.broadcast %505 : f32 to vector<8x16xf32>
    %507 = arith.mulf %496, %506 : vector<8x16xf32>
    %508 = arith.addf %491, %507 : vector<8x16xf32>
    %c136 = arith.constant 136 : index
    %509 = memref.load %arg3[%c136] : memref<144xf32, #tpu.memory_space<smem>>
    %510 = vector.broadcast %509 : f32 to vector<8x16xf32>
    %511 = arith.mulf %496, %510 : vector<8x16xf32>
    %512 = arith.addf %495, %511 : vector<8x16xf32>
    %513 = vector.extract_strided_slice %478 {offsets = [0, 2], sizes = [8, 16], strides = [1, 1]} : vector<8x18xf32> to vector<8x16xf32>
    %c29 = arith.constant 29 : index
    %514 = memref.load %arg3[%c29] : memref<144xf32, #tpu.memory_space<smem>>
    %515 = vector.broadcast %514 : f32 to vector<8x16xf32>
    %516 = arith.mulf %513, %515 : vector<8x16xf32>
    %517 = arith.addf %500, %516 : vector<8x16xf32>
    %c65 = arith.constant 65 : index
    %518 = memref.load %arg3[%c65] : memref<144xf32, #tpu.memory_space<smem>>
    %519 = vector.broadcast %518 : f32 to vector<8x16xf32>
    %520 = arith.mulf %513, %519 : vector<8x16xf32>
    %521 = arith.addf %504, %520 : vector<8x16xf32>
    %c101 = arith.constant 101 : index
    %522 = memref.load %arg3[%c101] : memref<144xf32, #tpu.memory_space<smem>>
    %523 = vector.broadcast %522 : f32 to vector<8x16xf32>
    %524 = arith.mulf %513, %523 : vector<8x16xf32>
    %525 = arith.addf %508, %524 : vector<8x16xf32>
    %c137 = arith.constant 137 : index
    %526 = memref.load %arg3[%c137] : memref<144xf32, #tpu.memory_space<smem>>
    %527 = vector.broadcast %526 : f32 to vector<8x16xf32>
    %528 = arith.mulf %513, %527 : vector<8x16xf32>
    %529 = arith.addf %512, %528 : vector<8x16xf32>
    %530 = vector.extract_strided_slice %477 {offsets = [1, 0], sizes = [8, 18], strides = [1, 1]} : vector<10x18xf32> to vector<8x18xf32>
    %531 = vector.extract_strided_slice %530 {offsets = [0, 0], sizes = [8, 16], strides = [1, 1]} : vector<8x18xf32> to vector<8x16xf32>
    %c30 = arith.constant 30 : index
    %532 = memref.load %arg3[%c30] : memref<144xf32, #tpu.memory_space<smem>>
    %533 = vector.broadcast %532 : f32 to vector<8x16xf32>
    %534 = arith.mulf %531, %533 : vector<8x16xf32>
    %535 = arith.addf %517, %534 : vector<8x16xf32>
    %c66 = arith.constant 66 : index
    %536 = memref.load %arg3[%c66] : memref<144xf32, #tpu.memory_space<smem>>
    %537 = vector.broadcast %536 : f32 to vector<8x16xf32>
    %538 = arith.mulf %531, %537 : vector<8x16xf32>
    %539 = arith.addf %521, %538 : vector<8x16xf32>
    %c102 = arith.constant 102 : index
    %540 = memref.load %arg3[%c102] : memref<144xf32, #tpu.memory_space<smem>>
    %541 = vector.broadcast %540 : f32 to vector<8x16xf32>
    %542 = arith.mulf %531, %541 : vector<8x16xf32>
    %543 = arith.addf %525, %542 : vector<8x16xf32>
    %c138 = arith.constant 138 : index
    %544 = memref.load %arg3[%c138] : memref<144xf32, #tpu.memory_space<smem>>
    %545 = vector.broadcast %544 : f32 to vector<8x16xf32>
    %546 = arith.mulf %531, %545 : vector<8x16xf32>
    %547 = arith.addf %529, %546 : vector<8x16xf32>
    %548 = vector.extract_strided_slice %530 {offsets = [0, 1], sizes = [8, 16], strides = [1, 1]} : vector<8x18xf32> to vector<8x16xf32>
    %c31 = arith.constant 31 : index
    %549 = memref.load %arg3[%c31] : memref<144xf32, #tpu.memory_space<smem>>
    %550 = vector.broadcast %549 : f32 to vector<8x16xf32>
    %551 = arith.mulf %548, %550 : vector<8x16xf32>
    %552 = arith.addf %535, %551 : vector<8x16xf32>
    %c67 = arith.constant 67 : index
    %553 = memref.load %arg3[%c67] : memref<144xf32, #tpu.memory_space<smem>>
    %554 = vector.broadcast %553 : f32 to vector<8x16xf32>
    %555 = arith.mulf %548, %554 : vector<8x16xf32>
    %556 = arith.addf %539, %555 : vector<8x16xf32>
    %c103 = arith.constant 103 : index
    %557 = memref.load %arg3[%c103] : memref<144xf32, #tpu.memory_space<smem>>
    %558 = vector.broadcast %557 : f32 to vector<8x16xf32>
    %559 = arith.mulf %548, %558 : vector<8x16xf32>
    %560 = arith.addf %543, %559 : vector<8x16xf32>
    %c139 = arith.constant 139 : index
    %561 = memref.load %arg3[%c139] : memref<144xf32, #tpu.memory_space<smem>>
    %562 = vector.broadcast %561 : f32 to vector<8x16xf32>
    %563 = arith.mulf %548, %562 : vector<8x16xf32>
    %564 = arith.addf %547, %563 : vector<8x16xf32>
    %565 = vector.extract_strided_slice %530 {offsets = [0, 2], sizes = [8, 16], strides = [1, 1]} : vector<8x18xf32> to vector<8x16xf32>
    %c32 = arith.constant 32 : index
    %566 = memref.load %arg3[%c32] : memref<144xf32, #tpu.memory_space<smem>>
    %567 = vector.broadcast %566 : f32 to vector<8x16xf32>
    %568 = arith.mulf %565, %567 : vector<8x16xf32>
    %569 = arith.addf %552, %568 : vector<8x16xf32>
    %c68 = arith.constant 68 : index
    %570 = memref.load %arg3[%c68] : memref<144xf32, #tpu.memory_space<smem>>
    %571 = vector.broadcast %570 : f32 to vector<8x16xf32>
    %572 = arith.mulf %565, %571 : vector<8x16xf32>
    %573 = arith.addf %556, %572 : vector<8x16xf32>
    %c104 = arith.constant 104 : index
    %574 = memref.load %arg3[%c104] : memref<144xf32, #tpu.memory_space<smem>>
    %575 = vector.broadcast %574 : f32 to vector<8x16xf32>
    %576 = arith.mulf %565, %575 : vector<8x16xf32>
    %577 = arith.addf %560, %576 : vector<8x16xf32>
    %c140 = arith.constant 140 : index
    %578 = memref.load %arg3[%c140] : memref<144xf32, #tpu.memory_space<smem>>
    %579 = vector.broadcast %578 : f32 to vector<8x16xf32>
    %580 = arith.mulf %565, %579 : vector<8x16xf32>
    %581 = arith.addf %564, %580 : vector<8x16xf32>
    %582 = vector.extract_strided_slice %477 {offsets = [2, 0], sizes = [8, 18], strides = [1, 1]} : vector<10x18xf32> to vector<8x18xf32>
    %583 = vector.extract_strided_slice %582 {offsets = [0, 0], sizes = [8, 16], strides = [1, 1]} : vector<8x18xf32> to vector<8x16xf32>
    %c33 = arith.constant 33 : index
    %584 = memref.load %arg3[%c33] : memref<144xf32, #tpu.memory_space<smem>>
    %585 = vector.broadcast %584 : f32 to vector<8x16xf32>
    %586 = arith.mulf %583, %585 : vector<8x16xf32>
    %587 = arith.addf %569, %586 : vector<8x16xf32>
    %c69 = arith.constant 69 : index
    %588 = memref.load %arg3[%c69] : memref<144xf32, #tpu.memory_space<smem>>
    %589 = vector.broadcast %588 : f32 to vector<8x16xf32>
    %590 = arith.mulf %583, %589 : vector<8x16xf32>
    %591 = arith.addf %573, %590 : vector<8x16xf32>
    %c105 = arith.constant 105 : index
    %592 = memref.load %arg3[%c105] : memref<144xf32, #tpu.memory_space<smem>>
    %593 = vector.broadcast %592 : f32 to vector<8x16xf32>
    %594 = arith.mulf %583, %593 : vector<8x16xf32>
    %595 = arith.addf %577, %594 : vector<8x16xf32>
    %c141 = arith.constant 141 : index
    %596 = memref.load %arg3[%c141] : memref<144xf32, #tpu.memory_space<smem>>
    %597 = vector.broadcast %596 : f32 to vector<8x16xf32>
    %598 = arith.mulf %583, %597 : vector<8x16xf32>
    %599 = arith.addf %581, %598 : vector<8x16xf32>
    %600 = vector.extract_strided_slice %582 {offsets = [0, 1], sizes = [8, 16], strides = [1, 1]} : vector<8x18xf32> to vector<8x16xf32>
    %c34 = arith.constant 34 : index
    %601 = memref.load %arg3[%c34] : memref<144xf32, #tpu.memory_space<smem>>
    %602 = vector.broadcast %601 : f32 to vector<8x16xf32>
    %603 = arith.mulf %600, %602 : vector<8x16xf32>
    %604 = arith.addf %587, %603 : vector<8x16xf32>
    %c70 = arith.constant 70 : index
    %605 = memref.load %arg3[%c70] : memref<144xf32, #tpu.memory_space<smem>>
    %606 = vector.broadcast %605 : f32 to vector<8x16xf32>
    %607 = arith.mulf %600, %606 : vector<8x16xf32>
    %608 = arith.addf %591, %607 : vector<8x16xf32>
    %c106 = arith.constant 106 : index
    %609 = memref.load %arg3[%c106] : memref<144xf32, #tpu.memory_space<smem>>
    %610 = vector.broadcast %609 : f32 to vector<8x16xf32>
    %611 = arith.mulf %600, %610 : vector<8x16xf32>
    %612 = arith.addf %595, %611 : vector<8x16xf32>
    %c142 = arith.constant 142 : index
    %613 = memref.load %arg3[%c142] : memref<144xf32, #tpu.memory_space<smem>>
    %614 = vector.broadcast %613 : f32 to vector<8x16xf32>
    %615 = arith.mulf %600, %614 : vector<8x16xf32>
    %616 = arith.addf %599, %615 : vector<8x16xf32>
    %617 = vector.extract_strided_slice %582 {offsets = [0, 2], sizes = [8, 16], strides = [1, 1]} : vector<8x18xf32> to vector<8x16xf32>
    %c35 = arith.constant 35 : index
    %618 = memref.load %arg3[%c35] : memref<144xf32, #tpu.memory_space<smem>>
    %619 = vector.broadcast %618 : f32 to vector<8x16xf32>
    %620 = arith.mulf %617, %619 : vector<8x16xf32>
    %621 = arith.addf %604, %620 : vector<8x16xf32>
    %c71 = arith.constant 71 : index
    %622 = memref.load %arg3[%c71] : memref<144xf32, #tpu.memory_space<smem>>
    %623 = vector.broadcast %622 : f32 to vector<8x16xf32>
    %624 = arith.mulf %617, %623 : vector<8x16xf32>
    %625 = arith.addf %608, %624 : vector<8x16xf32>
    %c107 = arith.constant 107 : index
    %626 = memref.load %arg3[%c107] : memref<144xf32, #tpu.memory_space<smem>>
    %627 = vector.broadcast %626 : f32 to vector<8x16xf32>
    %628 = arith.mulf %617, %627 : vector<8x16xf32>
    %629 = arith.addf %612, %628 : vector<8x16xf32>
    %c143 = arith.constant 143 : index
    %630 = memref.load %arg3[%c143] : memref<144xf32, #tpu.memory_space<smem>>
    %631 = vector.broadcast %630 : f32 to vector<8x16xf32>
    %632 = arith.mulf %617, %631 : vector<8x16xf32>
    %633 = arith.addf %616, %632 : vector<8x16xf32>
    %c0_12 = arith.constant 0 : index
    %634 = memref.load %arg4[%c0_12] : memref<4xf32, #tpu.memory_space<smem>>
    %635 = vector.broadcast %634 : f32 to vector<8x16xf32>
    %636 = arith.addf %621, %635 : vector<8x16xf32>
    %cst = arith.constant 0.000000e+00 : f32
    %637 = vector.broadcast %cst : f32 to vector<8x16xf32>
    %638 = arith.maximumf %636, %637 : vector<8x16xf32>
    %c0_13 = arith.constant 0 : index
    %c0_14 = arith.constant 0 : index
    %c0_15 = arith.constant 0 : index
    %c0_16 = arith.constant 0 : index
    %639 = vector.load %arg5[%c0_13, %c0_14, %c0_15, %c0_16] : memref<1x4x8x16xf32, #tpu.memory_space<vmem>>, vector<1x1x8x16xf32>
    %640 = vector.shape_cast %639 : vector<1x1x8x16xf32> to vector<8x16xf32>
    %641 = vector.shape_cast %638 : vector<8x16xf32> to vector<1x1x8x16xf32>
    tpu.vector_store %arg5[%c0_13, %c0_14, %c0_15, %c0_16], %641 {strides = array<i32>} : memref<1x4x8x16xf32, #tpu.memory_space<vmem>>, vector<1x1x8x16xf32>,
    %cst_17 = arith.constant dense<0.000000e+00> : vector<16xf32>
    %642 = vector.multi_reduction <add>, %638, %cst_17 [0] : vector<8x16xf32> to vector<16xf32>
    %643 = vector.shape_cast %642 : vector<16xf32> to vector<1x16xf32>
    %c0_18 = arith.constant 0 : index
    %c0_19 = arith.constant 0 : index
    %c0_20 = arith.constant 0 : index
    %c0_21 = arith.constant 0 : index
    %644 = vector.load %arg6[%c0_18, %c0_19, %c0_20, %c0_21] : memref<1x1x4x16xf32, #tpu.memory_space<vmem>>, vector<1x1x1x16xf32>
    %645 = vector.shape_cast %644 : vector<1x1x1x16xf32> to vector<1x16xf32>
    %646 = vector.shape_cast %643 : vector<1x16xf32> to vector<1x1x1x16xf32>
    tpu.vector_store %arg6[%c0_18, %c0_19, %c0_20, %c0_21], %646 {strides = array<i32>} : memref<1x1x4x16xf32, #tpu.memory_space<vmem>>, vector<1x1x1x16xf32>,
    %647 = arith.mulf %638, %638 : vector<8x16xf32>
    %cst_22 = arith.constant dense<0.000000e+00> : vector<16xf32>
    %648 = vector.multi_reduction <add>, %647, %cst_22 [0] : vector<8x16xf32> to vector<16xf32>
    %649 = vector.shape_cast %648 : vector<16xf32> to vector<1x16xf32>
    %c0_23 = arith.constant 0 : index
    %c0_24 = arith.constant 0 : index
    %c0_25 = arith.constant 0 : index
    %c0_26 = arith.constant 0 : index
    %650 = vector.load %arg7[%c0_23, %c0_24, %c0_25, %c0_26] : memref<1x1x4x16xf32, #tpu.memory_space<vmem>>, vector<1x1x1x16xf32>
    %651 = vector.shape_cast %650 : vector<1x1x1x16xf32> to vector<1x16xf32>
    %652 = vector.shape_cast %649 : vector<1x16xf32> to vector<1x1x1x16xf32>
    tpu.vector_store %arg7[%c0_23, %c0_24, %c0_25, %c0_26], %652 {strides = array<i32>} : memref<1x1x4x16xf32, #tpu.memory_space<vmem>>, vector<1x1x1x16xf32>,
    %c1_27 = arith.constant 1 : index
    %653 = memref.load %arg4[%c1_27] : memref<4xf32, #tpu.memory_space<smem>>
    %654 = vector.broadcast %653 : f32 to vector<8x16xf32>
    %655 = arith.addf %625, %654 : vector<8x16xf32>
    %cst_28 = arith.constant 0.000000e+00 : f32
    %656 = vector.broadcast %cst_28 : f32 to vector<8x16xf32>
    %657 = arith.maximumf %655, %656 : vector<8x16xf32>
    %c0_29 = arith.constant 0 : index
    %c1_30 = arith.constant 1 : index
    %c0_31 = arith.constant 0 : index
    %c0_32 = arith.constant 0 : index
    %658 = vector.load %arg5[%c0_29, %c1_30, %c0_31, %c0_32] : memref<1x4x8x16xf32, #tpu.memory_space<vmem>>, vector<1x1x8x16xf32>
    %659 = vector.shape_cast %658 : vector<1x1x8x16xf32> to vector<8x16xf32>
    %660 = vector.shape_cast %657 : vector<8x16xf32> to vector<1x1x8x16xf32>
    tpu.vector_store %arg5[%c0_29, %c1_30, %c0_31, %c0_32], %660 {strides = array<i32>} : memref<1x4x8x16xf32, #tpu.memory_space<vmem>>, vector<1x1x8x16xf32>,
    %cst_33 = arith.constant dense<0.000000e+00> : vector<16xf32>
    %661 = vector.multi_reduction <add>, %657, %cst_33 [0] : vector<8x16xf32> to vector<16xf32>
    %662 = vector.shape_cast %661 : vector<16xf32> to vector<1x16xf32>
    %c0_34 = arith.constant 0 : index
    %c0_35 = arith.constant 0 : index
    %c1_36 = arith.constant 1 : index
    %c0_37 = arith.constant 0 : index
    %663 = vector.load %arg6[%c0_34, %c0_35, %c1_36, %c0_37] : memref<1x1x4x16xf32, #tpu.memory_space<vmem>>, vector<1x1x1x16xf32>
    %664 = vector.shape_cast %663 : vector<1x1x1x16xf32> to vector<1x16xf32>
    %665 = vector.shape_cast %662 : vector<1x16xf32> to vector<1x1x1x16xf32>
    tpu.vector_store %arg6[%c0_34, %c0_35, %c1_36, %c0_37], %665 {strides = array<i32>} : memref<1x1x4x16xf32, #tpu.memory_space<vmem>>, vector<1x1x1x16xf32>,
    %666 = arith.mulf %657, %657 : vector<8x16xf32>
    %cst_38 = arith.constant dense<0.000000e+00> : vector<16xf32>
    %667 = vector.multi_reduction <add>, %666, %cst_38 [0] : vector<8x16xf32> to vector<16xf32>
    %668 = vector.shape_cast %667 : vector<16xf32> to vector<1x16xf32>
    %c0_39 = arith.constant 0 : index
    %c0_40 = arith.constant 0 : index
    %c1_41 = arith.constant 1 : index
    %c0_42 = arith.constant 0 : index
    %669 = vector.load %arg7[%c0_39, %c0_40, %c1_41, %c0_42] : memref<1x1x4x16xf32, #tpu.memory_space<vmem>>, vector<1x1x1x16xf32>
    %670 = vector.shape_cast %669 : vector<1x1x1x16xf32> to vector<1x16xf32>
    %671 = vector.shape_cast %668 : vector<1x16xf32> to vector<1x1x1x16xf32>
    tpu.vector_store %arg7[%c0_39, %c0_40, %c1_41, %c0_42], %671 {strides = array<i32>} : memref<1x1x4x16xf32, #tpu.memory_space<vmem>>, vector<1x1x1x16xf32>,
    %c2_43 = arith.constant 2 : index
    %672 = memref.load %arg4[%c2_43] : memref<4xf32, #tpu.memory_space<smem>>
    %673 = vector.broadcast %672 : f32 to vector<8x16xf32>
    %674 = arith.addf %629, %673 : vector<8x16xf32>
    %cst_44 = arith.constant 0.000000e+00 : f32
    %675 = vector.broadcast %cst_44 : f32 to vector<8x16xf32>
    %676 = arith.maximumf %674, %675 : vector<8x16xf32>
    %c0_45 = arith.constant 0 : index
    %c2_46 = arith.constant 2 : index
    %c0_47 = arith.constant 0 : index
    %c0_48 = arith.constant 0 : index
    %677 = vector.load %arg5[%c0_45, %c2_46, %c0_47, %c0_48] : memref<1x4x8x16xf32, #tpu.memory_space<vmem>>, vector<1x1x8x16xf32>
    %678 = vector.shape_cast %677 : vector<1x1x8x16xf32> to vector<8x16xf32>
    %679 = vector.shape_cast %676 : vector<8x16xf32> to vector<1x1x8x16xf32>
    tpu.vector_store %arg5[%c0_45, %c2_46, %c0_47, %c0_48], %679 {strides = array<i32>} : memref<1x4x8x16xf32, #tpu.memory_space<vmem>>, vector<1x1x8x16xf32>,
    %cst_49 = arith.constant dense<0.000000e+00> : vector<16xf32>
    %680 = vector.multi_reduction <add>, %676, %cst_49 [0] : vector<8x16xf32> to vector<16xf32>
    %681 = vector.shape_cast %680 : vector<16xf32> to vector<1x16xf32>
    %c0_50 = arith.constant 0 : index
    %c0_51 = arith.constant 0 : index
    %c2_52 = arith.constant 2 : index
    %c0_53 = arith.constant 0 : index
    %682 = vector.load %arg6[%c0_50, %c0_51, %c2_52, %c0_53] : memref<1x1x4x16xf32, #tpu.memory_space<vmem>>, vector<1x1x1x16xf32>
    %683 = vector.shape_cast %682 : vector<1x1x1x16xf32> to vector<1x16xf32>
    %684 = vector.shape_cast %681 : vector<1x16xf32> to vector<1x1x1x16xf32>
    tpu.vector_store %arg6[%c0_50, %c0_51, %c2_52, %c0_53], %684 {strides = array<i32>} : memref<1x1x4x16xf32, #tpu.memory_space<vmem>>, vector<1x1x1x16xf32>,
    %685 = arith.mulf %676, %676 : vector<8x16xf32>
    %cst_54 = arith.constant dense<0.000000e+00> : vector<16xf32>
    %686 = vector.multi_reduction <add>, %685, %cst_54 [0] : vector<8x16xf32> to vector<16xf32>
    %687 = vector.shape_cast %686 : vector<16xf32> to vector<1x16xf32>
    %c0_55 = arith.constant 0 : index
    %c0_56 = arith.constant 0 : index
    %c2_57 = arith.constant 2 : index
    %c0_58 = arith.constant 0 : index
    %688 = vector.load %arg7[%c0_55, %c0_56, %c2_57, %c0_58] : memref<1x1x4x16xf32, #tpu.memory_space<vmem>>, vector<1x1x1x16xf32>
    %689 = vector.shape_cast %688 : vector<1x1x1x16xf32> to vector<1x16xf32>
    %690 = vector.shape_cast %687 : vector<1x16xf32> to vector<1x1x1x16xf32>
    tpu.vector_store %arg7[%c0_55, %c0_56, %c2_57, %c0_58], %690 {strides = array<i32>} : memref<1x1x4x16xf32, #tpu.memory_space<vmem>>, vector<1x1x1x16xf32>,
    %c3_59 = arith.constant 3 : index
    %691 = memref.load %arg4[%c3_59] : memref<4xf32, #tpu.memory_space<smem>>
    %692 = vector.broadcast %691 : f32 to vector<8x16xf32>
    %693 = arith.addf %633, %692 : vector<8x16xf32>
    %cst_60 = arith.constant 0.000000e+00 : f32
    %694 = vector.broadcast %cst_60 : f32 to vector<8x16xf32>
    %695 = arith.maximumf %693, %694 : vector<8x16xf32>
    %c0_61 = arith.constant 0 : index
    %c3_62 = arith.constant 3 : index
    %c0_63 = arith.constant 0 : index
    %c0_64 = arith.constant 0 : index
    %696 = vector.load %arg5[%c0_61, %c3_62, %c0_63, %c0_64] : memref<1x4x8x16xf32, #tpu.memory_space<vmem>>, vector<1x1x8x16xf32>
    %697 = vector.shape_cast %696 : vector<1x1x8x16xf32> to vector<8x16xf32>
    %698 = vector.shape_cast %695 : vector<8x16xf32> to vector<1x1x8x16xf32>
    tpu.vector_store %arg5[%c0_61, %c3_62, %c0_63, %c0_64], %698 {strides = array<i32>} : memref<1x4x8x16xf32, #tpu.memory_space<vmem>>, vector<1x1x8x16xf32>,
    %cst_65 = arith.constant dense<0.000000e+00> : vector<16xf32>
    %699 = vector.multi_reduction <add>, %695, %cst_65 [0] : vector<8x16xf32> to vector<16xf32>
    %700 = vector.shape_cast %699 : vector<16xf32> to vector<1x16xf32>
    %c0_66 = arith.constant 0 : index
    %c0_67 = arith.constant 0 : index
    %c3_68 = arith.constant 3 : index
    %c0_69 = arith.constant 0 : index
    %701 = vector.load %arg6[%c0_66, %c0_67, %c3_68, %c0_69] : memref<1x1x4x16xf32, #tpu.memory_space<vmem>>, vector<1x1x1x16xf32>
    %702 = vector.shape_cast %701 : vector<1x1x1x16xf32> to vector<1x16xf32>
    %703 = vector.shape_cast %700 : vector<1x16xf32> to vector<1x1x1x16xf32>
    tpu.vector_store %arg6[%c0_66, %c0_67, %c3_68, %c0_69], %703 {strides = array<i32>} : memref<1x1x4x16xf32, #tpu.memory_space<vmem>>, vector<1x1x1x16xf32>,
    %704 = arith.mulf %695, %695 : vector<8x16xf32>
    %cst_70 = arith.constant dense<0.000000e+00> : vector<16xf32>
    %705 = vector.multi_reduction <add>, %704, %cst_70 [0] : vector<8x16xf32> to vector<16xf32>
    %706 = vector.shape_cast %705 : vector<16xf32> to vector<1x16xf32>
    %c0_71 = arith.constant 0 : index
    %c0_72 = arith.constant 0 : index
    %c3_73 = arith.constant 3 : index
    %c0_74 = arith.constant 0 : index
    %707 = vector.load %arg7[%c0_71, %c0_72, %c3_73, %c0_74] : memref<1x1x4x16xf32, #tpu.memory_space<vmem>>, vector<1x1x1x16xf32>
    %708 = vector.shape_cast %707 : vector<1x1x1x16xf32> to vector<1x16xf32>
    %709 = vector.shape_cast %706 : vector<1x16xf32> to vector<1x1x1x16xf32>
    tpu.vector_store %arg7[%c0_71, %c0_72, %c3_73, %c0_74], %709 {strides = array<i32>} : memref<1x1x4x16xf32, #tpu.memory_space<vmem>>, vector<1x1x1x16xf32>,
    return
  }
  func.func @transform_0(%arg0: i32, %arg1: i32) -> (i32, i32, i32, i32) {
    %c0_i32 = arith.constant 0 : i32
    %c0_i32_0 = arith.constant 0 : i32
    %c0_i32_1 = arith.constant 0 : i32
    %c0_i32_2 = arith.constant 0 : i32
    return %arg0, %c0_i32, %c0_i32_0, %c0_i32_1 : i32, i32, i32, i32
  }
  func.func @transform_1(%arg0: i32, %arg1: i32) -> i32 {
    %c0_i32 = arith.constant 0 : i32
    %c0_i32_0 = arith.constant 0 : i32
    return %c0_i32 : i32
  }
  func.func @transform_2(%arg0: i32, %arg1: i32) -> i32 {
    %c0_i32 = arith.constant 0 : i32
    %c0_i32_0 = arith.constant 0 : i32
    return %c0_i32 : i32
  }
  func.func @transform_3(%arg0: i32, %arg1: i32) -> (i32, i32, i32, i32) {
    %c0_i32 = arith.constant 0 : i32
    %c0_i32_0 = arith.constant 0 : i32
    %c0_i32_1 = arith.constant 0 : i32
    return %arg0, %c0_i32, %arg1, %c0_i32_0 : i32, i32, i32, i32
  }
  func.func @transform_4(%arg0: i32, %arg1: i32) -> (i32, i32, i32, i32) {
    %c0_i32 = arith.constant 0 : i32
    %c0_i32_0 = arith.constant 0 : i32
    %c0_i32_1 = arith.constant 0 : i32
    return %arg0, %arg1, %c0_i32, %c0_i32_0 : i32, i32, i32, i32
  }
  func.func @transform_5(%arg0: i32, %arg1: i32) -> (i32, i32, i32, i32) {
    %c0_i32 = arith.constant 0 : i32
    %c0_i32_0 = arith.constant 0 : i32
    %c0_i32_1 = arith.constant 0 : i32
    return %arg0, %arg1, %c0_i32, %c0_i32_0 : i32, i32, i32, i32
  }
}

module attributes {stable_mosaic.version = 11 : i64} {
  func.func @_bn_apply_kernel(%arg0: i32, %arg1: i32, %arg2: memref<1x4x8x16xf32, #tpu.memory_space<vmem>>, %arg3: memref<4xf32, #tpu.memory_space<smem>>, %arg4: memref<4xf32, #tpu.memory_space<smem>>, %arg5: memref<1x4x8x16xf32, #tpu.memory_space<vmem>>) attributes {dimension_semantics = [#tpu.dimension_semantics<parallel>, #tpu.dimension_semantics<parallel>], iteration_bounds = array<i64: 2, 2>, scalar_prefetch = 0 : i64, scratch_operands = 0 : i64, tpu.core_type = #tpu.core_type<tc>, window_params = [{transform_indices = @transform_0, window_bounds = array<i64: 1, 4, 8, 16>}, {transform_indices = @transform_1, window_bounds = array<i64: 4>}, {transform_indices = @transform_2, window_bounds = array<i64: 4>}, {transform_indices = @transform_3, window_bounds = array<i64: 1, 4, 8, 16>}]} {
    %c0 = arith.constant 0 : index
    %c0_0 = arith.constant 0 : index
    %c0_1 = arith.constant 0 : index
    %c0_2 = arith.constant 0 : index
    %0 = vector.load %arg2[%c0, %c0_0, %c0_1, %c0_2] : memref<1x4x8x16xf32, #tpu.memory_space<vmem>>, vector<1x1x8x16xf32>
    %1 = vector.shape_cast %0 : vector<1x1x8x16xf32> to vector<8x16xf32>
    %c0_3 = arith.constant 0 : index
    %2 = memref.load %arg3[%c0_3] : memref<4xf32, #tpu.memory_space<smem>>
    %3 = vector.broadcast %2 : f32 to vector<8x16xf32>
    %4 = arith.mulf %1, %3 : vector<8x16xf32>
    %c0_4 = arith.constant 0 : index
    %5 = memref.load %arg4[%c0_4] : memref<4xf32, #tpu.memory_space<smem>>
    %6 = vector.broadcast %5 : f32 to vector<8x16xf32>
    %7 = arith.addf %4, %6 : vector<8x16xf32>
    %c0_5 = arith.constant 0 : index
    %c0_6 = arith.constant 0 : index
    %c0_7 = arith.constant 0 : index
    %c0_8 = arith.constant 0 : index
    %8 = vector.load %arg5[%c0_5, %c0_6, %c0_7, %c0_8] : memref<1x4x8x16xf32, #tpu.memory_space<vmem>>, vector<1x1x8x16xf32>
    %9 = vector.shape_cast %8 : vector<1x1x8x16xf32> to vector<8x16xf32>
    %10 = vector.shape_cast %7 : vector<8x16xf32> to vector<1x1x8x16xf32>
    tpu.vector_store %arg5[%c0_5, %c0_6, %c0_7, %c0_8], %10 {strides = array<i32>} : memref<1x4x8x16xf32, #tpu.memory_space<vmem>>, vector<1x1x8x16xf32>,
    %c0_9 = arith.constant 0 : index
    %c1 = arith.constant 1 : index
    %c0_10 = arith.constant 0 : index
    %c0_11 = arith.constant 0 : index
    %11 = vector.load %arg2[%c0_9, %c1, %c0_10, %c0_11] : memref<1x4x8x16xf32, #tpu.memory_space<vmem>>, vector<1x1x8x16xf32>
    %12 = vector.shape_cast %11 : vector<1x1x8x16xf32> to vector<8x16xf32>
    %c1_12 = arith.constant 1 : index
    %13 = memref.load %arg3[%c1_12] : memref<4xf32, #tpu.memory_space<smem>>
    %14 = vector.broadcast %13 : f32 to vector<8x16xf32>
    %15 = arith.mulf %12, %14 : vector<8x16xf32>
    %c1_13 = arith.constant 1 : index
    %16 = memref.load %arg4[%c1_13] : memref<4xf32, #tpu.memory_space<smem>>
    %17 = vector.broadcast %16 : f32 to vector<8x16xf32>
    %18 = arith.addf %15, %17 : vector<8x16xf32>
    %c0_14 = arith.constant 0 : index
    %c1_15 = arith.constant 1 : index
    %c0_16 = arith.constant 0 : index
    %c0_17 = arith.constant 0 : index
    %19 = vector.load %arg5[%c0_14, %c1_15, %c0_16, %c0_17] : memref<1x4x8x16xf32, #tpu.memory_space<vmem>>, vector<1x1x8x16xf32>
    %20 = vector.shape_cast %19 : vector<1x1x8x16xf32> to vector<8x16xf32>
    %21 = vector.shape_cast %18 : vector<8x16xf32> to vector<1x1x8x16xf32>
    tpu.vector_store %arg5[%c0_14, %c1_15, %c0_16, %c0_17], %21 {strides = array<i32>} : memref<1x4x8x16xf32, #tpu.memory_space<vmem>>, vector<1x1x8x16xf32>,
    %c0_18 = arith.constant 0 : index
    %c2 = arith.constant 2 : index
    %c0_19 = arith.constant 0 : index
    %c0_20 = arith.constant 0 : index
    %22 = vector.load %arg2[%c0_18, %c2, %c0_19, %c0_20] : memref<1x4x8x16xf32, #tpu.memory_space<vmem>>, vector<1x1x8x16xf32>
    %23 = vector.shape_cast %22 : vector<1x1x8x16xf32> to vector<8x16xf32>
    %c2_21 = arith.constant 2 : index
    %24 = memref.load %arg3[%c2_21] : memref<4xf32, #tpu.memory_space<smem>>
    %25 = vector.broadcast %24 : f32 to vector<8x16xf32>
    %26 = arith.mulf %23, %25 : vector<8x16xf32>
    %c2_22 = arith.constant 2 : index
    %27 = memref.load %arg4[%c2_22] : memref<4xf32, #tpu.memory_space<smem>>
    %28 = vector.broadcast %27 : f32 to vector<8x16xf32>
    %29 = arith.addf %26, %28 : vector<8x16xf32>
    %c0_23 = arith.constant 0 : index
    %c2_24 = arith.constant 2 : index
    %c0_25 = arith.constant 0 : index
    %c0_26 = arith.constant 0 : index
    %30 = vector.load %arg5[%c0_23, %c2_24, %c0_25, %c0_26] : memref<1x4x8x16xf32, #tpu.memory_space<vmem>>, vector<1x1x8x16xf32>
    %31 = vector.shape_cast %30 : vector<1x1x8x16xf32> to vector<8x16xf32>
    %32 = vector.shape_cast %29 : vector<8x16xf32> to vector<1x1x8x16xf32>
    tpu.vector_store %arg5[%c0_23, %c2_24, %c0_25, %c0_26], %32 {strides = array<i32>} : memref<1x4x8x16xf32, #tpu.memory_space<vmem>>, vector<1x1x8x16xf32>,
    %c0_27 = arith.constant 0 : index
    %c3 = arith.constant 3 : index
    %c0_28 = arith.constant 0 : index
    %c0_29 = arith.constant 0 : index
    %33 = vector.load %arg2[%c0_27, %c3, %c0_28, %c0_29] : memref<1x4x8x16xf32, #tpu.memory_space<vmem>>, vector<1x1x8x16xf32>
    %34 = vector.shape_cast %33 : vector<1x1x8x16xf32> to vector<8x16xf32>
    %c3_30 = arith.constant 3 : index
    %35 = memref.load %arg3[%c3_30] : memref<4xf32, #tpu.memory_space<smem>>
    %36 = vector.broadcast %35 : f32 to vector<8x16xf32>
    %37 = arith.mulf %34, %36 : vector<8x16xf32>
    %c3_31 = arith.constant 3 : index
    %38 = memref.load %arg4[%c3_31] : memref<4xf32, #tpu.memory_space<smem>>
    %39 = vector.broadcast %38 : f32 to vector<8x16xf32>
    %40 = arith.addf %37, %39 : vector<8x16xf32>
    %c0_32 = arith.constant 0 : index
    %c3_33 = arith.constant 3 : index
    %c0_34 = arith.constant 0 : index
    %c0_35 = arith.constant 0 : index
    %41 = vector.load %arg5[%c0_32, %c3_33, %c0_34, %c0_35] : memref<1x4x8x16xf32, #tpu.memory_space<vmem>>, vector<1x1x8x16xf32>
    %42 = vector.shape_cast %41 : vector<1x1x8x16xf32> to vector<8x16xf32>
    %43 = vector.shape_cast %40 : vector<8x16xf32> to vector<1x1x8x16xf32>
    tpu.vector_store %arg5[%c0_32, %c3_33, %c0_34, %c0_35], %43 {strides = array<i32>} : memref<1x4x8x16xf32, #tpu.memory_space<vmem>>, vector<1x1x8x16xf32>,
    return
  }
  func.func @transform_0(%arg0: i32, %arg1: i32) -> (i32, i32, i32, i32) {
    %c0_i32 = arith.constant 0 : i32
    %c0_i32_0 = arith.constant 0 : i32
    %c0_i32_1 = arith.constant 0 : i32
    return %arg0, %c0_i32, %arg1, %c0_i32_0 : i32, i32, i32, i32
  }
  func.func @transform_1(%arg0: i32, %arg1: i32) -> i32 {
    %c0_i32 = arith.constant 0 : i32
    %c0_i32_0 = arith.constant 0 : i32
    return %c0_i32 : i32
  }
  func.func @transform_2(%arg0: i32, %arg1: i32) -> i32 {
    %c0_i32 = arith.constant 0 : i32
    %c0_i32_0 = arith.constant 0 : i32
    return %c0_i32 : i32
  }
  func.func @transform_3(%arg0: i32, %arg1: i32) -> (i32, i32, i32, i32) {
    %c0_i32 = arith.constant 0 : i32
    %c0_i32_0 = arith.constant 0 : i32
    %c0_i32_1 = arith.constant 0 : i32
    return %arg0, %c0_i32, %arg1, %c0_i32_0 : i32, i32, i32, i32
  }
}

</mosaic_0001>

<llo_original>
// kernel: conv_block_forward.3
$region0: #{conv_block_forward.3}
  #allocation0 [shape = 'u32[]', space=smem, size = 0x4, offset = 0x4, fixed_abs, tag = 'smem constant byte address 0x4 - core index']
  #allocation1 [shape = 'u32[144,128]{1,0:T(1,128)}', space=vmem, size = 0x12000, scoped, tag = 'internal scratch']
  %s0 = inlined_call_operand.hbm [shape: f32[2,4,16,16], index: 0, kind: input, shape index: {}, may-alias: {0,3}]
  %s1 = inlined_call_operand.vmem [shape: f32[4], index: 1, kind: input, shape index: {}]
  %s2 = inlined_call_operand.vmem [shape: f32[4], index: 2, kind: input, shape index: {}]
  %s3 = inlined_call_operand.hbm [shape: f32[2,4,16,16], index: 3, kind: output, shape index: {}, may-alias: {0,3}]
  %s4 = sld [smem:[#allocation0]]
  $region57: #{conv_block_forward.3} parent=0
    _
  %s6 = ssub.s32 1, %s4
  %s7 = scalar_select 0, %s6, %s4
  $region1: #{conv_block_forward.3} parent=0
    #allocation2 [shape = 'u8[32768]{0}', space=vmem, size = 0x8000, scoped, tag = 'input window, operand 0']
    #allocation3 [shape = 's32[2]{0}', space=sflag, size = 0x8, scoped, tag = 'scoped memory for conv_block_forward.3']
    #allocation4 [shape = 's32[2]{0}', space=sflag, size = 0x8, scoped, tag = 'scoped memory for conv_block_forward.3']
    #allocation5 [shape = 's32[2]{0}', space=sflag, size = 0x8, scoped, tag = 'scoped memory for conv_block_forward.3']
    #allocation6 [shape = 'u8[512]{0}', space=smem, size = 0x200, scoped, tag = 'input window, operand 1, single buffered']
    #allocation7 [shape = 'u8[512]{0}', space=smem, size = 0x200, scoped, tag = 'input window, operand 2, single buffered']
    #allocation8 [shape = 's32[1]{0}', space=sflag, size = 0x4, scoped, tag = 'scoped memory for conv_block_forward.3']
    #allocation9 [shape = 'u8[32768]{0}', space=vmem, size = 0x8000, scoped, tag = 'output window, operand 0']
    %8 = vsyncpa [#allocation3], 0
    %s9 = scalar_lea.sflag [#allocation3], 1
    %10 = vsyncpa %s9, 0
    %11 = vsyncpa [#allocation5], 0
    %12 = vsyncpa [#allocation8], 0
    %13 = vsyncpa [#allocation4], 0
    %s14 = scalar_lea.sflag [#allocation4], 1
    %15 = vsyncpa %s14, 0
    loop: start=0, step=1, limit=6
    $region2: #{conv_block_forward.3} parent=1 // loop_pre_header
      _
    $region3: #{conv_block_forward.3} parent=1 // loop_header
      %s17 = sphi 0, %s21
      %p18 = scmp.ge.s32.totalorder %s17, 6
      %s24 = sphi 0, %s36
      %s25 = sphi 0, %s32
      %s26 = sphi 0, %s24
      %s27 = sphi 0, %s25
      %s28 = sphi 0, %s26
      %s29 = sphi 0, %s27
      %s41 = sphi 0, %s43
      %s44 = sphi 0, %s41
      %s45 = sphi 0, %s44
      %s61 = sphi 0, %s45
      %s65 = sphi 0, %s65
      %s67 = sphi 0, %s65
      %s68 = sphi 0, %s67
      %s82 = sphi 0, %s68
      %s86 = sphi 0, %s86
      %s88 = sphi 0, %s86
      %s89 = sphi 0, %s88
      %s103 = sphi 0, %s89
      %s111 = sphi 0, %s113
      %s114 = sphi 0, %s111
      %s115 = sphi 0, %s114
      %s131 = sphi 0, %s115
    $region4: #{conv_block_forward.3} parent=1 // loop_header_branch
      %20 = sbr.rel (%p18) target = $region8
    $region5: #{conv_block_forward.3} parent=1 // loop_body
      %s22 = ssub.s32 %s17, 1
      %s23 = ssub.s32 %s17, 2
      %s30 = sadd.s32 1, %s25
      %p31 = scmp.ge.s32.totalorder %s30, 2
      %s32 = scalar_select %p31, 0, %s30
      %s33 = sadd.s32 1, %s24
      %s34 = scalar_select %p31, %s33, %s24
      %p35 = scmp.ge.s32.totalorder %s34, 2
      %s36 = scalar_select %p35, 0, %s34
      %s37 = ssub.s32 %s24, %s36
      %s38 = ssub.s32 %s25, %s32
      %s39 = sor.u32 %s37, %s38
      %p40 = scmp.eq.s32.totalorder %s39, 0
      %s42 = sadd.s32 %s41, 1
      %s43 = scalar_select %p40, %s41, %s42
      %p46 = pneg %p40
      %p47 = scmp.eq.s32.totalorder %s17, 3
      %p48 = por %p46, %p47
      %p49 = scmp.ne.s32.totalorder %s41, %s44
      %p50 = scmp.eq.s32.totalorder %s17, 0
      %p51 = por %p49, %p50
      %p52 = scmp.ne.s32.totalorder %s41, %s44
      %p53 = scmp.eq.s32.totalorder %s22, 3
      %p54 = por %p52, %p53
      %p55 = scmp.ne.s32.totalorder %s44, %s45
      %p56 = scmp.eq.s32.totalorder %s22, 0
      %p57 = por %p55, %p56
      %p58 = scmp.ne.s32.totalorder %s44, %s45
      %p59 = scmp.eq.s32.totalorder %s23, 3
      %p60 = por %p58, %p59
      %p62 = scmp.ne.s32.totalorder %s45, %s61
      %p63 = scmp.eq.s32.totalorder %s23, 0
      %p64 = por %p62, %p63
      %s66 = sadd.s32 %s65, 1
      %p69 = scmp.eq.s32.totalorder %s17, 3
      %p70 = scmp.ne.s32.totalorder %s65, %s67
      %p71 = scmp.eq.s32.totalorder %s17, 0
      %p72 = por %p70, %p71
      %p73 = scmp.ne.s32.totalorder %s65, %s67
      %p74 = scmp.eq.s32.totalorder %s22, 3
      %p75 = por %p73, %p74
      %p76 = scmp.ne.s32.totalorder %s67, %s68
      %p77 = scmp.eq.s32.totalorder %s22, 0
      %p78 = por %p76, %p77
      %p79 = scmp.ne.s32.totalorder %s67, %s68
      %p80 = scmp.eq.s32.totalorder %s23, 3
      %p81 = por %p79, %p80
      %p83 = scmp.ne.s32.totalorder %s68, %s82
      %p84 = scmp.eq.s32.totalorder %s23, 0
      %p85 = por %p83, %p84
      %s87 = sadd.s32 %s86, 1
      %p90 = scmp.eq.s32.totalorder %s17, 3
      %p91 = scmp.ne.s32.totalorder %s86, %s88
      %p92 = scmp.eq.s32.totalorder %s17, 0
      %p93 = por %p91, %p92
      %p94 = scmp.ne.s32.totalorder %s86, %s88
      %p95 = scmp.eq.s32.totalorder %s22, 3
      %p96 = por %p94, %p95
      %p97 = scmp.ne.s32.totalorder %s88, %s89
      %p98 = scmp.eq.s32.totalorder %s22, 0
      %p99 = por %p97, %p98
      %p100 = scmp.ne.s32.totalorder %s88, %s89
      %p101 = scmp.eq.s32.totalorder %s23, 3
      %p102 = por %p100, %p101
      %p104 = scmp.ne.s32.totalorder %s89, %s103
      %p105 = scmp.eq.s32.totalorder %s23, 0
      %p106 = por %p104, %p105
      %s107 = ssub.s32 %s24, %s36
      %s108 = ssub.s32 %s25, %s32
      %s109 = sor.u32 %s107, %s108
      %p110 = scmp.eq.s32.totalorder %s109, 0
      %s112 = sadd.s32 %s111, 1
      %s113 = scalar_select %p110, %s111, %s112
      %p116 = pneg %p110
      %p117 = scmp.eq.s32.totalorder %s17, 3
      %p118 = por %p116, %p117
      %p119 = scmp.ne.s32.totalorder %s111, %s114
      %p120 = scmp.eq.s32.totalorder %s17, 0
      %p121 = por %p119, %p120
      %p122 = scmp.ne.s32.totalorder %s111, %s114
      %p123 = scmp.eq.s32.totalorder %s22, 3
      %p124 = por %p122, %p123
      %p125 = scmp.ne.s32.totalorder %s114, %s115
      %p126 = scmp.eq.s32.totalorder %s22, 0
      %p127 = por %p125, %p126
      %p128 = scmp.ne.s32.totalorder %s114, %s115
      %p129 = scmp.eq.s32.totalorder %s23, 3
      %p130 = por %p128, %p129
      %p132 = scmp.ne.s32.totalorder %s115, %s131
      %p133 = scmp.eq.s32.totalorder %s23, 0
      %p134 = por %p132, %p133
      %p135 = scmp.le.s32.totalorder 1, %s17
      %p136 = scmp.lt.s32.totalorder %s17, 5
      %p137 = pnand %p135, %p136
      %p138 = pneg %p137
      // Predicated region
      $region9: #{conv_block_forward.3} parent=5 // pred_check
        _
      $region10: #{conv_block_forward.3} parent=5 // pred_check_branch
        %140 = sbr.rel (%p137) target = $region12
      $region11: #{conv_block_forward.3} parent=5 // pred_region
        %s141 = ssub.s32 %s17, 1
        // Predicated region
        $region13: #{conv_block_forward.3} parent=11 // pred_check
          %p142 = pneg %p78
        $region14: #{conv_block_forward.3} parent=11 // pred_check_branch
          %144 = sbr.rel (%p142) target = $region16
        $region15: #{conv_block_forward.3} parent=11 // pred_region
          %s146 = ssub.s32 16, 16
          %147 = vsyncadd [#allocation5], %s146
          %s149 = sshll.u32 %s1, 4
          %s150 = int_to_ptr.vmem [resolvable:$true] %s149
          %152 = dma.vmem_to_smem %s150, 16, [#allocation6], [#allocation5]
        $region16: #{conv_block_forward.3} parent=11 // pred_fallthru
          _
        // Predicated region
        $region17: #{conv_block_forward.3} parent=11 // pred_check
          %p153 = pneg %p99
        $region18: #{conv_block_forward.3} parent=11 // pred_check_branch
          %155 = sbr.rel (%p153) target = $region20
        $region19: #{conv_block_forward.3} parent=11 // pred_region
          %s157 = ssub.s32 16, 16
          %158 = vsyncadd [#allocation8], %s157
          %s160 = sshll.u32 %s2, 4
          %s161 = int_to_ptr.vmem [resolvable:$true] %s160
          %163 = dma.vmem_to_smem %s161, 16, [#allocation7], [#allocation8]
        $region20: #{conv_block_forward.3} parent=11 // pred_fallthru
          _
      $region12: #{conv_block_forward.3} parent=5 // pred_fallthru
        _
      %p164 = scmp.lt.s32.totalorder %s17, 4
      // Predicated region
      $region21: #{conv_block_forward.3} parent=5 // pred_check
        %p165 = pneg %p164
      $region22: #{conv_block_forward.3} parent=5 // pred_check_branch
        %167 = sbr.rel (%p165) target = $region24
      $region23: #{conv_block_forward.3} parent=5 // pred_region
        // Predicated region
        $region25: #{conv_block_forward.3} parent=23 // pred_check
          %p168 = pneg %p51
        $region26: #{conv_block_forward.3} parent=23 // pred_check_branch
          %170 = sbr.rel (%p168) target = $region28
        $region27: #{conv_block_forward.3} parent=23 // pred_region
          %s171 = sand.u32 %s41, 1
          %s172 = scalar_lea.sflag [#allocation3], %s171
          %s173 = sand.u32 %s41, 1
          %s174 = smul.addr %s173, 32
          %s175 = scalar_lea.vmem [#allocation2], %s174
          %s177 = ssub.s32 512, 512
          %178 = vsyncadd %s172, %s177
          %s179 = smul.addr %s24, 8
          %s180 = sadd.s32 %s25, %s179
          %s181 = smul.addr %s180, 128
          %s182 = scalar_lea.hbm %s0, %s181
          %s183 = sshll.u32 %s175, 4
          %s184 = int_to_ptr.vmem [resolvable:$true] %s183
          %189 = dma.hbm_to_vmem [thread:$0]  %s182, 512, %s184, %s172, 256, 128, 8
        $region28: #{conv_block_forward.3} parent=23 // pred_fallthru
          _
      $region24: #{conv_block_forward.3} parent=5 // pred_fallthru
        _
      %p190 = scmp.le.s32.totalorder 1, %s17
      %p191 = scmp.lt.s32.totalorder %s17, 5
      %p192 = pnand %p190, %p191
      %p193 = pneg %p192
      // Predicated region
      $region29: #{conv_block_forward.3} parent=5 // pred_check
        _
      $region30: #{conv_block_forward.3} parent=5 // pred_check_branch
        %195 = sbr.rel (%p192) target = $region32
      $region31: #{conv_block_forward.3} parent=5 // pred_region
        %s196 = ssub.s32 %s17, 1
        %s197 = sand.u32 %s44, 1
        %s198 = scalar_lea.sflag [#allocation3], %s197
        %s199 = sand.u32 %s44, 1
        %s200 = smul.addr %s199, 32
        %s201 = scalar_lea.vmem [#allocation2], %s200
        // Predicated region
        $region33: #{conv_block_forward.3} parent=31 // pred_check
          %p202 = pneg %p57
        $region34: #{conv_block_forward.3} parent=31 // pred_check_branch
          %204 = sbr.rel (%p202) target = $region36
        $region35: #{conv_block_forward.3} parent=31 // pred_region
          %205 = dma.done %s198, 512
        $region36: #{conv_block_forward.3} parent=31 // pred_fallthru
          _
        // Predicated region
        $region37: #{conv_block_forward.3} parent=31 // pred_check
          %p206 = pneg %p78
        $region38: #{conv_block_forward.3} parent=31 // pred_check_branch
          %208 = sbr.rel (%p206) target = $region40
        $region39: #{conv_block_forward.3} parent=31 // pred_region
          %209 = dma.done [#allocation5], 16
        $region40: #{conv_block_forward.3} parent=31 // pred_fallthru
          _
        // Predicated region
        $region41: #{conv_block_forward.3} parent=31 // pred_check
          %p210 = pneg %p99
        $region42: #{conv_block_forward.3} parent=31 // pred_check_branch
          %212 = sbr.rel (%p210) target = $region44
        $region43: #{conv_block_forward.3} parent=31 // pred_region
          %213 = dma.done [#allocation8], 16
        $region44: #{conv_block_forward.3} parent=31 // pred_fallthru
          _
        %214 = sfence
        %s215 = sand.u32 %s44, 1
        %s216 = scalar_lea.sflag [#allocation3], %s215
        %s217 = sand.u32 %s44, 1
        %s218 = smul.addr %s217, 32
        %s219 = scalar_lea.vmem [#allocation2], %s218
        %p220 = pneg %p57
        %p221 = pneg %p54
        %p222 = pneg %p78
        %p223 = pneg %p75
        %p224 = pneg %p99
        %p225 = pneg %p96
        %p226 = pneg %p127
        %p227 = pneg %p124
        %s228 = sand.u32 %s114, 1
        %s229 = scalar_lea.sflag [#allocation4], %s228
        %s230 = sand.u32 %s114, 1
        %s231 = smul.addr %s230, 32
        %s232 = scalar_lea.vmem [#allocation9], %s231
        %v233 = vld [vmem:[%s201] sm:$0xff]
        %s234 = sld [smem:[#allocation6]]
        %v235 = vstv %s234
        %v236 = vmul.f32 %v233, %v235
        %s237 = sld [smem:[#allocation7]]
        %v238 = vstv %s237
        %v239 = vadd.f32 %v236, %v238
        %vm240 = vcmask 130048
        %241 = vst.msk [vmem:[%s232] sm:$0xff] %vm240, %v239
        %s242 = scalar_lea.vmem %s201, 8 [#allocation2]
        %v243 = vld [vmem:[%s242] sm:$0xff]
        %s244 = sld [smem:[#allocation6 + $0x1]]
        %v245 = vstv %s244
        %v246 = vmul.f32 %v243, %v245
        %s247 = sld [smem:[#allocation7 + $0x1]]
        %v248 = vstv %s247
        %v249 = vadd.f32 %v246, %v248
        %s250 = scalar_lea.vmem %s232, 8 [#allocation9]
        %251 = vst.msk [vmem:[%s250] sm:$0xff] %vm240, %v249
        %s252 = scalar_lea.vmem %s201, 16 [#allocation2]
        %v253 = vld [vmem:[%s252] sm:$0xff]
        %s254 = sld [smem:[#allocation6 + $0x2]]
        %v255 = vstv %s254
        %v256 = vmul.f32 %v253, %v255
        %s257 = sld [smem:[#allocation7 + $0x2]]
        %v258 = vstv %s257
        %v259 = vadd.f32 %v256, %v258
        %s260 = scalar_lea.vmem %s232, 16 [#allocation9]
        %261 = vst.msk [vmem:[%s260] sm:$0xff] %vm240, %v259
        %s262 = scalar_lea.vmem %s201, 24 [#allocation2]
        %v263 = vld [vmem:[%s262] sm:$0xff]
        %s264 = sld [smem:[#allocation6 + $0x3]]
        %v265 = vstv %s264
        %v266 = vmul.f32 %v263, %v265
        %s267 = sld [smem:[#allocation7 + $0x3]]
        %v268 = vstv %s267
        %v269 = vadd.f32 %v266, %v268
        %s270 = scalar_lea.vmem %s232, 24 [#allocation9]
        %271 = vst.msk [vmem:[%s270] sm:$0xff] %vm240, %v269
        %s272 = sand.u32 %s114, 1
        %s273 = scalar_lea.sflag [#allocation4], %s272
        %s274 = sand.u32 %s114, 1
        %s275 = smul.addr %s274, 32
        %s276 = scalar_lea.vmem [#allocation9], %s275
        // Predicated region
        $region45: #{conv_block_forward.3} parent=31 // pred_check
          %p277 = pneg %p124
        $region46: #{conv_block_forward.3} parent=31 // pred_check_branch
          %279 = sbr.rel (%p277) target = $region48
        $region47: #{conv_block_forward.3} parent=31 // pred_region
          %s281 = ssub.s32 512, 512
          %282 = vsyncadd %s273, %s281
          %s283 = smul.addr %s26, 8
          %s284 = sadd.s32 %s27, %s283
          %s285 = smul.addr %s284, 128
          %s286 = scalar_lea.hbm %s3, %s285
          %s287 = sshll.u32 %s276, 4
          %s288 = int_to_ptr.vmem [resolvable:$true] %s287
          %293 = dma.vmem_to_hbm [thread:$0]  %s288, 512, %s286, %s273, 128, 256, 8
        $region48: #{conv_block_forward.3} parent=31 // pred_fallthru
          _
      $region32: #{conv_block_forward.3} parent=5 // pred_fallthru
        _
      %p294 = scmp.le.s32.totalorder 2, %s17
      // Predicated region
      $region49: #{conv_block_forward.3} parent=5 // pred_check
        %p295 = pneg %p294
      $region50: #{conv_block_forward.3} parent=5 // pred_check_branch
        %297 = sbr.rel (%p295) target = $region52
      $region51: #{conv_block_forward.3} parent=5 // pred_region
        %s298 = ssub.s32 %s17, 2
        // Predicated region
        $region53: #{conv_block_forward.3} parent=51 // pred_check
          %p299 = pneg %p130
        $region54: #{conv_block_forward.3} parent=51 // pred_check_branch
          %301 = sbr.rel (%p299) target = $region56
        $region55: #{conv_block_forward.3} parent=51 // pred_region
          %s302 = sand.u32 %s115, 1
          %s303 = scalar_lea.sflag [#allocation4], %s302
          %s304 = sand.u32 %s115, 1
          %s305 = smul.addr %s304, 32
          %s306 = scalar_lea.vmem [#allocation9], %s305
          %307 = dma.done %s303, 512
        $region56: #{conv_block_forward.3} parent=51 // pred_fallthru
          _
      $region52: #{conv_block_forward.3} parent=5 // pred_fallthru
        _
    $region6: #{conv_block_forward.3} parent=1 // loop_footer
      %s21 = sadd.s32 1, %s17
    $region7: #{conv_block_forward.3} parent=1 // loop_footer_branch
      %16 = sbr.rel target = $region3
    $region8: #{conv_block_forward.3} parent=1 // loop_exit
      _
    %308 = vsyncpa [#allocation3], 1
    %s309 = scalar_lea.sflag [#allocation3], 1
    %310 = vsyncpa %s309, 1
    %311 = vsyncpa [#allocation4], 1
    %s312 = scalar_lea.sflag [#allocation4], 1
    %313 = vsyncpa %s312, 1
    %314 = vsyncpa [#allocation5], 1
    %s315 = scalar_lea.sflag [#allocation5], 1
    %316 = vsyncpa %s315, 1
    %317 = vsyncpa [#allocation8], 1

// kernel: conv_block_forward.2
$region0: #{conv_block_forward.2}
  #allocation0 [shape = 'u32[]', space=smem, size = 0x4, offset = 0x4, fixed_abs, tag = 'smem constant byte address 0x4 - core index']
  #allocation1 [shape = 'u32[144,128]{1,0:T(1,128)}', space=vmem, size = 0x12000, scoped, tag = 'internal scratch']
  %s0 = inlined_call_operand.vmem [shape: f32[2,4,18,18], index: 0, kind: input, shape index: {}]
  %s1 = inlined_call_operand.vmem [shape: f32[144], index: 1, kind: input, shape index: {}]
  %s2 = inlined_call_operand.vmem [shape: f32[4], index: 2, kind: input, shape index: {}]
  %s3 = inlined_call_operand.hbm [shape: f32[2,4,16,16], index: 3, kind: output, shape index: {0}]
  %s4 = inlined_call_operand.vmem [shape: f32[2,2,4,16], index: 4, kind: output, shape index: {1}]
  %s5 = inlined_call_operand.vmem [shape: f32[2,2,4,16], index: 5, kind: output, shape index: {2}]
  %6 = xla_tuple %s3, %s4, %s5
  %s7 = sld [smem:[#allocation0]]
  $region69: #{conv_block_forward.2} parent=0
    _
  %s9 = ssub.s32 1, %s7
  %s10 = scalar_select 0, %s9, %s7
  $region1: #{conv_block_forward.2} parent=0
    #allocation2 [shape = 'u8[1024]{0}', space=smem, size = 0x400, scoped, tag = 'input window, operand 1, single buffered']
    #allocation3 [shape = 's32[2]{0}', space=sflag, size = 0x8, scoped, tag = 'scoped memory for conv_block_forward.2']
    #allocation4 [shape = 's32[2]{0}', space=sflag, size = 0x8, scoped, tag = 'scoped memory for conv_block_forward.2']
    #allocation5 [shape = 'u8[512]{0}', space=smem, size = 0x200, scoped, tag = 'input window, operand 2, single buffered']
    #allocation6 [shape = 's32[1]{0}', space=sflag, size = 0x4, scoped, tag = 'scoped memory for conv_block_forward.2']
    #allocation7 [shape = 'u8[32768]{0}', space=vmem, size = 0x8000, scoped, tag = 'output window, operand 0']
    %11 = vsyncpa [#allocation4], 0
    %12 = vsyncpa [#allocation6], 0
    %13 = vsyncpa [#allocation3], 0
    %s14 = scalar_lea.sflag [#allocation3], 1
    %15 = vsyncpa %s14, 0
    loop: start=0, step=1, limit=6
    $region2: #{conv_block_forward.2} parent=1 // loop_pre_header
      _
    $region3: #{conv_block_forward.2} parent=1 // loop_header
      %s17 = sphi 0, %s21
      %p18 = scmp.ge.s32.totalorder %s17, 6
      %s24 = sphi 0, %s36
      %s25 = sphi 0, %s32
      %s26 = sphi 0, %s24
      %s27 = sphi 0, %s25
      %s28 = sphi 0, %s26
      %s29 = sphi 0, %s27
      %s39 = sphi 0, %s41
      %s42 = sphi 0, %s39
      %s43 = sphi 0, %s42
      %s59 = sphi 0, %s43
      %s63 = sphi 0, %s63
      %s65 = sphi 0, %s63
      %s66 = sphi 0, %s65
      %s80 = sphi 0, %s66
      %s84 = sphi 0, %s84
      %s86 = sphi 0, %s84
      %s87 = sphi 0, %s86
      %s101 = sphi 0, %s87
      %s109 = sphi 0, %s111
      %s112 = sphi 0, %s109
      %s113 = sphi 0, %s112
      %s129 = sphi 0, %s113
      %s137 = sphi 0, %s139
      %s140 = sphi 0, %s137
      %s141 = sphi 0, %s140
      %s157 = sphi 0, %s141
      %s165 = sphi 0, %s167
      %s168 = sphi 0, %s165
      %s169 = sphi 0, %s168
      %s185 = sphi 0, %s169
    $region4: #{conv_block_forward.2} parent=1 // loop_header_branch
      %20 = sbr.rel (%p18) target = $region8
    $region5: #{conv_block_forward.2} parent=1 // loop_body
      %s22 = ssub.s32 %s17, 1
      %s23 = ssub.s32 %s17, 2
      %s30 = sadd.s32 1, %s25
      %p31 = scmp.ge.s32.totalorder %s30, 2
      %s32 = scalar_select %p31, 0, %s30
      %s33 = sadd.s32 1, %s24
      %s34 = scalar_select %p31, %s33, %s24
      %p35 = scmp.ge.s32.totalorder %s34, 2
      %s36 = scalar_select %p35, 0, %s34
      %s37 = ssub.s32 %s24, %s36
      %p38 = scmp.eq.s32.totalorder %s37, 0
      %s40 = sadd.s32 %s39, 1
      %s41 = scalar_select %p38, %s39, %s40
      %p44 = pneg %p38
      %p45 = scmp.eq.s32.totalorder %s17, 3
      %p46 = por %p44, %p45
      %p47 = scmp.ne.s32.totalorder %s39, %s42
      %p48 = scmp.eq.s32.totalorder %s17, 0
      %p49 = por %p47, %p48
      %p50 = scmp.ne.s32.totalorder %s39, %s42
      %p51 = scmp.eq.s32.totalorder %s22, 3
      %p52 = por %p50, %p51
      %p53 = scmp.ne.s32.totalorder %s42, %s43
      %p54 = scmp.eq.s32.totalorder %s22, 0
      %p55 = por %p53, %p54
      %p56 = scmp.ne.s32.totalorder %s42, %s43
      %p57 = scmp.eq.s32.totalorder %s23, 3
      %p58 = por %p56, %p57
      %p60 = scmp.ne.s32.totalorder %s43, %s59
      %p61 = scmp.eq.s32.totalorder %s23, 0
      %p62 = por %p60, %p61
      %s64 = sadd.s32 %s63, 1
      %p67 = scmp.eq.s32.totalorder %s17, 3
      %p68 = scmp.ne.s32.totalorder %s63, %s65
      %p69 = scmp.eq.s32.totalorder %s17, 0
      %p70 = por %p68, %p69
      %p71 = scmp.ne.s32.totalorder %s63, %s65
      %p72 = scmp.eq.s32.totalorder %s22, 3
      %p73 = por %p71, %p72
      %p74 = scmp.ne.s32.totalorder %s65, %s66
      %p75 = scmp.eq.s32.totalorder %s22, 0
      %p76 = por %p74, %p75
      %p77 = scmp.ne.s32.totalorder %s65, %s66
      %p78 = scmp.eq.s32.totalorder %s23, 3
      %p79 = por %p77, %p78
      %p81 = scmp.ne.s32.totalorder %s66, %s80
      %p82 = scmp.eq.s32.totalorder %s23, 0
      %p83 = por %p81, %p82
      %s85 = sadd.s32 %s84, 1
      %p88 = scmp.eq.s32.totalorder %s17, 3
      %p89 = scmp.ne.s32.totalorder %s84, %s86
      %p90 = scmp.eq.s32.totalorder %s17, 0
      %p91 = por %p89, %p90
      %p92 = scmp.ne.s32.totalorder %s84, %s86
      %p93 = scmp.eq.s32.totalorder %s22, 3
      %p94 = por %p92, %p93
      %p95 = scmp.ne.s32.totalorder %s86, %s87
      %p96 = scmp.eq.s32.totalorder %s22, 0
      %p97 = por %p95, %p96
      %p98 = scmp.ne.s32.totalorder %s86, %s87
      %p99 = scmp.eq.s32.totalorder %s23, 3
      %p100 = por %p98, %p99
      %p102 = scmp.ne.s32.totalorder %s87, %s101
      %p103 = scmp.eq.s32.totalorder %s23, 0
      %p104 = por %p102, %p103
      %s105 = ssub.s32 %s24, %s36
      %s106 = ssub.s32 %s25, %s32
      %s107 = sor.u32 %s105, %s106
      %p108 = scmp.eq.s32.totalorder %s107, 0
      %s110 = sadd.s32 %s109, 1
      %s111 = scalar_select %p108, %s109, %s110
      %p114 = pneg %p108
      %p115 = scmp.eq.s32.totalorder %s17, 3
      %p116 = por %p114, %p115
      %p117 = scmp.ne.s32.totalorder %s109, %s112
      %p118 = scmp.eq.s32.totalorder %s17, 0
      %p119 = por %p117, %p118
      %p120 = scmp.ne.s32.totalorder %s109, %s112
      %p121 = scmp.eq.s32.totalorder %s22, 3
      %p122 = por %p120, %p121
      %p123 = scmp.ne.s32.totalorder %s112, %s113
      %p124 = scmp.eq.s32.totalorder %s22, 0
      %p125 = por %p123, %p124
      %p126 = scmp.ne.s32.totalorder %s112, %s113
      %p127 = scmp.eq.s32.totalorder %s23, 3
      %p128 = por %p126, %p127
      %p130 = scmp.ne.s32.totalorder %s113, %s129
      %p131 = scmp.eq.s32.totalorder %s23, 0
      %p132 = por %p130, %p131
      %s133 = ssub.s32 %s24, %s36
      %s134 = ssub.s32 %s25, %s32
      %s135 = sor.u32 %s133, %s134
      %p136 = scmp.eq.s32.totalorder %s135, 0
      %s138 = sadd.s32 %s137, 1
      %s139 = scalar_select %p136, %s137, %s138
      %p142 = pneg %p136
      %p143 = scmp.eq.s32.totalorder %s17, 3
      %p144 = por %p142, %p143
      %p145 = scmp.ne.s32.totalorder %s137, %s140
      %p146 = scmp.eq.s32.totalorder %s17, 0
      %p147 = por %p145, %p146
      %p148 = scmp.ne.s32.totalorder %s137, %s140
      %p149 = scmp.eq.s32.totalorder %s22, 3
      %p150 = por %p148, %p149
      %p151 = scmp.ne.s32.totalorder %s140, %s141
      %p152 = scmp.eq.s32.totalorder %s22, 0
      %p153 = por %p151, %p152
      %p154 = scmp.ne.s32.totalorder %s140, %s141
      %p155 = scmp.eq.s32.totalorder %s23, 3
      %p156 = por %p154, %p155
      %p158 = scmp.ne.s32.totalorder %s141, %s157
      %p159 = scmp.eq.s32.totalorder %s23, 0
      %p160 = por %p158, %p159
      %s161 = ssub.s32 %s24, %s36
      %s162 = ssub.s32 %s25, %s32
      %s163 = sor.u32 %s161, %s162
      %p164 = scmp.eq.s32.totalorder %s163, 0
      %s166 = sadd.s32 %s165, 1
      %s167 = scalar_select %p164, %s165, %s166
      %p170 = pneg %p164
      %p171 = scmp.eq.s32.totalorder %s17, 3
      %p172 = por %p170, %p171
      %p173 = scmp.ne.s32.totalorder %s165, %s168
      %p174 = scmp.eq.s32.totalorder %s17, 0
      %p175 = por %p173, %p174
      %p176 = scmp.ne.s32.totalorder %s165, %s168
      %p177 = scmp.eq.s32.totalorder %s22, 3
      %p178 = por %p176, %p177
      %p179 = scmp.ne.s32.totalorder %s168, %s169
      %p180 = scmp.eq.s32.totalorder %s22, 0
      %p181 = por %p179, %p180
      %p182 = scmp.ne.s32.totalorder %s168, %s169
      %p183 = scmp.eq.s32.totalorder %s23, 3
      %p184 = por %p182, %p183
      %p186 = scmp.ne.s32.totalorder %s169, %s185
      %p187 = scmp.eq.s32.totalorder %s23, 0
      %p188 = por %p186, %p187
      %p189 = scmp.le.s32.totalorder 1, %s17
      %p190 = scmp.lt.s32.totalorder %s17, 5
      %p191 = pnand %p189, %p190
      %p192 = pneg %p191
      // Predicated region
      $region9: #{conv_block_forward.2} parent=5 // pred_check
        _
      $region10: #{conv_block_forward.2} parent=5 // pred_check_branch
        %194 = sbr.rel (%p191) target = $region12
      $region11: #{conv_block_forward.2} parent=5 // pred_region
        %s195 = ssub.s32 %s17, 1
        // Predicated region
        $region13: #{conv_block_forward.2} parent=11 // pred_check
          %p196 = pneg %p76
        $region14: #{conv_block_forward.2} parent=11 // pred_check_branch
          %198 = sbr.rel (%p196) target = $region16
        $region15: #{conv_block_forward.2} parent=11 // pred_region
          %s200 = ssub.s32 32, 32
          %201 = vsyncadd [#allocation4], %s200
          %s203 = sshll.u32 %s1, 4
          %s204 = int_to_ptr.vmem [resolvable:$true] %s203
          %206 = dma.vmem_to_smem %s204, 32, [#allocation2], [#allocation4]
        $region16: #{conv_block_forward.2} parent=11 // pred_fallthru
          _
        // Predicated region
        $region17: #{conv_block_forward.2} parent=11 // pred_check
          %p207 = pneg %p97
        $region18: #{conv_block_forward.2} parent=11 // pred_check_branch
          %209 = sbr.rel (%p207) target = $region20
        $region19: #{conv_block_forward.2} parent=11 // pred_region
          %s211 = ssub.s32 16, 16
          %212 = vsyncadd [#allocation6], %s211
          %s214 = sshll.u32 %s2, 4
          %s215 = int_to_ptr.vmem [resolvable:$true] %s214
          %217 = dma.vmem_to_smem %s215, 16, [#allocation5], [#allocation6]
        $region20: #{conv_block_forward.2} parent=11 // pred_fallthru
          _
      $region12: #{conv_block_forward.2} parent=5 // pred_fallthru
        _
      %p218 = scmp.lt.s32.totalorder %s17, 4
      // Predicated region
      $region21: #{conv_block_forward.2} parent=5 // pred_check
        %p219 = pneg %p218
      $region22: #{conv_block_forward.2} parent=5 // pred_check_branch
        %221 = sbr.rel (%p219) target = $region24
      $region23: #{conv_block_forward.2} parent=5 // pred_region
        // Predicated region
        $region25: #{conv_block_forward.2} parent=23 // pred_check
          %p222 = pneg %p49
        $region26: #{conv_block_forward.2} parent=23 // pred_check_branch
          %224 = sbr.rel (%p222) target = $region28
        $region27: #{conv_block_forward.2} parent=23 // pred_region
          %p225 = scmp.lt.s32.totalorder %s24, 1
          %s226 = scalar_select %p225, %s24, 1
          %s227 = smul.addr %s226, 12
          %s228 = smul.addr %s227, 8
          %s229 = scalar_lea.vmem %s0, %s228
        $region28: #{conv_block_forward.2} parent=23 // pred_fallthru
          _
      $region24: #{conv_block_forward.2} parent=5 // pred_fallthru
        _
      %p230 = scmp.le.s32.totalorder 1, %s17
      %p231 = scmp.lt.s32.totalorder %s17, 5
      %p232 = pnand %p230, %p231
      %p233 = pneg %p232
      // Predicated region
      $region29: #{conv_block_forward.2} parent=5 // pred_check
        _
      $region30: #{conv_block_forward.2} parent=5 // pred_check_branch
        %235 = sbr.rel (%p232) target = $region32
      $region31: #{conv_block_forward.2} parent=5 // pred_region
        %s236 = ssub.s32 %s17, 1
        // Predicated region
        $region33: #{conv_block_forward.2} parent=31 // pred_check
          %p237 = pneg %p76
        $region34: #{conv_block_forward.2} parent=31 // pred_check_branch
          %239 = sbr.rel (%p237) target = $region36
        $region35: #{conv_block_forward.2} parent=31 // pred_region
          %240 = dma.done [#allocation4], 32
        $region36: #{conv_block_forward.2} parent=31 // pred_fallthru
          _
        // Predicated region
        $region37: #{conv_block_forward.2} parent=31 // pred_check
          %p241 = pneg %p97
        $region38: #{conv_block_forward.2} parent=31 // pred_check_branch
          %243 = sbr.rel (%p241) target = $region40
        $region39: #{conv_block_forward.2} parent=31 // pred_region
          %244 = dma.done [#allocation6], 16
        $region40: #{conv_block_forward.2} parent=31 // pred_fallthru
          _
        %245 = sfence
        %p246 = scmp.lt.s32.totalorder %s26, 1
        %s247 = scalar_select %p246, %s26, 1
        %s248 = smul.addr %s247, 12
        %s249 = smul.addr %s248, 8
        %s250 = scalar_lea.vmem %s0, %s249
        %p251 = pneg %p55
        %p252 = pneg %p52
        %p253 = pneg %p76
        %p254 = pneg %p73
        %p255 = pneg %p97
        %p256 = pneg %p94
        %p257 = pneg %p125
        %p258 = pneg %p122
        %s259 = sand.u32 %s112, 1
        %s260 = scalar_lea.sflag [#allocation3], %s259
        %s261 = sand.u32 %s112, 1
        %s262 = smul.addr %s261, 32
        %s263 = scalar_lea.vmem [#allocation7], %s262
        %p264 = pneg %p153
        %p265 = pneg %p150
        %p266 = scmp.lt.s32.totalorder %s26, 1
        %s267 = scalar_select %p266, %s26, 1
        %p268 = scmp.lt.s32.totalorder %s27, 1
        %s269 = scalar_select %p268, %s27, 1
        %s270 = smul.addr %s267, 2
        %s271 = sadd.s32 %s269, %s270
        %s272 = smul.addr %s271, 4
        %s273 = scalar_lea.vmem %s4, %s272
        %p274 = pneg %p181
        %p275 = pneg %p178
        %p276 = scmp.lt.s32.totalorder %s26, 1
        %s277 = scalar_select %p276, %s26, 1
        %p278 = scmp.lt.s32.totalorder %s27, 1
        %s279 = scalar_select %p278, %s27, 1
        %s280 = smul.addr %s277, 2
        %s281 = sadd.s32 %s279, %s280
        %s282 = smul.addr %s281, 4
        %s283 = scalar_lea.vmem %s5, %s282
        %p284 = scmp.lt.s32.totalorder %s26, 1
        %s285 = scalar_select %p284, %s26, 1
        %s286 = smul.addr %s285, 12
        %s287 = smul.addr %s286, 8
        %s288 = scalar_lea.vmem %s0, %s287
        %p289 = scmp.lt.s32.totalorder %s26, 1
        %s290 = scalar_select %p289, %s26, 1
        %p291 = scmp.lt.s32.totalorder %s27, 1
        %s292 = scalar_select %p291, %s27, 1
        %s293 = smul.addr %s290, 2
        %s294 = sadd.s32 %s292, %s293
        %s295 = smul.addr %s294, 4
        %s296 = scalar_lea.vmem %s4, %s295
        %p297 = scmp.lt.s32.totalorder %s26, 1
        %s298 = scalar_select %p297, %s26, 1
        %p299 = scmp.lt.s32.totalorder %s27, 1
        %s300 = scalar_select %p299, %s27, 1
        %s301 = smul.addr %s298, 2
        %s302 = sadd.s32 %s300, %s301
        %s303 = smul.addr %s302, 4
        %s304 = scalar_lea.vmem %s5, %s303
        %s305 = smul.u32 %s27, 8
        %s306 = scalar_lea.vmem %s288, %s305
        %v307 = vld [vmem:[%s306] sm:$0xff]
        %v308 = vld [vmem:[%s306 + $0x8] sm:$0x3]
        %s309 = sld [smem:[#allocation2]]
        %v310 = vstv %s309
        %v311 = vmul.f32 %v307, %v310
        %s312 = sld [smem:[#allocation2 + $0x24]]
        %v313 = vstv %s312
        %v314 = vmul.f32 %v307, %v313
        %s315 = sld [smem:[#allocation2 + $0x48]]
        %v316 = vstv %s315
        %v317 = vmul.f32 %v307, %v316
        %s318 = sld [smem:[#allocation2 + $0x6c]]
        %v319 = vstv %s318
        %v320 = vmul.f32 %v307, %v319
        %s321 = sld [smem:[#allocation2 + $0x1]]
        %v322 = vstv %s321
        %v323 = vmul.f32 %v307, %v322
        %325 = vrot.lane.b32.xlu0 %v323, 127
        %v326 = vpop.permute.xlu0 %325
        %v328 = vadd.f32 %v311, %v326
        %s329 = sld [smem:[#allocation2 + $0x25]]
        %v330 = vstv %s329
        %v331 = vmul.f32 %v307, %v330
        %333 = vrot.lane.b32.xlu0 %v331, 127
        %v334 = vpop.permute.xlu0 %333
        %v336 = vadd.f32 %v314, %v334
        %s337 = sld [smem:[#allocation2 + $0x49]]
        %v338 = vstv %s337
        %v339 = vmul.f32 %v307, %v338
        %341 = vrot.lane.b32.xlu0 %v339, 127
        %v342 = vpop.permute.xlu0 %341
        %v344 = vadd.f32 %v317, %v342
        %s345 = sld [smem:[#allocation2 + $0x6d]]
        %v346 = vstv %s345
        %v347 = vmul.f32 %v307, %v346
        %349 = vrot.lane.b32.xlu0 %v347, 127
        %v350 = vpop.permute.xlu0 %349
        %v352 = vadd.f32 %v320, %v350
        %s353 = sld [smem:[#allocation2 + $0x2]]
        %v354 = vstv %s353
        %v355 = vmul.f32 %v307, %v354
        %357 = vrot.lane.b32.xlu0 %v355, 126
        %v358 = vpop.permute.xlu0 %357
        %v360 = vadd.f32 %v328, %v358
        %s361 = sld [smem:[#allocation2 + $0x26]]
        %v362 = vstv %s361
        %v363 = vmul.f32 %v307, %v362
        %365 = vrot.lane.b32.xlu0 %v363, 126
        %v366 = vpop.permute.xlu0 %365
        %v368 = vadd.f32 %v336, %v366
        %s369 = sld [smem:[#allocation2 + $0x4a]]
        %v370 = vstv %s369
        %v371 = vmul.f32 %v307, %v370
        %373 = vrot.lane.b32.xlu0 %v371, 126
        %v374 = vpop.permute.xlu0 %373
        %v376 = vadd.f32 %v344, %v374
        %s377 = sld [smem:[#allocation2 + $0x6e]]
        %v378 = vstv %s377
        %v379 = vmul.f32 %v307, %v378
        %381 = vrot.lane.b32.xlu0 %v379, 126
        %v382 = vpop.permute.xlu0 %381
        %v384 = vadd.f32 %v352, %v382
        %s385 = sld [smem:[#allocation2 + $0x3]]
        %v386 = vstv %s385
        %v387 = vmul.f32 %v307, %v386
        %v388 = vmul.f32 %v308, %v386
        %vm391 = vcmask 1046528
        %v392 = vrot.slane %v387, 1
        %v393 = vrot.slane %v388, 1
        %v394 = vsel %vm391, %v392, %v393
        %v396 = vadd.f32 %v360, %v394
        %s397 = sld [smem:[#allocation2 + $0x27]]
        %v398 = vstv %s397
        %v399 = vmul.f32 %v307, %v398
        %v400 = vmul.f32 %v308, %v398
        %v403 = vrot.slane %v399, 1
        %v404 = vrot.slane %v400, 1
        %v405 = vsel %vm391, %v403, %v404
        %v407 = vadd.f32 %v368, %v405
        %s408 = sld [smem:[#allocation2 + $0x4b]]
        %v409 = vstv %s408
        %v410 = vmul.f32 %v307, %v409
        %v411 = vmul.f32 %v308, %v409
        %v414 = vrot.slane %v410, 1
        %v415 = vrot.slane %v411, 1
        %v416 = vsel %vm391, %v414, %v415
        %v418 = vadd.f32 %v376, %v416
        %s419 = sld [smem:[#allocation2 + $0x6f]]
        %v420 = vstv %s419
        %v421 = vmul.f32 %v307, %v420
        %v422 = vmul.f32 %v308, %v420
        %v425 = vrot.slane %v421, 1
        %v426 = vrot.slane %v422, 1
        %v427 = vsel %vm391, %v425, %v426
        %v429 = vadd.f32 %v384, %v427
        %s430 = sld [smem:[#allocation2 + $0x4]]
        %v431 = vstv %s430
        %v432 = vmul.f32 %v307, %v431
        %v433 = vmul.f32 %v308, %v431
        %v436 = vrot.slane %v432, 1
        %v437 = vrot.slane %v433, 1
        %v438 = vsel %vm391, %v436, %v437
        %439 = vrot.lane.b32.xlu0 %v438, 127
        %v440 = vpop.permute.xlu0 %439
        %v442 = vadd.f32 %v396, %v440
        %s443 = sld [smem:[#allocation2 + $0x28]]
        %v444 = vstv %s443
        %v445 = vmul.f32 %v307, %v444
        %v446 = vmul.f32 %v308, %v444
        %v449 = vrot.slane %v445, 1
        %v450 = vrot.slane %v446, 1
        %v451 = vsel %vm391, %v449, %v450
        %452 = vrot.lane.b32.xlu0 %v451, 127
        %v453 = vpop.permute.xlu0 %452
        %v455 = vadd.f32 %v407, %v453
        %s456 = sld [smem:[#allocation2 + $0x4c]]
        %v457 = vstv %s456
        %v458 = vmul.f32 %v307, %v457
        %v459 = vmul.f32 %v308, %v457
        %v462 = vrot.slane %v458, 1
        %v463 = vrot.slane %v459, 1
        %v464 = vsel %vm391, %v462, %v463
        %465 = vrot.lane.b32.xlu0 %v464, 127
        %v466 = vpop.permute.xlu0 %465
        %v468 = vadd.f32 %v418, %v466
        %s469 = sld [smem:[#allocation2 + $0x70]]
        %v470 = vstv %s469
        %v471 = vmul.f32 %v307, %v470
        %v472 = vmul.f32 %v308, %v470
        %v475 = vrot.slane %v471, 1
        %v476 = vrot.slane %v472, 1
        %v477 = vsel %vm391, %v475, %v476
        %478 = vrot.lane.b32.xlu0 %v477, 127
        %v479 = vpop.permute.xlu0 %478
        %v481 = vadd.f32 %v429, %v479
        %s482 = sld [smem:[#allocation2 + $0x5]]
        %v483 = vstv %s482
        %v484 = vmul.f32 %v307, %v483
        %v485 = vmul.f32 %v308, %v483
        %v488 = vrot.slane %v484, 1
        %v489 = vrot.slane %v485, 1
        %v490 = vsel %vm391, %v488, %v489
        %491 = vrot.lane.b32.xlu0 %v490, 126
        %v492 = vpop.permute.xlu0 %491
        %v494 = vadd.f32 %v442, %v492
        %s495 = sld [smem:[#allocation2 + $0x29]]
        %v496 = vstv %s495
        %v497 = vmul.f32 %v307, %v496
        %v498 = vmul.f32 %v308, %v496
        %v501 = vrot.slane %v497, 1
        %v502 = vrot.slane %v498, 1
        %v503 = vsel %vm391, %v501, %v502
        %504 = vrot.lane.b32.xlu0 %v503, 126
        %v505 = vpop.permute.xlu0 %504
        %v507 = vadd.f32 %v455, %v505
        %s508 = sld [smem:[#allocation2 + $0x4d]]
        %v509 = vstv %s508
        %v510 = vmul.f32 %v307, %v509
        %v511 = vmul.f32 %v308, %v509
        %v514 = vrot.slane %v510, 1
        %v515 = vrot.slane %v511, 1
        %v516 = vsel %vm391, %v514, %v515
        %517 = vrot.lane.b32.xlu0 %v516, 126
        %v518 = vpop.permute.xlu0 %517
        %v520 = vadd.f32 %v468, %v518
        %s521 = sld [smem:[#allocation2 + $0x71]]
        %v522 = vstv %s521
        %v523 = vmul.f32 %v307, %v522
        %v524 = vmul.f32 %v308, %v522
        %v527 = vrot.slane %v523, 1
        %v528 = vrot.slane %v524, 1
        %v529 = vsel %vm391, %v527, %v528
        %530 = vrot.lane.b32.xlu0 %v529, 126
        %v531 = vpop.permute.xlu0 %530
        %v533 = vadd.f32 %v481, %v531
        %s534 = sld [smem:[#allocation2 + $0x6]]
        %v535 = vstv %s534
        %v536 = vmul.f32 %v307, %v535
        %v537 = vmul.f32 %v308, %v535
        %vm540 = vcmask 1045504
        %v541 = vrot.slane %v536, 2
        %v542 = vrot.slane %v537, 2
        %v543 = vsel %vm540, %v541, %v542
        %v545 = vadd.f32 %v494, %v543
        %s546 = sld [smem:[#allocation2 + $0x2a]]
        %v547 = vstv %s546
        %v548 = vmul.f32 %v307, %v547
        %v549 = vmul.f32 %v308, %v547
        %v552 = vrot.slane %v548, 2
        %v553 = vrot.slane %v549, 2
        %v554 = vsel %vm540, %v552, %v553
        %v556 = vadd.f32 %v507, %v554
        %s557 = sld [smem:[#allocation2 + $0x4e]]
        %v558 = vstv %s557
        %v559 = vmul.f32 %v307, %v558
        %v560 = vmul.f32 %v308, %v558
        %v563 = vrot.slane %v559, 2
        %v564 = vrot.slane %v560, 2
        %v565 = vsel %vm540, %v563, %v564
        %v567 = vadd.f32 %v520, %v565
        %s568 = sld [smem:[#allocation2 + $0x72]]
        %v569 = vstv %s568
        %v570 = vmul.f32 %v307, %v569
        %v571 = vmul.f32 %v308, %v569
        %v574 = vrot.slane %v570, 2
        %v575 = vrot.slane %v571, 2
        %v576 = vsel %vm540, %v574, %v575
        %v578 = vadd.f32 %v533, %v576
        %s579 = sld [smem:[#allocation2 + $0x7]]
        %v580 = vstv %s579
        %v581 = vmul.f32 %v307, %v580
        %v582 = vmul.f32 %v308, %v580
        %v585 = vrot.slane %v581, 2
        %v586 = vrot.slane %v582, 2
        %v587 = vsel %vm540, %v585, %v586
        %588 = vrot.lane.b32.xlu0 %v587, 127
        %v589 = vpop.permute.xlu0 %588
        %v591 = vadd.f32 %v545, %v589
        %s592 = sld [smem:[#allocation2 + $0x2b]]
        %v593 = vstv %s592
        %v594 = vmul.f32 %v307, %v593
        %v595 = vmul.f32 %v308, %v593
        %v598 = vrot.slane %v594, 2
        %v599 = vrot.slane %v595, 2
        %v600 = vsel %vm540, %v598, %v599
        %601 = vrot.lane.b32.xlu0 %v600, 127
        %v602 = vpop.permute.xlu0 %601
        %v604 = vadd.f32 %v556, %v602
        %s605 = sld [smem:[#allocation2 + $0x4f]]
        %v606 = vstv %s605
        %v607 = vmul.f32 %v307, %v606
        %v608 = vmul.f32 %v308, %v606
        %v611 = vrot.slane %v607, 2
        %v612 = vrot.slane %v608, 2
        %v613 = vsel %vm540, %v611, %v612
        %614 = vrot.lane.b32.xlu0 %v613, 127
        %v615 = vpop.permute.xlu0 %614
        %v617 = vadd.f32 %v567, %v615
        %s618 = sld [smem:[#allocation2 + $0x73]]
        %v619 = vstv %s618
        %v620 = vmul.f32 %v307, %v619
        %v621 = vmul.f32 %v308, %v619
        %v624 = vrot.slane %v620, 2
        %v625 = vrot.slane %v621, 2
        %v626 = vsel %vm540, %v624, %v625
        %627 = vrot.lane.b32.xlu0 %v626, 127
        %v628 = vpop.permute.xlu0 %627
        %v630 = vadd.f32 %v578, %v628
        %s631 = sld [smem:[#allocation2 + $0x8]]
        %v632 = vstv %s631
        %v633 = vmul.f32 %v307, %v632
        %v634 = vmul.f32 %v308, %v632
        %v637 = vrot.slane %v633, 2
        %v638 = vrot.slane %v634, 2
        %v639 = vsel %vm540, %v637, %v638
        %640 = vrot.lane.b32.xlu0 %v639, 126
        %v641 = vpop.permute.xlu0 %640
        %v643 = vadd.f32 %v591, %v641
        %s644 = sld [smem:[#allocation2 + $0x2c]]
        %v645 = vstv %s644
        %v646 = vmul.f32 %v307, %v645
        %v647 = vmul.f32 %v308, %v645
        %v650 = vrot.slane %v646, 2
        %v651 = vrot.slane %v647, 2
        %v652 = vsel %vm540, %v650, %v651
        %653 = vrot.lane.b32.xlu0 %v652, 126
        %v654 = vpop.permute.xlu0 %653
        %v656 = vadd.f32 %v604, %v654
        %s657 = sld [smem:[#allocation2 + $0x50]]
        %v658 = vstv %s657
        %v659 = vmul.f32 %v307, %v658
        %v660 = vmul.f32 %v308, %v658
        %v663 = vrot.slane %v659, 2
        %v664 = vrot.slane %v660, 2
        %v665 = vsel %vm540, %v663, %v664
        %666 = vrot.lane.b32.xlu0 %v665, 126
        %v667 = vpop.permute.xlu0 %666
        %v669 = vadd.f32 %v617, %v667
        %s670 = sld [smem:[#allocation2 + $0x74]]
        %v671 = vstv %s670
        %v672 = vmul.f32 %v307, %v671
        %v673 = vmul.f32 %v308, %v671
        %v676 = vrot.slane %v672, 2
        %v677 = vrot.slane %v673, 2
        %v678 = vsel %vm540, %v676, %v677
        %679 = vrot.lane.b32.xlu0 %v678, 126
        %v680 = vpop.permute.xlu0 %679
        %v682 = vadd.f32 %v630, %v680
        %s683 = sadd.s32 %s305, 24
        %s684 = scalar_lea.vmem %s288, %s683
        %v685 = vld [vmem:[%s684] sm:$0xff]
        %v686 = vld [vmem:[%s684 + $0x8] sm:$0x3]
        %s687 = sld [smem:[#allocation2 + $0x9]]
        %v688 = vstv %s687
        %v689 = vmul.f32 %v685, %v688
        %v690 = vadd.f32 %v643, %v689
        %s691 = sld [smem:[#allocation2 + $0x2d]]
        %v692 = vstv %s691
        %v693 = vmul.f32 %v685, %v692
        %v694 = vadd.f32 %v656, %v693
        %s695 = sld [smem:[#allocation2 + $0x51]]
        %v696 = vstv %s695
        %v697 = vmul.f32 %v685, %v696
        %v698 = vadd.f32 %v669, %v697
        %s699 = sld [smem:[#allocation2 + $0x75]]
        %v700 = vstv %s699
        %v701 = vmul.f32 %v685, %v700
        %v702 = vadd.f32 %v682, %v701
        %s703 = sld [smem:[#allocation2 + $0xa]]
        %v704 = vstv %s703
        %v705 = vmul.f32 %v685, %v704
        %707 = vrot.lane.b32.xlu0 %v705, 127
        %v708 = vpop.permute.xlu0 %707
        %v710 = vadd.f32 %v690, %v708
        %s711 = sld [smem:[#allocation2 + $0x2e]]
        %v712 = vstv %s711
        %v713 = vmul.f32 %v685, %v712
        %715 = vrot.lane.b32.xlu0 %v713, 127
        %v716 = vpop.permute.xlu0 %715
        %v718 = vadd.f32 %v694, %v716
        %s719 = sld [smem:[#allocation2 + $0x52]]
        %v720 = vstv %s719
        %v721 = vmul.f32 %v685, %v720
        %723 = vrot.lane.b32.xlu0 %v721, 127
        %v724 = vpop.permute.xlu0 %723
        %v726 = vadd.f32 %v698, %v724
        %s727 = sld [smem:[#allocation2 + $0x76]]
        %v728 = vstv %s727
        %v729 = vmul.f32 %v685, %v728
        %731 = vrot.lane.b32.xlu0 %v729, 127
        %v732 = vpop.permute.xlu0 %731
        %v734 = vadd.f32 %v702, %v732
        %s735 = sld [smem:[#allocation2 + $0xb]]
        %v736 = vstv %s735
        %v737 = vmul.f32 %v685, %v736
        %739 = vrot.lane.b32.xlu0 %v737, 126
        %v740 = vpop.permute.xlu0 %739
        %v742 = vadd.f32 %v710, %v740
        %s743 = sld [smem:[#allocation2 + $0x2f]]
        %v744 = vstv %s743
        %v745 = vmul.f32 %v685, %v744
        %747 = vrot.lane.b32.xlu0 %v745, 126
        %v748 = vpop.permute.xlu0 %747
        %v750 = vadd.f32 %v718, %v748
        %s751 = sld [smem:[#allocation2 + $0x53]]
        %v752 = vstv %s751
        %v753 = vmul.f32 %v685, %v752
        %755 = vrot.lane.b32.xlu0 %v753, 126
        %v756 = vpop.permute.xlu0 %755
        %v758 = vadd.f32 %v726, %v756
        %s759 = sld [smem:[#allocation2 + $0x77]]
        %v760 = vstv %s759
        %v761 = vmul.f32 %v685, %v760
        %763 = vrot.lane.b32.xlu0 %v761, 126
        %v764 = vpop.permute.xlu0 %763
        %v766 = vadd.f32 %v734, %v764
        %s767 = sld [smem:[#allocation2 + $0xc]]
        %v768 = vstv %s767
        %v769 = vmul.f32 %v685, %v768
        %v770 = vmul.f32 %v686, %v768
        %v773 = vrot.slane %v769, 1
        %v774 = vrot.slane %v770, 1
        %v775 = vsel %vm391, %v773, %v774
        %v777 = vadd.f32 %v742, %v775
        %s778 = sld [smem:[#allocation2 + $0x30]]
        %v779 = vstv %s778
        %v780 = vmul.f32 %v685, %v779
        %v781 = vmul.f32 %v686, %v779
        %v784 = vrot.slane %v780, 1
        %v785 = vrot.slane %v781, 1
        %v786 = vsel %vm391, %v784, %v785
        %v788 = vadd.f32 %v750, %v786
        %s789 = sld [smem:[#allocation2 + $0x54]]
        %v790 = vstv %s789
        %v791 = vmul.f32 %v685, %v790
        %v792 = vmul.f32 %v686, %v790
        %v795 = vrot.slane %v791, 1
        %v796 = vrot.slane %v792, 1
        %v797 = vsel %vm391, %v795, %v796
        %v799 = vadd.f32 %v758, %v797
        %s800 = sld [smem:[#allocation2 + $0x78]]
        %v801 = vstv %s800
        %v802 = vmul.f32 %v685, %v801
        %v803 = vmul.f32 %v686, %v801
        %v806 = vrot.slane %v802, 1
        %v807 = vrot.slane %v803, 1
        %v808 = vsel %vm391, %v806, %v807
        %v810 = vadd.f32 %v766, %v808
        %s811 = sld [smem:[#allocation2 + $0xd]]
        %v812 = vstv %s811
        %v813 = vmul.f32 %v685, %v812
        %v814 = vmul.f32 %v686, %v812
        %v817 = vrot.slane %v813, 1
        %v818 = vrot.slane %v814, 1
        %v819 = vsel %vm391, %v817, %v818
        %820 = vrot.lane.b32.xlu0 %v819, 127
        %v821 = vpop.permute.xlu0 %820
        %v823 = vadd.f32 %v777, %v821
        %s824 = sld [smem:[#allocation2 + $0x31]]
        %v825 = vstv %s824
        %v826 = vmul.f32 %v685, %v825
        %v827 = vmul.f32 %v686, %v825
        %v830 = vrot.slane %v826, 1
        %v831 = vrot.slane %v827, 1
        %v832 = vsel %vm391, %v830, %v831
        %833 = vrot.lane.b32.xlu0 %v832, 127
        %v834 = vpop.permute.xlu0 %833
        %v836 = vadd.f32 %v788, %v834
        %s837 = sld [smem:[#allocation2 + $0x55]]
        %v838 = vstv %s837
        %v839 = vmul.f32 %v685, %v838
        %v840 = vmul.f32 %v686, %v838
        %v843 = vrot.slane %v839, 1
        %v844 = vrot.slane %v840, 1
        %v845 = vsel %vm391, %v843, %v844
        %846 = vrot.lane.b32.xlu0 %v845, 127
        %v847 = vpop.permute.xlu0 %846
        %v849 = vadd.f32 %v799, %v847
        %s850 = sld [smem:[#allocation2 + $0x79]]
        %v851 = vstv %s850
        %v852 = vmul.f32 %v685, %v851
        %v853 = vmul.f32 %v686, %v851
        %v856 = vrot.slane %v852, 1
        %v857 = vrot.slane %v853, 1
        %v858 = vsel %vm391, %v856, %v857
        %859 = vrot.lane.b32.xlu0 %v858, 127
        %v860 = vpop.permute.xlu0 %859
        %v862 = vadd.f32 %v810, %v860
        %s863 = sld [smem:[#allocation2 + $0xe]]
        %v864 = vstv %s863
        %v865 = vmul.f32 %v685, %v864
        %v866 = vmul.f32 %v686, %v864
        %v869 = vrot.slane %v865, 1
        %v870 = vrot.slane %v866, 1
        %v871 = vsel %vm391, %v869, %v870
        %872 = vrot.lane.b32.xlu0 %v871, 126
        %v873 = vpop.permute.xlu0 %872
        %v875 = vadd.f32 %v823, %v873
        %s876 = sld [smem:[#allocation2 + $0x32]]
        %v877 = vstv %s876
        %v878 = vmul.f32 %v685, %v877
        %v879 = vmul.f32 %v686, %v877
        %v882 = vrot.slane %v878, 1
        %v883 = vrot.slane %v879, 1
        %v884 = vsel %vm391, %v882, %v883
        %885 = vrot.lane.b32.xlu0 %v884, 126
        %v886 = vpop.permute.xlu0 %885
        %v888 = vadd.f32 %v836, %v886
        %s889 = sld [smem:[#allocation2 + $0x56]]
        %v890 = vstv %s889
        %v891 = vmul.f32 %v685, %v890
        %v892 = vmul.f32 %v686, %v890
        %v895 = vrot.slane %v891, 1
        %v896 = vrot.slane %v892, 1
        %v897 = vsel %vm391, %v895, %v896
        %898 = vrot.lane.b32.xlu0 %v897, 126
        %v899 = vpop.permute.xlu0 %898
        %v901 = vadd.f32 %v849, %v899
        %s902 = sld [smem:[#allocation2 + $0x7a]]
        %v903 = vstv %s902
        %v904 = vmul.f32 %v685, %v903
        %v905 = vmul.f32 %v686, %v903
        %v908 = vrot.slane %v904, 1
        %v909 = vrot.slane %v905, 1
        %v910 = vsel %vm391, %v908, %v909
        %911 = vrot.lane.b32.xlu0 %v910, 126
        %v912 = vpop.permute.xlu0 %911
        %v914 = vadd.f32 %v862, %v912
        %s915 = sld [smem:[#allocation2 + $0xf]]
        %v916 = vstv %s915
        %v917 = vmul.f32 %v685, %v916
        %v918 = vmul.f32 %v686, %v916
        %v921 = vrot.slane %v917, 2
        %v922 = vrot.slane %v918, 2
        %v923 = vsel %vm540, %v921, %v922
        %v925 = vadd.f32 %v875, %v923
        %s926 = sld [smem:[#allocation2 + $0x33]]
        %v927 = vstv %s926
        %v928 = vmul.f32 %v685, %v927
        %v929 = vmul.f32 %v686, %v927
        %v932 = vrot.slane %v928, 2
        %v933 = vrot.slane %v929, 2
        %v934 = vsel %vm540, %v932, %v933
        %v936 = vadd.f32 %v888, %v934
        %s937 = sld [smem:[#allocation2 + $0x57]]
        %v938 = vstv %s937
        %v939 = vmul.f32 %v685, %v938
        %v940 = vmul.f32 %v686, %v938
        %v943 = vrot.slane %v939, 2
        %v944 = vrot.slane %v940, 2
        %v945 = vsel %vm540, %v943, %v944
        %v947 = vadd.f32 %v901, %v945
        %s948 = sld [smem:[#allocation2 + $0x7b]]
        %v949 = vstv %s948
        %v950 = vmul.f32 %v685, %v949
        %v951 = vmul.f32 %v686, %v949
        %v954 = vrot.slane %v950, 2
        %v955 = vrot.slane %v951, 2
        %v956 = vsel %vm540, %v954, %v955
        %v958 = vadd.f32 %v914, %v956
        %s959 = sld [smem:[#allocation2 + $0x10]]
        %v960 = vstv %s959
        %v961 = vmul.f32 %v685, %v960
        %v962 = vmul.f32 %v686, %v960
        %v965 = vrot.slane %v961, 2
        %v966 = vrot.slane %v962, 2
        %v967 = vsel %vm540, %v965, %v966
        %968 = vrot.lane.b32.xlu0 %v967, 127
        %v969 = vpop.permute.xlu0 %968
        %v971 = vadd.f32 %v925, %v969
        %s972 = sld [smem:[#allocation2 + $0x34]]
        %v973 = vstv %s972
        %v974 = vmul.f32 %v685, %v973
        %v975 = vmul.f32 %v686, %v973
        %v978 = vrot.slane %v974, 2
        %v979 = vrot.slane %v975, 2
        %v980 = vsel %vm540, %v978, %v979
        %981 = vrot.lane.b32.xlu0 %v980, 127
        %v982 = vpop.permute.xlu0 %981
        %v984 = vadd.f32 %v936, %v982
        %s985 = sld [smem:[#allocation2 + $0x58]]
        %v986 = vstv %s985
        %v987 = vmul.f32 %v685, %v986
        %v988 = vmul.f32 %v686, %v986
        %v991 = vrot.slane %v987, 2
        %v992 = vrot.slane %v988, 2
        %v993 = vsel %vm540, %v991, %v992
        %994 = vrot.lane.b32.xlu0 %v993, 127
        %v995 = vpop.permute.xlu0 %994
        %v997 = vadd.f32 %v947, %v995
        %s998 = sld [smem:[#allocation2 + $0x7c]]
        %v999 = vstv %s998
        %v1000 = vmul.f32 %v685, %v999
        %v1001 = vmul.f32 %v686, %v999
        %v1004 = vrot.slane %v1000, 2
        %v1005 = vrot.slane %v1001, 2
        %v1006 = vsel %vm540, %v1004, %v1005
        %1007 = vrot.lane.b32.xlu0 %v1006, 127
        %v1008 = vpop.permute.xlu0 %1007
        %v1010 = vadd.f32 %v958, %v1008
        %s1011 = sld [smem:[#allocation2 + $0x11]]
        %v1012 = vstv %s1011
        %v1013 = vmul.f32 %v685, %v1012
        %v1014 = vmul.f32 %v686, %v1012
        %v1017 = vrot.slane %v1013, 2
        %v1018 = vrot.slane %v1014, 2
        %v1019 = vsel %vm540, %v1017, %v1018
        %1020 = vrot.lane.b32.xlu0 %v1019, 126
        %v1021 = vpop.permute.xlu0 %1020
        %v1023 = vadd.f32 %v971, %v1021
        %s1024 = sld [smem:[#allocation2 + $0x35]]
        %v1025 = vstv %s1024
        %v1026 = vmul.f32 %v685, %v1025
        %v1027 = vmul.f32 %v686, %v1025
        %v1030 = vrot.slane %v1026, 2
        %v1031 = vrot.slane %v1027, 2
        %v1032 = vsel %vm540, %v1030, %v1031
        %1033 = vrot.lane.b32.xlu0 %v1032, 126
        %v1034 = vpop.permute.xlu0 %1033
        %v1036 = vadd.f32 %v984, %v1034
        %s1037 = sld [smem:[#allocation2 + $0x59]]
        %v1038 = vstv %s1037
        %v1039 = vmul.f32 %v685, %v1038
        %v1040 = vmul.f32 %v686, %v1038
        %v1043 = vrot.slane %v1039, 2
        %v1044 = vrot.slane %v1040, 2
        %v1045 = vsel %vm540, %v1043, %v1044
        %1046 = vrot.lane.b32.xlu0 %v1045, 126
        %v1047 = vpop.permute.xlu0 %1046
        %v1049 = vadd.f32 %v997, %v1047
        %s1050 = sld [smem:[#allocation2 + $0x7d]]
        %v1051 = vstv %s1050
        %v1052 = vmul.f32 %v685, %v1051
        %v1053 = vmul.f32 %v686, %v1051
        %v1056 = vrot.slane %v1052, 2
        %v1057 = vrot.slane %v1053, 2
        %v1058 = vsel %vm540, %v1056, %v1057
        %1059 = vrot.lane.b32.xlu0 %v1058, 126
        %v1060 = vpop.permute.xlu0 %1059
        %v1062 = vadd.f32 %v1010, %v1060
        %s1063 = sadd.s32 %s305, 48
        %s1064 = scalar_lea.vmem %s288, %s1063
        %v1065 = vld [vmem:[%s1064] sm:$0xff]
        %v1066 = vld [vmem:[%s1064 + $0x8] sm:$0x3]
        %s1067 = sld [smem:[#allocation2 + $0x12]]
        %v1068 = vstv %s1067
        %v1069 = vmul.f32 %v1065, %v1068
        %v1070 = vadd.f32 %v1023, %v1069
        %s1071 = sld [smem:[#allocation2 + $0x36]]
        %v1072 = vstv %s1071
        %v1073 = vmul.f32 %v1065, %v1072
        %v1074 = vadd.f32 %v1036, %v1073
        %s1075 = sld [smem:[#allocation2 + $0x5a]]
        %v1076 = vstv %s1075
        %v1077 = vmul.f32 %v1065, %v1076
        %v1078 = vadd.f32 %v1049, %v1077
        %s1079 = sld [smem:[#allocation2 + $0x7e]]
        %v1080 = vstv %s1079
        %v1081 = vmul.f32 %v1065, %v1080
        %v1082 = vadd.f32 %v1062, %v1081
        %s1083 = sld [smem:[#allocation2 + $0x13]]
        %v1084 = vstv %s1083
        %v1085 = vmul.f32 %v1065, %v1084
        %1087 = vrot.lane.b32.xlu0 %v1085, 127
        %v1088 = vpop.permute.xlu0 %1087
        %v1090 = vadd.f32 %v1070, %v1088
        %s1091 = sld [smem:[#allocation2 + $0x37]]
        %v1092 = vstv %s1091
        %v1093 = vmul.f32 %v1065, %v1092
        %1095 = vrot.lane.b32.xlu0 %v1093, 127
        %v1096 = vpop.permute.xlu0 %1095
        %v1098 = vadd.f32 %v1074, %v1096
        %s1099 = sld [smem:[#allocation2 + $0x5b]]
        %v1100 = vstv %s1099
        %v1101 = vmul.f32 %v1065, %v1100
        %1103 = vrot.lane.b32.xlu0 %v1101, 127
        %v1104 = vpop.permute.xlu0 %1103
        %v1106 = vadd.f32 %v1078, %v1104
        %s1107 = sld [smem:[#allocation2 + $0x7f]]
        %v1108 = vstv %s1107
        %v1109 = vmul.f32 %v1065, %v1108
        %1111 = vrot.lane.b32.xlu0 %v1109, 127
        %v1112 = vpop.permute.xlu0 %1111
        %v1114 = vadd.f32 %v1082, %v1112
        %s1115 = sld [smem:[#allocation2 + $0x14]]
        %v1116 = vstv %s1115
        %v1117 = vmul.f32 %v1065, %v1116
        %1119 = vrot.lane.b32.xlu0 %v1117, 126
        %v1120 = vpop.permute.xlu0 %1119
        %v1122 = vadd.f32 %v1090, %v1120
        %s1123 = sld [smem:[#allocation2 + $0x38]]
        %v1124 = vstv %s1123
        %v1125 = vmul.f32 %v1065, %v1124
        %1127 = vrot.lane.b32.xlu0 %v1125, 126
        %v1128 = vpop.permute.xlu0 %1127
        %v1130 = vadd.f32 %v1098, %v1128
        %s1131 = sld [smem:[#allocation2 + $0x5c]]
        %v1132 = vstv %s1131
        %v1133 = vmul.f32 %v1065, %v1132
        %1135 = vrot.lane.b32.xlu0 %v1133, 126
        %v1136 = vpop.permute.xlu0 %1135
        %v1138 = vadd.f32 %v1106, %v1136
        %s1139 = sld [smem:[#allocation2 + $0x80]]
        %v1140 = vstv %s1139
        %v1141 = vmul.f32 %v1065, %v1140
        %1143 = vrot.lane.b32.xlu0 %v1141, 126
        %v1144 = vpop.permute.xlu0 %1143
        %v1146 = vadd.f32 %v1114, %v1144
        %s1147 = sld [smem:[#allocation2 + $0x15]]
        %v1148 = vstv %s1147
        %v1149 = vmul.f32 %v1065, %v1148
        %v1150 = vmul.f32 %v1066, %v1148
        %v1153 = vrot.slane %v1149, 1
        %v1154 = vrot.slane %v1150, 1
        %v1155 = vsel %vm391, %v1153, %v1154
        %v1157 = vadd.f32 %v1122, %v1155
        %s1158 = sld [smem:[#allocation2 + $0x39]]
        %v1159 = vstv %s1158
        %v1160 = vmul.f32 %v1065, %v1159
        %v1161 = vmul.f32 %v1066, %v1159
        %v1164 = vrot.slane %v1160, 1
        %v1165 = vrot.slane %v1161, 1
        %v1166 = vsel %vm391, %v1164, %v1165
        %v1168 = vadd.f32 %v1130, %v1166
        %s1169 = sld [smem:[#allocation2 + $0x5d]]
        %v1170 = vstv %s1169
        %v1171 = vmul.f32 %v1065, %v1170
        %v1172 = vmul.f32 %v1066, %v1170
        %v1175 = vrot.slane %v1171, 1
        %v1176 = vrot.slane %v1172, 1
        %v1177 = vsel %vm391, %v1175, %v1176
        %v1179 = vadd.f32 %v1138, %v1177
        %s1180 = sld [smem:[#allocation2 + $0x81]]
        %v1181 = vstv %s1180
        %v1182 = vmul.f32 %v1065, %v1181
        %v1183 = vmul.f32 %v1066, %v1181
        %v1186 = vrot.slane %v1182, 1
        %v1187 = vrot.slane %v1183, 1
        %v1188 = vsel %vm391, %v1186, %v1187
        %v1190 = vadd.f32 %v1146, %v1188
        %s1191 = sld [smem:[#allocation2 + $0x16]]
        %v1192 = vstv %s1191
        %v1193 = vmul.f32 %v1065, %v1192
        %v1194 = vmul.f32 %v1066, %v1192
        %v1197 = vrot.slane %v1193, 1
        %v1198 = vrot.slane %v1194, 1
        %v1199 = vsel %vm391, %v1197, %v1198
        %1200 = vrot.lane.b32.xlu0 %v1199, 127
        %v1201 = vpop.permute.xlu0 %1200
        %v1203 = vadd.f32 %v1157, %v1201
        %s1204 = sld [smem:[#allocation2 + $0x3a]]
        %v1205 = vstv %s1204
        %v1206 = vmul.f32 %v1065, %v1205
        %v1207 = vmul.f32 %v1066, %v1205
        %v1210 = vrot.slane %v1206, 1
        %v1211 = vrot.slane %v1207, 1
        %v1212 = vsel %vm391, %v1210, %v1211
        %1213 = vrot.lane.b32.xlu0 %v1212, 127
        %v1214 = vpop.permute.xlu0 %1213
        %v1216 = vadd.f32 %v1168, %v1214
        %s1217 = sld [smem:[#allocation2 + $0x5e]]
        %v1218 = vstv %s1217
        %v1219 = vmul.f32 %v1065, %v1218
        %v1220 = vmul.f32 %v1066, %v1218
        %v1223 = vrot.slane %v1219, 1
        %v1224 = vrot.slane %v1220, 1
        %v1225 = vsel %vm391, %v1223, %v1224
        %1226 = vrot.lane.b32.xlu0 %v1225, 127
        %v1227 = vpop.permute.xlu0 %1226
        %v1229 = vadd.f32 %v1179, %v1227
        %s1230 = sld [smem:[#allocation2 + $0x82]]
        %v1231 = vstv %s1230
        %v1232 = vmul.f32 %v1065, %v1231
        %v1233 = vmul.f32 %v1066, %v1231
        %v1236 = vrot.slane %v1232, 1
        %v1237 = vrot.slane %v1233, 1
        %v1238 = vsel %vm391, %v1236, %v1237
        %1239 = vrot.lane.b32.xlu0 %v1238, 127
        %v1240 = vpop.permute.xlu0 %1239
        %v1242 = vadd.f32 %v1190, %v1240
        %s1243 = sld [smem:[#allocation2 + $0x17]]
        %v1244 = vstv %s1243
        %v1245 = vmul.f32 %v1065, %v1244
        %v1246 = vmul.f32 %v1066, %v1244
        %v1249 = vrot.slane %v1245, 1
        %v1250 = vrot.slane %v1246, 1
        %v1251 = vsel %vm391, %v1249, %v1250
        %1252 = vrot.lane.b32.xlu0 %v1251, 126
        %v1253 = vpop.permute.xlu0 %1252
        %v1255 = vadd.f32 %v1203, %v1253
        %s1256 = sld [smem:[#allocation2 + $0x3b]]
        %v1257 = vstv %s1256
        %v1258 = vmul.f32 %v1065, %v1257
        %v1259 = vmul.f32 %v1066, %v1257
        %v1262 = vrot.slane %v1258, 1
        %v1263 = vrot.slane %v1259, 1
        %v1264 = vsel %vm391, %v1262, %v1263
        %1265 = vrot.lane.b32.xlu0 %v1264, 126
        %v1266 = vpop.permute.xlu0 %1265
        %v1268 = vadd.f32 %v1216, %v1266
        %s1269 = sld [smem:[#allocation2 + $0x5f]]
        %v1270 = vstv %s1269
        %v1271 = vmul.f32 %v1065, %v1270
        %v1272 = vmul.f32 %v1066, %v1270
        %v1275 = vrot.slane %v1271, 1
        %v1276 = vrot.slane %v1272, 1
        %v1277 = vsel %vm391, %v1275, %v1276
        %1278 = vrot.lane.b32.xlu0 %v1277, 126
        %v1279 = vpop.permute.xlu0 %1278
        %v1281 = vadd.f32 %v1229, %v1279
        %s1282 = sld [smem:[#allocation2 + $0x83]]
        %v1283 = vstv %s1282
        %v1284 = vmul.f32 %v1065, %v1283
        %v1285 = vmul.f32 %v1066, %v1283
        %v1288 = vrot.slane %v1284, 1
        %v1289 = vrot.slane %v1285, 1
        %v1290 = vsel %vm391, %v1288, %v1289
        %1291 = vrot.lane.b32.xlu0 %v1290, 126
        %v1292 = vpop.permute.xlu0 %1291
        %v1294 = vadd.f32 %v1242, %v1292
        %s1295 = sld [smem:[#allocation2 + $0x18]]
        %v1296 = vstv %s1295
        %v1297 = vmul.f32 %v1065, %v1296
        %v1298 = vmul.f32 %v1066, %v1296
        %v1301 = vrot.slane %v1297, 2
        %v1302 = vrot.slane %v1298, 2
        %v1303 = vsel %vm540, %v1301, %v1302
        %v1305 = vadd.f32 %v1255, %v1303
        %s1306 = sld [smem:[#allocation2 + $0x3c]]
        %v1307 = vstv %s1306
        %v1308 = vmul.f32 %v1065, %v1307
        %v1309 = vmul.f32 %v1066, %v1307
        %v1312 = vrot.slane %v1308, 2
        %v1313 = vrot.slane %v1309, 2
        %v1314 = vsel %vm540, %v1312, %v1313
        %v1316 = vadd.f32 %v1268, %v1314
        %s1317 = sld [smem:[#allocation2 + $0x60]]
        %v1318 = vstv %s1317
        %v1319 = vmul.f32 %v1065, %v1318
        %v1320 = vmul.f32 %v1066, %v1318
        %v1323 = vrot.slane %v1319, 2
        %v1324 = vrot.slane %v1320, 2
        %v1325 = vsel %vm540, %v1323, %v1324
        %v1327 = vadd.f32 %v1281, %v1325
        %s1328 = sld [smem:[#allocation2 + $0x84]]
        %v1329 = vstv %s1328
        %v1330 = vmul.f32 %v1065, %v1329
        %v1331 = vmul.f32 %v1066, %v1329
        %v1334 = vrot.slane %v1330, 2
        %v1335 = vrot.slane %v1331, 2
        %v1336 = vsel %vm540, %v1334, %v1335
        %v1338 = vadd.f32 %v1294, %v1336
        %s1339 = sld [smem:[#allocation2 + $0x19]]
        %v1340 = vstv %s1339
        %v1341 = vmul.f32 %v1065, %v1340
        %v1342 = vmul.f32 %v1066, %v1340
        %v1345 = vrot.slane %v1341, 2
        %v1346 = vrot.slane %v1342, 2
        %v1347 = vsel %vm540, %v1345, %v1346
        %1348 = vrot.lane.b32.xlu0 %v1347, 127
        %v1349 = vpop.permute.xlu0 %1348
        %v1351 = vadd.f32 %v1305, %v1349
        %s1352 = sld [smem:[#allocation2 + $0x3d]]
        %v1353 = vstv %s1352
        %v1354 = vmul.f32 %v1065, %v1353
        %v1355 = vmul.f32 %v1066, %v1353
        %v1358 = vrot.slane %v1354, 2
        %v1359 = vrot.slane %v1355, 2
        %v1360 = vsel %vm540, %v1358, %v1359
        %1361 = vrot.lane.b32.xlu0 %v1360, 127
        %v1362 = vpop.permute.xlu0 %1361
        %v1364 = vadd.f32 %v1316, %v1362
        %s1365 = sld [smem:[#allocation2 + $0x61]]
        %v1366 = vstv %s1365
        %v1367 = vmul.f32 %v1065, %v1366
        %v1368 = vmul.f32 %v1066, %v1366
        %v1371 = vrot.slane %v1367, 2
        %v1372 = vrot.slane %v1368, 2
        %v1373 = vsel %vm540, %v1371, %v1372
        %1374 = vrot.lane.b32.xlu0 %v1373, 127
        %v1375 = vpop.permute.xlu0 %1374
        %v1377 = vadd.f32 %v1327, %v1375
        %s1378 = sld [smem:[#allocation2 + $0x85]]
        %v1379 = vstv %s1378
        %v1380 = vmul.f32 %v1065, %v1379
        %v1381 = vmul.f32 %v1066, %v1379
        %v1384 = vrot.slane %v1380, 2
        %v1385 = vrot.slane %v1381, 2
        %v1386 = vsel %vm540, %v1384, %v1385
        %1387 = vrot.lane.b32.xlu0 %v1386, 127
        %v1388 = vpop.permute.xlu0 %1387
        %v1390 = vadd.f32 %v1338, %v1388
        %s1391 = sld [smem:[#allocation2 + $0x1a]]
        %v1392 = vstv %s1391
        %v1393 = vmul.f32 %v1065, %v1392
        %v1394 = vmul.f32 %v1066, %v1392
        %v1397 = vrot.slane %v1393, 2
        %v1398 = vrot.slane %v1394, 2
        %v1399 = vsel %vm540, %v1397, %v1398
        %1400 = vrot.lane.b32.xlu0 %v1399, 126
        %v1401 = vpop.permute.xlu0 %1400
        %v1403 = vadd.f32 %v1351, %v1401
        %s1404 = sld [smem:[#allocation2 + $0x3e]]
        %v1405 = vstv %s1404
        %v1406 = vmul.f32 %v1065, %v1405
        %v1407 = vmul.f32 %v1066, %v1405
        %v1410 = vrot.slane %v1406, 2
        %v1411 = vrot.slane %v1407, 2
        %v1412 = vsel %vm540, %v1410, %v1411
        %1413 = vrot.lane.b32.xlu0 %v1412, 126
        %v1414 = vpop.permute.xlu0 %1413
        %v1416 = vadd.f32 %v1364, %v1414
        %s1417 = sld [smem:[#allocation2 + $0x62]]
        %v1418 = vstv %s1417
        %v1419 = vmul.f32 %v1065, %v1418
        %v1420 = vmul.f32 %v1066, %v1418
        %v1423 = vrot.slane %v1419, 2
        %v1424 = vrot.slane %v1420, 2
        %v1425 = vsel %vm540, %v1423, %v1424
        %1426 = vrot.lane.b32.xlu0 %v1425, 126
        %v1427 = vpop.permute.xlu0 %1426
        %v1429 = vadd.f32 %v1377, %v1427
        %s1430 = sld [smem:[#allocation2 + $0x86]]
        %v1431 = vstv %s1430
        %v1432 = vmul.f32 %v1065, %v1431
        %v1433 = vmul.f32 %v1066, %v1431
        %v1436 = vrot.slane %v1432, 2
        %v1437 = vrot.slane %v1433, 2
        %v1438 = vsel %vm540, %v1436, %v1437
        %1439 = vrot.lane.b32.xlu0 %v1438, 126
        %v1440 = vpop.permute.xlu0 %1439
        %v1442 = vadd.f32 %v1390, %v1440
        %s1443 = sadd.s32 %s305, 72
        %s1444 = scalar_lea.vmem %s288, %s1443
        %v1445 = vld [vmem:[%s1444] sm:$0xff]
        %v1446 = vld [vmem:[%s1444 + $0x8] sm:$0x3]
        %s1447 = sld [smem:[#allocation2 + $0x1b]]
        %v1448 = vstv %s1447
        %v1449 = vmul.f32 %v1445, %v1448
        %v1450 = vadd.f32 %v1403, %v1449
        %s1451 = sld [smem:[#allocation2 + $0x3f]]
        %v1452 = vstv %s1451
        %v1453 = vmul.f32 %v1445, %v1452
        %v1454 = vadd.f32 %v1416, %v1453
        %s1455 = sld [smem:[#allocation2 + $0x63]]
        %v1456 = vstv %s1455
        %v1457 = vmul.f32 %v1445, %v1456
        %v1458 = vadd.f32 %v1429, %v1457
        %s1459 = sld [smem:[#allocation2 + $0x87]]
        %v1460 = vstv %s1459
        %v1461 = vmul.f32 %v1445, %v1460
        %v1462 = vadd.f32 %v1442, %v1461
        %s1463 = sld [smem:[#allocation2 + $0x1c]]
        %v1464 = vstv %s1463
        %v1465 = vmul.f32 %v1445, %v1464
        %1467 = vrot.lane.b32.xlu0 %v1465, 127
        %v1468 = vpop.permute.xlu0 %1467
        %v1470 = vadd.f32 %v1450, %v1468
        %s1471 = sld [smem:[#allocation2 + $0x40]]
        %v1472 = vstv %s1471
        %v1473 = vmul.f32 %v1445, %v1472
        %1475 = vrot.lane.b32.xlu0 %v1473, 127
        %v1476 = vpop.permute.xlu0 %1475
        %v1478 = vadd.f32 %v1454, %v1476
        %s1479 = sld [smem:[#allocation2 + $0x64]]
        %v1480 = vstv %s1479
        %v1481 = vmul.f32 %v1445, %v1480
        %1483 = vrot.lane.b32.xlu0 %v1481, 127
        %v1484 = vpop.permute.xlu0 %1483
        %v1486 = vadd.f32 %v1458, %v1484
        %s1487 = sld [smem:[#allocation2 + $0x88]]
        %v1488 = vstv %s1487
        %v1489 = vmul.f32 %v1445, %v1488
        %1491 = vrot.lane.b32.xlu0 %v1489, 127
        %v1492 = vpop.permute.xlu0 %1491
        %v1494 = vadd.f32 %v1462, %v1492
        %s1495 = sld [smem:[#allocation2 + $0x1d]]
        %v1496 = vstv %s1495
        %v1497 = vmul.f32 %v1445, %v1496
        %1499 = vrot.lane.b32.xlu0 %v1497, 126
        %v1500 = vpop.permute.xlu0 %1499
        %v1502 = vadd.f32 %v1470, %v1500
        %s1503 = sld [smem:[#allocation2 + $0x41]]
        %v1504 = vstv %s1503
        %v1505 = vmul.f32 %v1445, %v1504
        %1507 = vrot.lane.b32.xlu0 %v1505, 126
        %v1508 = vpop.permute.xlu0 %1507
        %v1510 = vadd.f32 %v1478, %v1508
        %s1511 = sld [smem:[#allocation2 + $0x65]]
        %v1512 = vstv %s1511
        %v1513 = vmul.f32 %v1445, %v1512
        %1515 = vrot.lane.b32.xlu0 %v1513, 126
        %v1516 = vpop.permute.xlu0 %1515
        %v1518 = vadd.f32 %v1486, %v1516
        %s1519 = sld [smem:[#allocation2 + $0x89]]
        %v1520 = vstv %s1519
        %v1521 = vmul.f32 %v1445, %v1520
        %1523 = vrot.lane.b32.xlu0 %v1521, 126
        %v1524 = vpop.permute.xlu0 %1523
        %v1526 = vadd.f32 %v1494, %v1524
        %s1527 = sld [smem:[#allocation2 + $0x1e]]
        %v1528 = vstv %s1527
        %v1529 = vmul.f32 %v1445, %v1528
        %v1530 = vmul.f32 %v1446, %v1528
        %v1533 = vrot.slane %v1529, 1
        %v1534 = vrot.slane %v1530, 1
        %v1535 = vsel %vm391, %v1533, %v1534
        %v1537 = vadd.f32 %v1502, %v1535
        %s1538 = sld [smem:[#allocation2 + $0x42]]
        %v1539 = vstv %s1538
        %v1540 = vmul.f32 %v1445, %v1539
        %v1541 = vmul.f32 %v1446, %v1539
        %v1544 = vrot.slane %v1540, 1
        %v1545 = vrot.slane %v1541, 1
        %v1546 = vsel %vm391, %v1544, %v1545
        %v1548 = vadd.f32 %v1510, %v1546
        %s1549 = sld [smem:[#allocation2 + $0x66]]
        %v1550 = vstv %s1549
        %v1551 = vmul.f32 %v1445, %v1550
        %v1552 = vmul.f32 %v1446, %v1550
        %v1555 = vrot.slane %v1551, 1
        %v1556 = vrot.slane %v1552, 1
        %v1557 = vsel %vm391, %v1555, %v1556
        %v1559 = vadd.f32 %v1518, %v1557
        %s1560 = sld [smem:[#allocation2 + $0x8a]]
        %v1561 = vstv %s1560
        %v1562 = vmul.f32 %v1445, %v1561
        %v1563 = vmul.f32 %v1446, %v1561
        %v1566 = vrot.slane %v1562, 1
        %v1567 = vrot.slane %v1563, 1
        %v1568 = vsel %vm391, %v1566, %v1567
        %v1570 = vadd.f32 %v1526, %v1568
        %s1571 = sld [smem:[#allocation2 + $0x1f]]
        %v1572 = vstv %s1571
        %v1573 = vmul.f32 %v1445, %v1572
        %v1574 = vmul.f32 %v1446, %v1572
        %v1577 = vrot.slane %v1573, 1
        %v1578 = vrot.slane %v1574, 1
        %v1579 = vsel %vm391, %v1577, %v1578
        %1580 = vrot.lane.b32.xlu0 %v1579, 127
        %v1581 = vpop.permute.xlu0 %1580
        %v1583 = vadd.f32 %v1537, %v1581
        %s1584 = sld [smem:[#allocation2 + $0x43]]
        %v1585 = vstv %s1584
        %v1586 = vmul.f32 %v1445, %v1585
        %v1587 = vmul.f32 %v1446, %v1585
        %v1590 = vrot.slane %v1586, 1
        %v1591 = vrot.slane %v1587, 1
        %v1592 = vsel %vm391, %v1590, %v1591
        %1593 = vrot.lane.b32.xlu0 %v1592, 127
        %v1594 = vpop.permute.xlu0 %1593
        %v1596 = vadd.f32 %v1548, %v1594
        %s1597 = sld [smem:[#allocation2 + $0x67]]
        %v1598 = vstv %s1597
        %v1599 = vmul.f32 %v1445, %v1598
        %v1600 = vmul.f32 %v1446, %v1598
        %v1603 = vrot.slane %v1599, 1
        %v1604 = vrot.slane %v1600, 1
        %v1605 = vsel %vm391, %v1603, %v1604
        %1606 = vrot.lane.b32.xlu0 %v1605, 127
        %v1607 = vpop.permute.xlu0 %1606
        %v1609 = vadd.f32 %v1559, %v1607
        %s1610 = sld [smem:[#allocation2 + $0x8b]]
        %v1611 = vstv %s1610
        %v1612 = vmul.f32 %v1445, %v1611
        %v1613 = vmul.f32 %v1446, %v1611
        %v1616 = vrot.slane %v1612, 1
        %v1617 = vrot.slane %v1613, 1
        %v1618 = vsel %vm391, %v1616, %v1617
        %1619 = vrot.lane.b32.xlu0 %v1618, 127
        %v1620 = vpop.permute.xlu0 %1619
        %v1622 = vadd.f32 %v1570, %v1620
        %s1623 = sld [smem:[#allocation2 + $0x20]]
        %v1624 = vstv %s1623
        %v1625 = vmul.f32 %v1445, %v1624
        %v1626 = vmul.f32 %v1446, %v1624
        %v1629 = vrot.slane %v1625, 1
        %v1630 = vrot.slane %v1626, 1
        %v1631 = vsel %vm391, %v1629, %v1630
        %1632 = vrot.lane.b32.xlu0 %v1631, 126
        %v1633 = vpop.permute.xlu0 %1632
        %v1635 = vadd.f32 %v1583, %v1633
        %s1636 = sld [smem:[#allocation2 + $0x44]]
        %v1637 = vstv %s1636
        %v1638 = vmul.f32 %v1445, %v1637
        %v1639 = vmul.f32 %v1446, %v1637
        %v1642 = vrot.slane %v1638, 1
        %v1643 = vrot.slane %v1639, 1
        %v1644 = vsel %vm391, %v1642, %v1643
        %1645 = vrot.lane.b32.xlu0 %v1644, 126
        %v1646 = vpop.permute.xlu0 %1645
        %v1648 = vadd.f32 %v1596, %v1646
        %s1649 = sld [smem:[#allocation2 + $0x68]]
        %v1650 = vstv %s1649
        %v1651 = vmul.f32 %v1445, %v1650
        %v1652 = vmul.f32 %v1446, %v1650
        %v1655 = vrot.slane %v1651, 1
        %v1656 = vrot.slane %v1652, 1
        %v1657 = vsel %vm391, %v1655, %v1656
        %1658 = vrot.lane.b32.xlu0 %v1657, 126
        %v1659 = vpop.permute.xlu0 %1658
        %v1661 = vadd.f32 %v1609, %v1659
        %s1662 = sld [smem:[#allocation2 + $0x8c]]
        %v1663 = vstv %s1662
        %v1664 = vmul.f32 %v1445, %v1663
        %v1665 = vmul.f32 %v1446, %v1663
        %v1668 = vrot.slane %v1664, 1
        %v1669 = vrot.slane %v1665, 1
        %v1670 = vsel %vm391, %v1668, %v1669
        %1671 = vrot.lane.b32.xlu0 %v1670, 126
        %v1672 = vpop.permute.xlu0 %1671
        %v1674 = vadd.f32 %v1622, %v1672
        %s1675 = sld [smem:[#allocation2 + $0x21]]
        %v1676 = vstv %s1675
        %v1677 = vmul.f32 %v1445, %v1676
        %v1678 = vmul.f32 %v1446, %v1676
        %v1681 = vrot.slane %v1677, 2
        %v1682 = vrot.slane %v1678, 2
        %v1683 = vsel %vm540, %v1681, %v1682
        %v1685 = vadd.f32 %v1635, %v1683
        %s1686 = sld [smem:[#allocation2 + $0x45]]
        %v1687 = vstv %s1686
        %v1688 = vmul.f32 %v1445, %v1687
        %v1689 = vmul.f32 %v1446, %v1687
        %v1692 = vrot.slane %v1688, 2
        %v1693 = vrot.slane %v1689, 2
        %v1694 = vsel %vm540, %v1692, %v1693
        %v1696 = vadd.f32 %v1648, %v1694
        %s1697 = sld [smem:[#allocation2 + $0x69]]
        %v1698 = vstv %s1697
        %v1699 = vmul.f32 %v1445, %v1698
        %v1700 = vmul.f32 %v1446, %v1698
        %v1703 = vrot.slane %v1699, 2
        %v1704 = vrot.slane %v1700, 2
        %v1705 = vsel %vm540, %v1703, %v1704
        %v1707 = vadd.f32 %v1661, %v1705
        %s1708 = sld [smem:[#allocation2 + $0x8d]]
        %v1709 = vstv %s1708
        %v1710 = vmul.f32 %v1445, %v1709
        %v1711 = vmul.f32 %v1446, %v1709
        %v1714 = vrot.slane %v1710, 2
        %v1715 = vrot.slane %v1711, 2
        %v1716 = vsel %vm540, %v1714, %v1715
        %v1718 = vadd.f32 %v1674, %v1716
        %s1719 = sld [smem:[#allocation2 + $0x22]]
        %v1720 = vstv %s1719
        %v1721 = vmul.f32 %v1445, %v1720
        %v1722 = vmul.f32 %v1446, %v1720
        %v1725 = vrot.slane %v1721, 2
        %v1726 = vrot.slane %v1722, 2
        %v1727 = vsel %vm540, %v1725, %v1726
        %1728 = vrot.lane.b32.xlu0 %v1727, 127
        %v1729 = vpop.permute.xlu0 %1728
        %v1731 = vadd.f32 %v1685, %v1729
        %s1732 = sld [smem:[#allocation2 + $0x46]]
        %v1733 = vstv %s1732
        %v1734 = vmul.f32 %v1445, %v1733
        %v1735 = vmul.f32 %v1446, %v1733
        %v1738 = vrot.slane %v1734, 2
        %v1739 = vrot.slane %v1735, 2
        %v1740 = vsel %vm540, %v1738, %v1739
        %1741 = vrot.lane.b32.xlu0 %v1740, 127
        %v1742 = vpop.permute.xlu0 %1741
        %v1744 = vadd.f32 %v1696, %v1742
        %s1745 = sld [smem:[#allocation2 + $0x6a]]
        %v1746 = vstv %s1745
        %v1747 = vmul.f32 %v1445, %v1746
        %v1748 = vmul.f32 %v1446, %v1746
        %v1751 = vrot.slane %v1747, 2
        %v1752 = vrot.slane %v1748, 2
        %v1753 = vsel %vm540, %v1751, %v1752
        %1754 = vrot.lane.b32.xlu0 %v1753, 127
        %v1755 = vpop.permute.xlu0 %1754
        %v1757 = vadd.f32 %v1707, %v1755
        %s1758 = sld [smem:[#allocation2 + $0x8e]]
        %v1759 = vstv %s1758
        %v1760 = vmul.f32 %v1445, %v1759
        %v1761 = vmul.f32 %v1446, %v1759
        %v1764 = vrot.slane %v1760, 2
        %v1765 = vrot.slane %v1761, 2
        %v1766 = vsel %vm540, %v1764, %v1765
        %1767 = vrot.lane.b32.xlu0 %v1766, 127
        %v1768 = vpop.permute.xlu0 %1767
        %v1770 = vadd.f32 %v1718, %v1768
        %s1771 = sld [smem:[#allocation2 + $0x23]]
        %v1772 = vstv %s1771
        %v1773 = vmul.f32 %v1445, %v1772
        %v1774 = vmul.f32 %v1446, %v1772
        %v1777 = vrot.slane %v1773, 2
        %v1778 = vrot.slane %v1774, 2
        %v1779 = vsel %vm540, %v1777, %v1778
        %1780 = vrot.lane.b32.xlu0 %v1779, 126
        %v1781 = vpop.permute.xlu0 %1780
        %v1783 = vadd.f32 %v1731, %v1781
        %s1784 = sld [smem:[#allocation2 + $0x47]]
        %v1785 = vstv %s1784
        %v1786 = vmul.f32 %v1445, %v1785
        %v1787 = vmul.f32 %v1446, %v1785
        %v1790 = vrot.slane %v1786, 2
        %v1791 = vrot.slane %v1787, 2
        %v1792 = vsel %vm540, %v1790, %v1791
        %1793 = vrot.lane.b32.xlu0 %v1792, 126
        %v1794 = vpop.permute.xlu0 %1793
        %v1796 = vadd.f32 %v1744, %v1794
        %s1797 = sld [smem:[#allocation2 + $0x6b]]
        %v1798 = vstv %s1797
        %v1799 = vmul.f32 %v1445, %v1798
        %v1800 = vmul.f32 %v1446, %v1798
        %v1803 = vrot.slane %v1799, 2
        %v1804 = vrot.slane %v1800, 2
        %v1805 = vsel %vm540, %v1803, %v1804
        %1806 = vrot.lane.b32.xlu0 %v1805, 126
        %v1807 = vpop.permute.xlu0 %1806
        %v1809 = vadd.f32 %v1757, %v1807
        %s1810 = sld [smem:[#allocation2 + $0x8f]]
        %v1811 = vstv %s1810
        %v1812 = vmul.f32 %v1445, %v1811
        %v1813 = vmul.f32 %v1446, %v1811
        %v1816 = vrot.slane %v1812, 2
        %v1817 = vrot.slane %v1813, 2
        %v1818 = vsel %vm540, %v1816, %v1817
        %1819 = vrot.lane.b32.xlu0 %v1818, 126
        %v1820 = vpop.permute.xlu0 %1819
        %v1822 = vadd.f32 %v1770, %v1820
        %s1823 = sld [smem:[#allocation5]]
        %v1824 = vstv %s1823
        %v1825 = vadd.f32 %v1783, %v1824
        %v1826 = vmax.f32 %v1825, 0.0
        %vm1827 = vcmask 130048
        %1828 = vst.msk [vmem:[%s263] sm:$0xff] %vm1827, %v1826
        %v1829 = vsel %vm1827, %v1826, 0.0
        %v1830 = vrot.slane %v1829, 4
        %v1831 = vadd.f32 %v1829, %v1830
        %v1832 = vrot.slane %v1831, 2
        %v1833 = vadd.f32 %v1831, %v1832
        %v1834 = vrot.slane %v1833, 1
        %v1835 = vadd.f32 %v1833, %v1834
        %vm1836 = vcmask 122880
        %1837 = vst.msk [vmem:[%s296] sm:$0x1] %vm1836, %v1835
        %v1838 = vmul.f32 %v1826, %v1826
        %v1839 = vsel %vm1827, %v1838, 0.0
        %v1840 = vrot.slane %v1839, 4
        %v1841 = vadd.f32 %v1839, %v1840
        %v1842 = vrot.slane %v1841, 2
        %v1843 = vadd.f32 %v1841, %v1842
        %v1844 = vrot.slane %v1843, 1
        %v1845 = vadd.f32 %v1843, %v1844
        %1846 = vst.msk [vmem:[%s304] sm:$0x1] %vm1836, %v1845
        %s1847 = sld [smem:[#allocation5 + $0x1]]
        %v1848 = vstv %s1847
        %v1849 = vadd.f32 %v1796, %v1848
        %v1850 = vmax.f32 %v1849, 0.0
        %s1851 = scalar_lea.vmem %s263, 8 [#allocation7]
        %1852 = vst.msk [vmem:[%s1851] sm:$0xff] %vm1827, %v1850
        %v1853 = vsel %vm1827, %v1850, 0.0
        %v1854 = vrot.slane %v1853, 4
        %v1855 = vadd.f32 %v1853, %v1854
        %v1856 = vrot.slane %v1855, 2
        %v1857 = vadd.f32 %v1855, %v1856
        %v1858 = vrot.slane %v1857, 1
        %v1859 = vadd.f32 %v1857, %v1858
        %1860 = vst.msk [vmem:[%s296 + $0x1] sm:$0x1] %vm1836, %v1859
        %v1861 = vmul.f32 %v1850, %v1850
        %v1862 = vsel %vm1827, %v1861, 0.0
        %v1863 = vrot.slane %v1862, 4
        %v1864 = vadd.f32 %v1862, %v1863
        %v1865 = vrot.slane %v1864, 2
        %v1866 = vadd.f32 %v1864, %v1865
        %v1867 = vrot.slane %v1866, 1
        %v1868 = vadd.f32 %v1866, %v1867
        %1869 = vst.msk [vmem:[%s304 + $0x1] sm:$0x1] %vm1836, %v1868
        %s1870 = sld [smem:[#allocation5 + $0x2]]
        %v1871 = vstv %s1870
        %v1872 = vadd.f32 %v1809, %v1871
        %v1873 = vmax.f32 %v1872, 0.0
        %s1874 = scalar_lea.vmem %s263, 16 [#allocation7]
        %1875 = vst.msk [vmem:[%s1874] sm:$0xff] %vm1827, %v1873
        %v1876 = vsel %vm1827, %v1873, 0.0
        %v1877 = vrot.slane %v1876, 4
        %v1878 = vadd.f32 %v1876, %v1877
        %v1879 = vrot.slane %v1878, 2
        %v1880 = vadd.f32 %v1878, %v1879
        %v1881 = vrot.slane %v1880, 1
        %v1882 = vadd.f32 %v1880, %v1881
        %1883 = vst.msk [vmem:[%s296 + $0x2] sm:$0x1] %vm1836, %v1882
        %v1884 = vmul.f32 %v1873, %v1873
        %v1885 = vsel %vm1827, %v1884, 0.0
        %v1886 = vrot.slane %v1885, 4
        %v1887 = vadd.f32 %v1885, %v1886
        %v1888 = vrot.slane %v1887, 2
        %v1889 = vadd.f32 %v1887, %v1888
        %v1890 = vrot.slane %v1889, 1
        %v1891 = vadd.f32 %v1889, %v1890
        %1892 = vst.msk [vmem:[%s304 + $0x2] sm:$0x1] %vm1836, %v1891
        %s1893 = sld [smem:[#allocation5 + $0x3]]
        %v1894 = vstv %s1893
        %v1895 = vadd.f32 %v1822, %v1894
        %v1896 = vmax.f32 %v1895, 0.0
        %s1897 = scalar_lea.vmem %s263, 24 [#allocation7]
        %1898 = vst.msk [vmem:[%s1897] sm:$0xff] %vm1827, %v1896
        %v1899 = vsel %vm1827, %v1896, 0.0
        %v1900 = vrot.slane %v1899, 4
        %v1901 = vadd.f32 %v1899, %v1900
        %v1902 = vrot.slane %v1901, 2
        %v1903 = vadd.f32 %v1901, %v1902
        %v1904 = vrot.slane %v1903, 1
        %v1905 = vadd.f32 %v1903, %v1904
        %1906 = vst.msk [vmem:[%s296 + $0x3] sm:$0x1] %vm1836, %v1905
        %v1907 = vmul.f32 %v1896, %v1896
        %v1908 = vsel %vm1827, %v1907, 0.0
        %v1909 = vrot.slane %v1908, 4
        %v1910 = vadd.f32 %v1908, %v1909
        %v1911 = vrot.slane %v1910, 2
        %v1912 = vadd.f32 %v1910, %v1911
        %v1913 = vrot.slane %v1912, 1
        %v1914 = vadd.f32 %v1912, %v1913
        %1915 = vst.msk [vmem:[%s304 + $0x3] sm:$0x1] %vm1836, %v1914
        %s1916 = sand.u32 %s112, 1
        %s1917 = scalar_lea.sflag [#allocation3], %s1916
        %s1918 = sand.u32 %s112, 1
        %s1919 = smul.addr %s1918, 32
        %s1920 = scalar_lea.vmem [#allocation7], %s1919
        %p1921 = scmp.lt.s32.totalorder %s26, 1
        %s1922 = scalar_select %p1921, %s26, 1
        %p1923 = scmp.lt.s32.totalorder %s27, 1
        %s1924 = scalar_select %p1923, %s27, 1
        %s1925 = smul.addr %s1922, 2
        %s1926 = sadd.s32 %s1924, %s1925
        %s1927 = smul.addr %s1926, 4
        %s1928 = scalar_lea.vmem %s4, %s1927
        %p1929 = scmp.lt.s32.totalorder %s26, 1
        %s1930 = scalar_select %p1929, %s26, 1
        %p1931 = scmp.lt.s32.totalorder %s27, 1
        %s1932 = scalar_select %p1931, %s27, 1
        %s1933 = smul.addr %s1930, 2
        %s1934 = sadd.s32 %s1932, %s1933
        %s1935 = smul.addr %s1934, 4
        %s1936 = scalar_lea.vmem %s5, %s1935
        // Predicated region
        $region41: #{conv_block_forward.2} parent=31 // pred_check
          %p1937 = pneg %p122
        $region42: #{conv_block_forward.2} parent=31 // pred_check_branch
          %1939 = sbr.rel (%p1937) target = $region44
        $region43: #{conv_block_forward.2} parent=31 // pred_region
          %s1941 = ssub.s32 512, 512
          %1942 = vsyncadd %s1917, %s1941
          %s1943 = smul.addr %s26, 8
          %s1944 = sadd.s32 %s27, %s1943
          %s1945 = smul.addr %s1944, 128
          %s1946 = scalar_lea.hbm %s3, %s1945
          %s1947 = sshll.u32 %s1920, 4
          %s1948 = int_to_ptr.vmem [resolvable:$true] %s1947
          %1953 = dma.vmem_to_hbm [thread:$0]  %s1948, 512, %s1946, %s1917, 128, 256, 8
        $region44: #{conv_block_forward.2} parent=31 // pred_fallthru
          _
        // Predicated region
        $region45: #{conv_block_forward.2} parent=31 // pred_check
          %p1954 = pneg %p150
        $region46: #{conv_block_forward.2} parent=31 // pred_check_branch
          %1956 = sbr.rel (%p1954) target = $region48
        $region47: #{conv_block_forward.2} parent=31 // pred_region
          _
        $region48: #{conv_block_forward.2} parent=31 // pred_fallthru
          _
        // Predicated region
        $region49: #{conv_block_forward.2} parent=31 // pred_check
          %p1957 = pneg %p178
        $region50: #{conv_block_forward.2} parent=31 // pred_check_branch
          %1959 = sbr.rel (%p1957) target = $region52
        $region51: #{conv_block_forward.2} parent=31 // pred_region
          _
        $region52: #{conv_block_forward.2} parent=31 // pred_fallthru
          _
      $region32: #{conv_block_forward.2} parent=5 // pred_fallthru
        _
      %p1960 = scmp.le.s32.totalorder 2, %s17
      // Predicated region
      $region53: #{conv_block_forward.2} parent=5 // pred_check
        %p1961 = pneg %p1960
      $region54: #{conv_block_forward.2} parent=5 // pred_check_branch
        %1963 = sbr.rel (%p1961) target = $region56
      $region55: #{conv_block_forward.2} parent=5 // pred_region
        %s1964 = ssub.s32 %s17, 2
        // Predicated region
        $region57: #{conv_block_forward.2} parent=55 // pred_check
          %p1965 = pneg %p128
        $region58: #{conv_block_forward.2} parent=55 // pred_check_branch
          %1967 = sbr.rel (%p1965) target = $region60
        $region59: #{conv_block_forward.2} parent=55 // pred_region
          %s1968 = sand.u32 %s113, 1
          %s1969 = scalar_lea.sflag [#allocation3], %s1968
          %s1970 = sand.u32 %s113, 1
          %s1971 = smul.addr %s1970, 32
          %s1972 = scalar_lea.vmem [#allocation7], %s1971
          %1973 = dma.done %s1969, 512
        $region60: #{conv_block_forward.2} parent=55 // pred_fallthru
          _
        // Predicated region
        $region61: #{conv_block_forward.2} parent=55 // pred_check
          %p1974 = pneg %p156
        $region62: #{conv_block_forward.2} parent=55 // pred_check_branch
          %1976 = sbr.rel (%p1974) target = $region64
        $region63: #{conv_block_forward.2} parent=55 // pred_region
          %p1977 = scmp.lt.s32.totalorder %s28, 1
          %s1978 = scalar_select %p1977, %s28, 1
          %p1979 = scmp.lt.s32.totalorder %s29, 1
          %s1980 = scalar_select %p1979, %s29, 1
          %s1981 = smul.addr %s1978, 2
          %s1982 = sadd.s32 %s1980, %s1981
          %s1983 = smul.addr %s1982, 4
          %s1984 = scalar_lea.vmem %s4, %s1983
        $region64: #{conv_block_forward.2} parent=55 // pred_fallthru
          _
        // Predicated region
        $region65: #{conv_block_forward.2} parent=55 // pred_check
          %p1985 = pneg %p184
        $region66: #{conv_block_forward.2} parent=55 // pred_check_branch
          %1987 = sbr.rel (%p1985) target = $region68
        $region67: #{conv_block_forward.2} parent=55 // pred_region
          %p1988 = scmp.lt.s32.totalorder %s28, 1
          %s1989 = scalar_select %p1988, %s28, 1
          %p1990 = scmp.lt.s32.totalorder %s29, 1
          %s1991 = scalar_select %p1990, %s29, 1
          %s1992 = smul.addr %s1989, 2
          %s1993 = sadd.s32 %s1991, %s1992
          %s1994 = smul.addr %s1993, 4
          %s1995 = scalar_lea.vmem %s5, %s1994
        $region68: #{conv_block_forward.2} parent=55 // pred_fallthru
          _
      $region56: #{conv_block_forward.2} parent=5 // pred_fallthru
        _
    $region6: #{conv_block_forward.2} parent=1 // loop_footer
      %s21 = sadd.s32 1, %s17
    $region7: #{conv_block_forward.2} parent=1 // loop_footer_branch
      %16 = sbr.rel target = $region3
    $region8: #{conv_block_forward.2} parent=1 // loop_exit
      _
    %1996 = vsyncpa [#allocation3], 1
    %s1997 = scalar_lea.sflag [#allocation3], 1
    %1998 = vsyncpa %s1997, 1
    %1999 = vsyncpa [#allocation4], 1
    %s2000 = scalar_lea.sflag [#allocation4], 1
    %2001 = vsyncpa %s2000, 1
    %2002 = vsyncpa [#allocation6], 1

</llo_original>
